<compile_context>
chip_gen: v6e
topology: v6e:2x2x1
jax: 0.10.0
libtpu: 0.0.40
codegen_flags: <defaults>
</compile_context>

<pallas_src>
import math

import jax
import jax.numpy as jnp
from jax import lax
from jax.experimental import pallas as pl
from jax.experimental.pallas import tpu as pltpu


SUB = 8  # sublane depth: inner static-unroll length and dense output-store tile


def _round_up(x, m):
    return ((x + m - 1) // m) * m


def _nbytes(shape, dtype):
    n = 1
    for s in shape:
        n *= int(s)
    return n * jnp.dtype(dtype).itemsize


def _choose_time_block(T, max_tt=32):
    """Time-block length: a multiple of SUB, <= max_tt, minimizing padded steps
    (with a mild penalty per extra grid step).  T is padded up to a multiple of
    the returned block; padded steps are masked in-kernel."""
    if T <= max_tt:
        return _round_up(T, SUB)
    best_tt, best_cost = SUB, None
    for tt in range(SUB, max_tt + 1, SUB):
        tpad = _round_up(T, tt)
        cost = (tpad - T) + 4 * (tpad // tt)
        if best_cost is None or cost <= best_cost:
            best_tt, best_cost = tt, cost
    return best_tt


def _mxu_prefers_merged_gates():
    """K=2*Hp merged gate matmul fills the 256-deep v6e/v7x MXU in one pass;
    on 128-deep MXUs (v2..v5) keep the split K=Hp matmul pair."""
    try:
        kind = jax.devices()[0].device_kind.lower()
    except Exception:
        return True
    return not any(v in kind for v in ("v2", "v3", "v4", "v5"))


def _pack_gate_cols(w_t, rows, H, Hp):
    """(in_dim, 3H) with gate-major columns [r|z|n] -> (rows, 3*Hp), zero pad."""
    in_dim = w_t.shape[0]
    w = jnp.asarray(w_t, jnp.float32).reshape(in_dim, 3, H)
    w = jnp.pad(w, ((0, rows - in_dim), (0, 0), (0, Hp - H)))
    return w.reshape(rows, 3 * Hp)


def _pack_gate_bias(b, H, Hp):
    """(3H,) -> (1, 3*Hp), zero padded per gate."""
    b = jnp.asarray(b, jnp.float32).reshape(3, H)
    return jnp.pad(b, ((0, 0), (0, Hp - H))).reshape(1, 3 * Hp)


def _make_gru_kernel(*, n_layers, hp, batch, tt, merge, guard_tail, t_total,
                     mm_dtype):
    """Builds the fused multi-layer GRU kernel (grid axis = time blocks)."""
    n_chunks = tt // SUB
    rows_per_chunk = SUB * batch

    def body(x_ref, wih0_ref, bih0_ref, whh0_ref, bgh0_ref, layer_refs,
             out_ref, hfin_ref, h_state):
        tb = pl.program_id(0)

        @pl.when(tb == 0)
        def _():
            h_state[...] = jnp.zeros_like(h_state)

        # Hoisted, pre-broadcast biases: once per grid step, not per timestep
        # (JAX does not CSE broadcast_in_dim inside the unrolled body).
        bih0 = bih0_ref[...]                                      # (1, 3Hp)
        bgh0 = jnp.broadcast_to(bgh0_ref[...], (batch, 3 * hp))   # (B, 3Hp)
        if merge:
            wmrg_ref, b4_ref = layer_refs
            b4 = [jnp.broadcast_to(b4_ref[l], (batch, 4 * hp))
                  for l in range(n_layers - 1)]
        else:
            wihr_ref, whhr_ref, bghr_ref, bginr_ref = layer_refs
            bghr = [jnp.broadcast_to(bghr_ref[l], (batch, 3 * hp))
                    for l in range(n_layers - 1)]
            bginr = [jnp.broadcast_to(bginr_ref[l], (batch, hp))
                     for l in range(n_layers - 1)]

        def chunk(c, carry):
            # Layer-0 input projection for the whole chunk: one MXU call per
            # SUB timesteps, off the per-step serial chain; b_ih0 folded in.
            row0 = pl.multiple_of(c * rows_per_chunk, 8)
            gi_chunk = jnp.dot(
                x_ref[pl.ds(row0, rows_per_chunk), :].astype(mm_dtype),
                wih0_ref[...], preferred_element_type=jnp.float32) + bih0

            out_rows = []
            for j in range(SUB):                   # static unroll: SUB steps
                if guard_tail:
                    valid = (tb * tt + c * SUB + j) < t_total
                gi = gi_chunk[j * batch:(j + 1) * batch, :]

                # ---- layer 0: gi precomputed; gh = h @ W_hh0^T + b_hh0 -----
                h_prev = h_state[0]
                gh = jnp.dot(h_prev.astype(mm_dtype), whh0_ref[...],
                             preferred_element_type=jnp.float32) + bgh0
                rz = jax.nn.sigmoid(gi[:, :2 * hp] + gh[:, :2 * hp])
                n = jnp.tanh(gi[:, 2 * hp:] + rz[:, :hp] * gh[:, 2 * hp:])
                h_new = n + rz[:, hp:] * (h_prev - n)
                if guard_tail:
                    h_new = jnp.where(valid, h_new, h_prev)
                h_state[0] = h_new
                layer_in = h_new

                # ---- layers 1..L-1 -----------------------------------------
                for l in range(1, n_layers):
                    h_prev = h_state[l]
                    if merge:
                        # One K=2*Hp MXU call; columns [rz summed | i_n | h_n].
                        lhs = jnp.concatenate([layer_in, h_prev], axis=-1)
                        g = jnp.dot(lhs.astype(mm_dtype), wmrg_ref[l - 1],
                                    preferred_element_type=jnp.float32)
                        g = g + b4[l - 1]
                        rz = jax.nn.sigmoid(g[:, :2 * hp])
                        n = jnp.tanh(g[:, 2 * hp:3 * hp]
                                     + rz[:, :hp] * g[:, 3 * hp:])
                    else:
                        # Split K=Hp pair (preferred on 128-deep v5 MXUs).
                        gi_l = jnp.dot(layer_in.astype(mm_dtype),
                                       wihr_ref[l - 1],
                                       preferred_element_type=jnp.float32)
                        gh = jnp.dot(h_prev.astype(mm_dtype), whhr_ref[l - 1],
                                     preferred_element_type=jnp.float32)
                        gh = gh + bghr[l - 1]
                        rz = jax.nn.sigmoid(gi_l[:, :2 * hp] + gh[:, :2 * hp])
                        n = jnp.tanh(gi_l[:, 2 * hp:] + bginr[l - 1]
                                     + rz[:, :hp] * gh[:, 2 * hp:])
                    h_new = n + rz[:, hp:] * (h_prev - n)
                    if guard_tail:
                        h_new = jnp.where(valid, h_new, h_prev)
                    h_state[l] = h_new
                    layer_in = h_new

                # torch out[-1, :, :]: batch row B-1 of the last layer.
                out_rows.append(layer_in[batch - 1:batch, :])

            # One dense, sublane-aligned (SUB, Hp) store per chunk instead of
            # SUB masked single-row stores.
            out_ref[pl.ds(pl.multiple_of(c * SUB, SUB), SUB), :] = (
                jnp.concatenate(out_rows, axis=0))
            return carry

        # Partial unroll: SUB steps unrolled inside, chunk loop not unrolled.
        lax.fori_loop(0, n_chunks, chunk, 0, unroll=False)

        @pl.when(tb == pl.num_programs(0) - 1)
        def _():
            hfin_ref[...] = h_state[n_layers - 1]

    if merge:
        def kernel(x_ref, wih0_ref, bih0_ref, whh0_ref, bgh0_ref,
                   wmrg_ref, b4_ref, out_ref, hfin_ref, h_state):
            body(x_ref, wih0_ref, bih0_ref, whh0_ref, bgh0_ref,
                 (wmrg_ref, b4_ref), out_ref, hfin_ref, h_state)
    else:
        def kernel(x_ref, wih0_ref, bih0_ref, whh0_ref, bgh0_ref,
                   wihr_ref, whhr_ref, bghr_ref, bginr_ref,
                   out_ref, hfin_ref, h_state):
            body(x_ref, wih0_ref, bih0_ref, whh0_ref, bgh0_ref,
                 (wihr_ref, whhr_ref, bghr_ref, bginr_ref),
                 out_ref, hfin_ref, h_state)
    return kernel


def gru_layer_forward(x, params, *, matmul_dtype=jnp.float32, merge_gates=None,
                      max_time_block=32):
    """Equivalent of GRULayer.forward (eval mode).

    x: (B, T, in_dim); params: [(w_ih, w_hh, b_ih, b_hh)] per layer in PyTorch
    nn.GRU layouts.  Returns (out[-1, :, :], h[-1, :, :]) = ((T, H), (B, H)).

    matmul_dtype: MXU-operand dtype for the weight slabs / LHS casts.  Default
      f32 (tight vs. the f32 PyTorch module); jnp.bfloat16 halves weight
      VMEM/DMA and uses the native MXU path (review) at ~1e-3 recurrent error.
    merge_gates: fuse each layer's (gi, gh) matmul pair into one K=2*Hp MXU
      call (l >= 1).  None = auto: on for v6e/v7x (256-deep MXU), off for v5.
    """
    # TODO(synk): inter-layer dropout (training mode only) omitted - eval semantics.
    B, T, D = x.shape
    n_layers = len(params)
    H = params[0][1].shape[1]            # w_hh: (3H, H)
    Hp = _round_up(H, 128)               # lane-align the hidden dim
    # TODO(synk): if EUP/VPU ever binds at larger B, measure packing the 3
    # gates of a tiny H into one 128-lane tile instead of 3 padded tiles.
    if merge_gates is None:
        merge_gates = _mxu_prefers_merged_gates()
    mm_dtype = jnp.dtype(matmul_dtype)

    TT = _choose_time_block(T, max_time_block)
    Tpad = _round_up(T, TT)
    n_blocks = Tpad // TT
    guard_tail = Tpad != T
    assert TT % SUB == 0 and Tpad % TT == 0

    # ---- input: time-major, padded, flattened to (Tpad*B, D) ----------------
    x_tm = jnp.transpose(x, (1, 0, 2)).astype(jnp.float32)       # (T, B, D)
    if guard_tail:
        x_tm = jnp.pad(x_tm, ((0, Tpad - T), (0, 0), (0, 0)))
    x2d = x_tm.reshape(Tpad * B, D)

    # ---- layer-0 weights (input projection runs in-kernel, per chunk) -------
    w_ih0, w_hh0, b_ih0, b_hh0 = params[0]
    wih0 = _pack_gate_cols(jnp.asarray(w_ih0).T, D, H, Hp).astype(mm_dtype)
    whh0 = _pack_gate_cols(jnp.asarray(w_hh0).T, Hp, H, Hp).astype(mm_dtype)
    bih0 = _pack_gate_bias(b_ih0, H, Hp)
    bgh0 = _pack_gate_bias(b_hh0, H, Hp)

    # ---- layers >= 1 ---------------------------------------------------------
    Lr = max(n_layers - 1, 1)
    if merge_gates:
        wmrg_list, b4_list = [], []
        for (w_ih, w_hh, b_ih, b_hh) in params[1:]:
            wihT = jnp.asarray(w_ih, jnp.float32).T               # (H, 3H)
            whhT = jnp.asarray(w_hh, jnp.float32).T
            zblk = jnp.zeros((Hp, Hp), jnp.float32)
            gp = lambda w: jnp.pad(w, ((0, Hp - H), (0, Hp - H)))
            top = jnp.concatenate([gp(wihT[:, :H]), gp(wihT[:, H:2 * H]),
                                   gp(wihT[:, 2 * H:]), zblk], axis=1)
            bot = jnp.concatenate([gp(whhT[:, :H]), gp(whhT[:, H:2 * H]),
                                   zblk, gp(whhT[:, 2 * H:])], axis=1)
            wmrg_list.append(jnp.concatenate([top, bot], axis=0))  # (2Hp, 4Hp)
            bi = jnp.asarray(b_ih, jnp.float32).reshape(3, H)
            bh = jnp.asarray(b_hh, jnp.float32).reshape(3, H)
            b4_list.append(jnp.concatenate(
                [jnp.pad(bi[0] + bh[0], (0, Hp - H)),
                 jnp.pad(bi[1] + bh[1], (0, Hp - H)),
                 jnp.pad(bi[2], (0, Hp - H)),
                 jnp.pad(bh[2], (0, Hp - H))]).reshape(1, 4 * Hp))
        if not wmrg_list:                 # n_layers == 1: dummies, never read
            wmrg_list = [jnp.zeros((2 * Hp, 4 * Hp), jnp.float32)]
            b4_list = [jnp.zeros((1, 4 * Hp), jnp.float32)]
        layer_inputs = (jnp.stack(wmrg_list).astype(mm_dtype),   # (Lr,2Hp,4Hp)
                        jnp.stack(b4_list))                      # (Lr,1,4Hp) f32
        layer_specs = [
            pl.BlockSpec((Lr, 2 * Hp, 4 * Hp), lambda t: (0, 0, 0)),
            pl.BlockSpec((Lr, 1, 4 * Hp), lambda t: (0, 0, 0)),
        ]
    else:
        wihr_list, whhr_list, bghr_list, bginr_list = [], [], [], []
        for (w_ih, w_hh, b_ih, b_hh) in params[1:]:
            wihr_list.append(_pack_gate_cols(jnp.asarray(w_ih).T, Hp, H, Hp))
            whhr_list.append(_pack_gate_cols(jnp.asarray(w_hh).T, Hp, H, Hp))
            bi = jnp.asarray(b_ih, jnp.float32).reshape(3, H)
            bh = jnp.asarray(b_hh, jnp.float32).reshape(3, H)
            bghr_list.append(_pack_gate_bias(
                jnp.concatenate([bi[0] + bh[0], bi[1] + bh[1], bh[2]]), H, Hp))
            bginr_list.append(jnp.pad(bi[2], (0, Hp - H)).reshape(1, Hp))
        if not wihr_list:
            wihr_list = [jnp.zeros((Hp, 3 * Hp), jnp.float32)]
            whhr_list = [jnp.zeros((Hp, 3 * Hp), jnp.float32)]
            bghr_list = [jnp.zeros((1, 3 * Hp), jnp.float32)]
            bginr_list = [jnp.zeros((1, Hp), jnp.float32)]
        layer_inputs = (jnp.stack(wihr_list).astype(mm_dtype),
                        jnp.stack(whhr_list).astype(mm_dtype),
                        jnp.stack(bghr_list), jnp.stack(bginr_list))
        layer_specs = [
            pl.BlockSpec((Lr, Hp, 3 * Hp), lambda t: (0, 0, 0)),
            pl.BlockSpec((Lr, Hp, 3 * Hp), lambda t: (0, 0, 0)),
            pl.BlockSpec((Lr, 1, 3 * Hp), lambda t: (0, 0, 0)),
            pl.BlockSpec((Lr, 1, Hp), lambda t: (0, 0, 0)),
        ]

    kernel = _make_gru_kernel(n_layers=n_layers, hp=Hp, batch=B, tt=TT,
                              merge=merge_gates, guard_tail=guard_tail,
                              t_total=T, mm_dtype=mm_dtype)

    in_specs = [
        pl.BlockSpec((TT * B, D), lambda t: (t, 0)),       # x time block
        pl.BlockSpec((D, 3 * Hp), lambda t: (0, 0)),       # W_ih0^T (resident)
        pl.BlockSpec((1, 3 * Hp), lambda t: (0, 0)),       # b_ih0
        pl.BlockSpec((Hp, 3 * Hp), lambda t: (0, 0)),      # W_hh0^T
        pl.BlockSpec((1, 3 * Hp), lambda t: (0, 0)),       # b_hh0
    ] + layer_specs
    # TODO(synk): on v7x mark the resident weight specs pipeline_mode=
    # pl.Buffered(1) (constant index_map needs no double buffer) once that
    # path is verified on the pinned JAX; the footprint here is tiny anyway.

    out_specs = [
        pl.BlockSpec((TT, Hp), lambda t: (t, 0)),          # out[-1,:,:] rows
        pl.BlockSpec((B, Hp), lambda t: (0, 0)),           # h[-1,:,:] (resident)
    ]
    scratch_shapes = [pltpu.VMEM((n_layers, B, Hp), jnp.float32)]  # hidden carry

    # Explicit VMEM budget (v7x: 64 MiB physical / 32 MiB scoped default).
    resident = [wih0, bih0, whh0, bgh0] + list(layer_inputs)
    est = 2 * _nbytes((TT * B, D), jnp.float32)
    est += 2 * sum(_nbytes(a.shape, a.dtype) for a in resident)
    est += 2 * (_nbytes((TT, Hp), jnp.float32) + _nbytes((B, Hp), jnp.float32))
    est += _nbytes((n_layers, B, Hp), jnp.float32)
    vmem_limit = int(min(64 << 20, max(32 << 20, 2 * est + (1 << 20))))

    # TODO(synk): at large B on v7x, add a leading "parallel" batch-chunk grid
    # axis (per-chunk hidden scratch) so both TensorCores run; at B=2 a second
    # core would not help (MXU sees only 2 of 256 LHS rows per call).
    out_pad, hfin = pl.pallas_call(
        kernel,
        out_shape=(jax.ShapeDtypeStruct((Tpad, Hp), jnp.float32),
                   jax.ShapeDtypeStruct((B, Hp), jnp.float32)),
        grid_spec=pltpu.PrefetchScalarGridSpec(
            num_scalar_prefetch=0,
            grid=(n_blocks,),
            in_specs=in_specs,
            out_specs=out_specs,
            scratch_shapes=scratch_shapes),
        compiler_params=pltpu.CompilerParams(
            dimension_semantics=("arbitrary",),    # time recurrence: sequential
            vmem_limit_bytes=vmem_limit),
    )(x2d, wih0, bih0, whh0, bgh0, *layer_inputs)

    return out_pad[:T, :H], hfin[:, :H]


def init_gru_params(key, in_dim, hid_dim, n_layers):
    """Deterministic init matching nn.GRU shapes (U(-1/sqrt(H), 1/sqrt(H)))."""
    params = []
    k = 1.0 / math.sqrt(hid_dim)
    for layer in range(n_layers):
        d = in_dim if layer == 0 else hid_dim
        key, k0, k1, k2, k3 = jax.random.split(key, 5)
        w_ih = jax.random.uniform(k0, (3 * hid_dim, d), jnp.float32, -k, k)
        w_hh = jax.random.uniform(k1, (3 * hid_dim, hid_dim), jnp.float32, -k, k)
        b_ih = jax.random.uniform(k2, (3 * hid_dim,), jnp.float32, -k, k)
        b_hh = jax.random.uniform(k3, (3 * hid_dim,), jnp.float32, -k, k)
        params.append((w_ih, w_hh, b_ih, b_hh))
    return params


def gru_reference(x, params):
    """Pure-JAX reference (lax.scan) for correctness checking."""
    B = x.shape[0]
    inp = jnp.transpose(x, (1, 0, 2))
    hs = []
    for (w_ih, w_hh, b_ih, b_hh) in params:
        H = w_hh.shape[1]

        def step(h, x_t, w_ih=w_ih, w_hh=w_hh, b_ih=b_ih, b_hh=b_hh):
            gi = x_t @ w_ih.T + b_ih
            gh = h @ w_hh.T + b_hh
            i_r, i_z, i_n = jnp.split(gi, 3, axis=-1)
            h_r, h_z, h_n = jnp.split(gh, 3, axis=-1)
            r = jax.nn.sigmoid(i_r + h_r)
            z = jax.nn.sigmoid(i_z + h_z)
            n = jnp.tanh(i_n + r * h_n)
            h_new = (1.0 - z) * n + z * h
            return h_new, h_new

        h0 = jnp.zeros((B, H), jnp.float32)
        h_fin, out = jax.lax.scan(step, h0, inp)
        inp = out
        hs.append(h_fin)
    return inp[:, -1, :], hs[-1]


if __name__ == "__main__":
    B, T, IN_DIM, HID_DIM, N_LAYERS = 2, 8, 16, 32, 2

    key = jax.random.PRNGKey(0)
    kx, kp = jax.random.split(key)
    x = jax.random.normal(kx, (B, T, IN_DIM), jnp.float32)   # (batch, seq, in_dim)
    params = init_gru_params(kp, IN_DIM, HID_DIM, N_LAYERS)

    out_ref_, h_ref_ = gru_reference(x, params)

    configs = [
        # exact f32 MXU operands, merged K=2*Hp gate matmul (v6e/v7x default)
        ("merged-f32", dict(matmul_dtype=jnp.float32, merge_gates=True), 1e-4),
        # split K=Hp matmul pair (the v5 path), exact f32
        ("split-f32", dict(matmul_dtype=jnp.float32, merge_gates=False), 1e-4),
        # bf16 MXU operands (review fast path): native MXU dtype, half the
        # weight VMEM/DMA; recurrent rounding compounds -> looser tolerance.
        ("auto-bf16", dict(matmul_dtype=jnp.bfloat16), 5e-2),
    ]
    for name, kwargs, tol in configs:
        out, h = gru_layer_forward(x, params, **kwargs)
        jax.block_until_ready((out, h))
        assert out.shape == (T, HID_DIM), (name, out.shape)
        assert h.shape == (B, HID_DIM), (name, h.shape)
        assert jnp.allclose(out, out_ref_, atol=tol, rtol=tol), f"out mismatch ({name})"
        assert jnp.allclose(h, h_ref_, atol=tol, rtol=tol), f"h mismatch ({name})"

    print("KERNEL_OK")
</pallas_src>

<mosaic_0001>
module attributes {stable_mosaic.version = 11 : i64} {
  func.func @kernel(%arg0: i32, %arg1: memref<16x16xf32, #tpu.memory_space<vmem>>, %arg2: memref<16x384xf32, #tpu.memory_space<vmem>>, %arg3: memref<1x384xf32, #tpu.memory_space<vmem>>, %arg4: memref<128x384xf32, #tpu.memory_space<vmem>>, %arg5: memref<1x384xf32, #tpu.memory_space<vmem>>, %arg6: memref<1x256x512xf32, #tpu.memory_space<vmem>>, %arg7: memref<1x1x512xf32, #tpu.memory_space<vmem>>, %arg8: memref<8x128xf32, #tpu.memory_space<vmem>>, %arg9: memref<2x128xf32, #tpu.memory_space<vmem>>, %arg10: memref<2x2x128xf32, #tpu.memory_space<vmem>>) attributes {dimension_semantics = [#tpu.dimension_semantics<arbitrary>], iteration_bounds = array<i64: 1>, scalar_prefetch = 0 : i64, scratch_operands = 1 : i64, tpu.core_type = #tpu.core_type<tc>, window_params = [{transform_indices = @transform_0, window_bounds = array<i64: 16, 16>}, {pipeline_mode = #tpu.pipeline_mode<synchronous>, transform_indices = @transform_1, window_bounds = array<i64: 16, 384>}, {pipeline_mode = #tpu.pipeline_mode<synchronous>, transform_indices = @transform_2, window_bounds = array<i64: 1, 384>}, {pipeline_mode = #tpu.pipeline_mode<synchronous>, transform_indices = @transform_3, window_bounds = array<i64: 128, 384>}, {pipeline_mode = #tpu.pipeline_mode<synchronous>, transform_indices = @transform_4, window_bounds = array<i64: 1, 384>}, {pipeline_mode = #tpu.pipeline_mode<synchronous>, transform_indices = @transform_5, window_bounds = array<i64: 1, 256, 512>}, {pipeline_mode = #tpu.pipeline_mode<synchronous>, transform_indices = @transform_6, window_bounds = array<i64: 1, 1, 512>}, {transform_indices = @transform_7, window_bounds = array<i64: 8, 128>}, {pipeline_mode = #tpu.pipeline_mode<synchronous>, transform_indices = @transform_8, window_bounds = array<i64: 2, 128>}]} {
    %c0_i32 = arith.constant 0 : i32
    %0 = arith.cmpi eq, %arg0, %c0_i32 : i32
    %1 = arith.extui %0 : i1 to i32
    %c0_i32_0 = arith.constant 0 : i32
    %2 = arith.cmpi ne, %1, %c0_i32_0 : i32
    scf.if %2 {
      %cst_181 = arith.constant 0.000000e+00 : f32
      %459 = vector.broadcast %cst_181 : f32 to vector<2x2x128xf32>
      %c0_182 = arith.constant 0 : index
      %c0_183 = arith.constant 0 : index
      %c0_184 = arith.constant 0 : index
      %460 = vector.load %arg10[%c0_182, %c0_183, %c0_184] : memref<2x2x128xf32, #tpu.memory_space<vmem>>, vector<2x2x128xf32>
      tpu.vector_store %arg10[%c0_182, %c0_183, %c0_184], %459 {strides = array<i32>} : memref<2x2x128xf32, #tpu.memory_space<vmem>>, vector<2x2x128xf32>,
    } else {
    }
    %c0 = arith.constant 0 : index
    %c0_1 = arith.constant 0 : index
    %3 = vector.load %arg3[%c0, %c0_1] : memref<1x384xf32, #tpu.memory_space<vmem>>, vector<1x384xf32>
    %c0_2 = arith.constant 0 : index
    %c0_3 = arith.constant 0 : index
    %4 = vector.load %arg5[%c0_2, %c0_3] : memref<1x384xf32, #tpu.memory_space<vmem>>, vector<1x384xf32>
    %5 = vector.shape_cast %4 : vector<1x384xf32> to vector<1x384xf32>
    %6 = vector.broadcast %5 : vector<1x384xf32> to vector<2x384xf32>
    %c0_4 = arith.constant 0 : index
    %c0_5 = arith.constant 0 : index
    %c0_6 = arith.constant 0 : index
    %7 = vector.load %arg7[%c0_4, %c0_5, %c0_6] : memref<1x1x512xf32, #tpu.memory_space<vmem>>, vector<1x1x512xf32>
    %8 = vector.shape_cast %7 : vector<1x1x512xf32> to vector<1x512xf32>
    %9 = vector.shape_cast %8 : vector<1x512xf32> to vector<1x512xf32>
    %10 = vector.broadcast %9 : vector<1x512xf32> to vector<2x512xf32>
    %c0_i32_7 = arith.constant 0 : i32
    %c16_i32 = arith.constant 16 : i32
    %11 = arith.muli %c0_i32_7, %c16_i32 : i32
    %12 = tpu.assume_multiple %11, 8 : i32
    %13 = arith.index_cast %12 : i32 to index
    %c0_8 = arith.constant 0 : index
    %14 = vector.load %arg1[%13, %c0_8] : memref<16x16xf32, #tpu.memory_space<vmem>>, vector<16x16xf32>
    %c0_9 = arith.constant 0 : index
    %c0_10 = arith.constant 0 : index
    %15 = vector.load %arg2[%c0_9, %c0_10] : memref<16x384xf32, #tpu.memory_space<vmem>>, vector<16x384xf32>
    %cst = arith.constant dense<0.000000e+00> : vector<16x384xf32>
    %16 = tpu.matmul %14, %15, %cst {dimension_numbers = #tpu.dot_dimension_numbers<[1], [0], [0], [1], [0, 0, 1, 1], [], []>} : vector<16x16xf32>, vector<16x384xf32>, vector<16x384xf32> -> vector<16x384xf32>
    %17 = vector.broadcast %3 : vector<1x384xf32> to vector<16x384xf32>
    %18 = arith.addf %16, %17 : vector<16x384xf32>
    %19 = vector.extract_strided_slice %18 {offsets = [0, 0], sizes = [2, 384], strides = [1, 1]} : vector<16x384xf32> to vector<2x384xf32>
    %c0_11 = arith.constant 0 : index
    %c0_12 = arith.constant 0 : index
    %c0_13 = arith.constant 0 : index
    %20 = vector.load %arg10[%c0_11, %c0_12, %c0_13] : memref<2x2x128xf32, #tpu.memory_space<vmem>>, vector<1x2x128xf32>
    %21 = vector.shape_cast %20 : vector<1x2x128xf32> to vector<2x128xf32>
    %c0_14 = arith.constant 0 : index
    %c0_15 = arith.constant 0 : index
    %22 = vector.load %arg4[%c0_14, %c0_15] : memref<128x384xf32, #tpu.memory_space<vmem>>, vector<128x384xf32>
    %cst_16 = arith.constant dense<0.000000e+00> : vector<2x384xf32>
    %23 = tpu.matmul %21, %22, %cst_16 {dimension_numbers = #tpu.dot_dimension_numbers<[1], [0], [0], [1], [0, 0, 1, 1], [], []>} : vector<2x128xf32>, vector<128x384xf32>, vector<2x384xf32> -> vector<2x384xf32>
    %24 = arith.addf %23, %6 : vector<2x384xf32>
    %25 = vector.extract_strided_slice %19 {offsets = [0, 0], sizes = [2, 256], strides = [1, 1]} : vector<2x384xf32> to vector<2x256xf32>
    %26 = vector.extract_strided_slice %24 {offsets = [0, 0], sizes = [2, 256], strides = [1, 1]} : vector<2x384xf32> to vector<2x256xf32>
    %27 = arith.addf %25, %26 : vector<2x256xf32>
    %28 = arith.negf %27 : vector<2x256xf32>
    %29 = math.exp %28 : vector<2x256xf32>
    %cst_17 = arith.constant 1.000000e+00 : f32
    %30 = vector.broadcast %cst_17 : f32 to vector<2x256xf32>
    %31 = arith.addf %30, %29 : vector<2x256xf32>
    %32 = arith.divf %30, %31 : vector<2x256xf32>
    %33 = vector.extract_strided_slice %19 {offsets = [0, 256], sizes = [2, 128], strides = [1, 1]} : vector<2x384xf32> to vector<2x128xf32>
    %34 = vector.extract_strided_slice %32 {offsets = [0, 0], sizes = [2, 128], strides = [1, 1]} : vector<2x256xf32> to vector<2x128xf32>
    %35 = vector.extract_strided_slice %24 {offsets = [0, 256], sizes = [2, 128], strides = [1, 1]} : vector<2x384xf32> to vector<2x128xf32>
    %36 = arith.mulf %34, %35 : vector<2x128xf32>
    %37 = arith.addf %33, %36 : vector<2x128xf32>
    %38 = math.tanh %37 : vector<2x128xf32>
    %39 = vector.extract_strided_slice %32 {offsets = [0, 128], sizes = [2, 128], strides = [1, 1]} : vector<2x256xf32> to vector<2x128xf32>
    %40 = arith.subf %21, %38 : vector<2x128xf32>
    %41 = arith.mulf %39, %40 : vector<2x128xf32>
    %42 = arith.addf %38, %41 : vector<2x128xf32>
    %c0_18 = arith.constant 0 : index
    %c0_19 = arith.constant 0 : index
    %c0_20 = arith.constant 0 : index
    %43 = vector.load %arg10[%c0_18, %c0_19, %c0_20] : memref<2x2x128xf32, #tpu.memory_space<vmem>>, vector<1x2x128xf32>
    %44 = vector.shape_cast %43 : vector<1x2x128xf32> to vector<2x128xf32>
    %45 = vector.shape_cast %42 : vector<2x128xf32> to vector<1x2x128xf32>
    tpu.vector_store %arg10[%c0_18, %c0_19, %c0_20], %45 {strides = array<i32>} : memref<2x2x128xf32, #tpu.memory_space<vmem>>, vector<1x2x128xf32>,
    %c1 = arith.constant 1 : index
    %c0_21 = arith.constant 0 : index
    %c0_22 = arith.constant 0 : index
    %46 = vector.load %arg10[%c1, %c0_21, %c0_22] : memref<2x2x128xf32, #tpu.memory_space<vmem>>, vector<1x2x128xf32>
    %47 = vector.shape_cast %46 : vector<1x2x128xf32> to vector<2x128xf32>
    %48 = tpu.concatenate %42, %47 in 1 : vector<2x128xf32>, vector<2x128xf32> -> vector<2x256xf32>
    %c0_23 = arith.constant 0 : index
    %c0_24 = arith.constant 0 : index
    %c0_25 = arith.constant 0 : index
    %49 = vector.load %arg6[%c0_23, %c0_24, %c0_25] : memref<1x256x512xf32, #tpu.memory_space<vmem>>, vector<1x256x512xf32>
    %50 = vector.shape_cast %49 : vector<1x256x512xf32> to vector<256x512xf32>
    %cst_26 = arith.constant dense<0.000000e+00> : vector<2x512xf32>
    %51 = tpu.matmul %48, %50, %cst_26 {dimension_numbers = #tpu.dot_dimension_numbers<[1], [0], [0], [1], [0, 0, 1, 1], [], []>} : vector<2x256xf32>, vector<256x512xf32>, vector<2x512xf32> -> vector<2x512xf32>
    %52 = arith.addf %51, %10 : vector<2x512xf32>
    %53 = vector.extract_strided_slice %52 {offsets = [0, 0], sizes = [2, 256], strides = [1, 1]} : vector<2x512xf32> to vector<2x256xf32>
    %54 = arith.negf %53 : vector<2x256xf32>
    %55 = math.exp %54 : vector<2x256xf32>
    %cst_27 = arith.constant 1.000000e+00 : f32
    %56 = vector.broadcast %cst_27 : f32 to vector<2x256xf32>
    %57 = arith.addf %56, %55 : vector<2x256xf32>
    %58 = arith.divf %56, %57 : vector<2x256xf32>
    %59 = vector.extract_strided_slice %52 {offsets = [0, 256], sizes = [2, 128], strides = [1, 1]} : vector<2x512xf32> to vector<2x128xf32>
    %60 = vector.extract_strided_slice %58 {offsets = [0, 0], sizes = [2, 128], strides = [1, 1]} : vector<2x256xf32> to vector<2x128xf32>
    %61 = vector.extract_strided_slice %52 {offsets = [0, 384], sizes = [2, 128], strides = [1, 1]} : vector<2x512xf32> to vector<2x128xf32>
    %62 = arith.mulf %60, %61 : vector<2x128xf32>
    %63 = arith.addf %59, %62 : vector<2x128xf32>
    %64 = math.tanh %63 : vector<2x128xf32>
    %65 = vector.extract_strided_slice %58 {offsets = [0, 128], sizes = [2, 128], strides = [1, 1]} : vector<2x256xf32> to vector<2x128xf32>
    %66 = arith.subf %47, %64 : vector<2x128xf32>
    %67 = arith.mulf %65, %66 : vector<2x128xf32>
    %68 = arith.addf %64, %67 : vector<2x128xf32>
    %c1_28 = arith.constant 1 : index
    %c0_29 = arith.constant 0 : index
    %c0_30 = arith.constant 0 : index
    %69 = vector.load %arg10[%c1_28, %c0_29, %c0_30] : memref<2x2x128xf32, #tpu.memory_space<vmem>>, vector<1x2x128xf32>
    %70 = vector.shape_cast %69 : vector<1x2x128xf32> to vector<2x128xf32>
    %71 = vector.shape_cast %68 : vector<2x128xf32> to vector<1x2x128xf32>
    tpu.vector_store %arg10[%c1_28, %c0_29, %c0_30], %71 {strides = array<i32>} : memref<2x2x128xf32, #tpu.memory_space<vmem>>, vector<1x2x128xf32>,
    %72 = vector.extract_strided_slice %68 {offsets = [1, 0], sizes = [1, 128], strides = [1, 1]} : vector<2x128xf32> to vector<1x128xf32>
    %73 = vector.extract_strided_slice %18 {offsets = [2, 0], sizes = [2, 384], strides = [1, 1]} : vector<16x384xf32> to vector<2x384xf32>
    %c0_31 = arith.constant 0 : index
    %c0_32 = arith.constant 0 : index
    %c0_33 = arith.constant 0 : index
    %74 = vector.load %arg10[%c0_31, %c0_32, %c0_33] : memref<2x2x128xf32, #tpu.memory_space<vmem>>, vector<1x2x128xf32>
    %75 = vector.shape_cast %74 : vector<1x2x128xf32> to vector<2x128xf32>
    %c0_34 = arith.constant 0 : index
    %c0_35 = arith.constant 0 : index
    %76 = vector.load %arg4[%c0_34, %c0_35] : memref<128x384xf32, #tpu.memory_space<vmem>>, vector<128x384xf32>
    %cst_36 = arith.constant dense<0.000000e+00> : vector<2x384xf32>
    %77 = tpu.matmul %75, %76, %cst_36 {dimension_numbers = #tpu.dot_dimension_numbers<[1], [0], [0], [1], [0, 0, 1, 1], [], []>} : vector<2x128xf32>, vector<128x384xf32>, vector<2x384xf32> -> vector<2x384xf32>
    %78 = arith.addf %77, %6 : vector<2x384xf32>
    %79 = vector.extract_strided_slice %73 {offsets = [0, 0], sizes = [2, 256], strides = [1, 1]} : vector<2x384xf32> to vector<2x256xf32>
    %80 = vector.extract_strided_slice %78 {offsets = [0, 0], sizes = [2, 256], strides = [1, 1]} : vector<2x384xf32> to vector<2x256xf32>
    %81 = arith.addf %79, %80 : vector<2x256xf32>
    %82 = arith.negf %81 : vector<2x256xf32>
    %83 = math.exp %82 : vector<2x256xf32>
    %cst_37 = arith.constant 1.000000e+00 : f32
    %84 = vector.broadcast %cst_37 : f32 to vector<2x256xf32>
    %85 = arith.addf %84, %83 : vector<2x256xf32>
    %86 = arith.divf %84, %85 : vector<2x256xf32>
    %87 = vector.extract_strided_slice %73 {offsets = [0, 256], sizes = [2, 128], strides = [1, 1]} : vector<2x384xf32> to vector<2x128xf32>
    %88 = vector.extract_strided_slice %86 {offsets = [0, 0], sizes = [2, 128], strides = [1, 1]} : vector<2x256xf32> to vector<2x128xf32>
    %89 = vector.extract_strided_slice %78 {offsets = [0, 256], sizes = [2, 128], strides = [1, 1]} : vector<2x384xf32> to vector<2x128xf32>
    %90 = arith.mulf %88, %89 : vector<2x128xf32>
    %91 = arith.addf %87, %90 : vector<2x128xf32>
    %92 = math.tanh %91 : vector<2x128xf32>
    %93 = vector.extract_strided_slice %86 {offsets = [0, 128], sizes = [2, 128], strides = [1, 1]} : vector<2x256xf32> to vector<2x128xf32>
    %94 = arith.subf %75, %92 : vector<2x128xf32>
    %95 = arith.mulf %93, %94 : vector<2x128xf32>
    %96 = arith.addf %92, %95 : vector<2x128xf32>
    %c0_38 = arith.constant 0 : index
    %c0_39 = arith.constant 0 : index
    %c0_40 = arith.constant 0 : index
    %97 = vector.load %arg10[%c0_38, %c0_39, %c0_40] : memref<2x2x128xf32, #tpu.memory_space<vmem>>, vector<1x2x128xf32>
    %98 = vector.shape_cast %97 : vector<1x2x128xf32> to vector<2x128xf32>
    %99 = vector.shape_cast %96 : vector<2x128xf32> to vector<1x2x128xf32>
    tpu.vector_store %arg10[%c0_38, %c0_39, %c0_40], %99 {strides = array<i32>} : memref<2x2x128xf32, #tpu.memory_space<vmem>>, vector<1x2x128xf32>,
    %c1_41 = arith.constant 1 : index
    %c0_42 = arith.constant 0 : index
    %c0_43 = arith.constant 0 : index
    %100 = vector.load %arg10[%c1_41, %c0_42, %c0_43] : memref<2x2x128xf32, #tpu.memory_space<vmem>>, vector<1x2x128xf32>
    %101 = vector.shape_cast %100 : vector<1x2x128xf32> to vector<2x128xf32>
    %102 = tpu.concatenate %96, %101 in 1 : vector<2x128xf32>, vector<2x128xf32> -> vector<2x256xf32>
    %c0_44 = arith.constant 0 : index
    %c0_45 = arith.constant 0 : index
    %c0_46 = arith.constant 0 : index
    %103 = vector.load %arg6[%c0_44, %c0_45, %c0_46] : memref<1x256x512xf32, #tpu.memory_space<vmem>>, vector<1x256x512xf32>
    %104 = vector.shape_cast %103 : vector<1x256x512xf32> to vector<256x512xf32>
    %cst_47 = arith.constant dense<0.000000e+00> : vector<2x512xf32>
    %105 = tpu.matmul %102, %104, %cst_47 {dimension_numbers = #tpu.dot_dimension_numbers<[1], [0], [0], [1], [0, 0, 1, 1], [], []>} : vector<2x256xf32>, vector<256x512xf32>, vector<2x512xf32> -> vector<2x512xf32>
    %106 = arith.addf %105, %10 : vector<2x512xf32>
    %107 = vector.extract_strided_slice %106 {offsets = [0, 0], sizes = [2, 256], strides = [1, 1]} : vector<2x512xf32> to vector<2x256xf32>
    %108 = arith.negf %107 : vector<2x256xf32>
    %109 = math.exp %108 : vector<2x256xf32>
    %cst_48 = arith.constant 1.000000e+00 : f32
    %110 = vector.broadcast %cst_48 : f32 to vector<2x256xf32>
    %111 = arith.addf %110, %109 : vector<2x256xf32>
    %112 = arith.divf %110, %111 : vector<2x256xf32>
    %113 = vector.extract_strided_slice %106 {offsets = [0, 256], sizes = [2, 128], strides = [1, 1]} : vector<2x512xf32> to vector<2x128xf32>
    %114 = vector.extract_strided_slice %112 {offsets = [0, 0], sizes = [2, 128], strides = [1, 1]} : vector<2x256xf32> to vector<2x128xf32>
    %115 = vector.extract_strided_slice %106 {offsets = [0, 384], sizes = [2, 128], strides = [1, 1]} : vector<2x512xf32> to vector<2x128xf32>
    %116 = arith.mulf %114, %115 : vector<2x128xf32>
    %117 = arith.addf %113, %116 : vector<2x128xf32>
    %118 = math.tanh %117 : vector<2x128xf32>
    %119 = vector.extract_strided_slice %112 {offsets = [0, 128], sizes = [2, 128], strides = [1, 1]} : vector<2x256xf32> to vector<2x128xf32>
    %120 = arith.subf %101, %118 : vector<2x128xf32>
    %121 = arith.mulf %119, %120 : vector<2x128xf32>
    %122 = arith.addf %118, %121 : vector<2x128xf32>
    %c1_49 = arith.constant 1 : index
    %c0_50 = arith.constant 0 : index
    %c0_51 = arith.constant 0 : index
    %123 = vector.load %arg10[%c1_49, %c0_50, %c0_51] : memref<2x2x128xf32, #tpu.memory_space<vmem>>, vector<1x2x128xf32>
    %124 = vector.shape_cast %123 : vector<1x2x128xf32> to vector<2x128xf32>
    %125 = vector.shape_cast %122 : vector<2x128xf32> to vector<1x2x128xf32>
    tpu.vector_store %arg10[%c1_49, %c0_50, %c0_51], %125 {strides = array<i32>} : memref<2x2x128xf32, #tpu.memory_space<vmem>>, vector<1x2x128xf32>,
    %126 = vector.extract_strided_slice %122 {offsets = [1, 0], sizes = [1, 128], strides = [1, 1]} : vector<2x128xf32> to vector<1x128xf32>
    %127 = vector.extract_strided_slice %18 {offsets = [4, 0], sizes = [2, 384], strides = [1, 1]} : vector<16x384xf32> to vector<2x384xf32>
    %c0_52 = arith.constant 0 : index
    %c0_53 = arith.constant 0 : index
    %c0_54 = arith.constant 0 : index
    %128 = vector.load %arg10[%c0_52, %c0_53, %c0_54] : memref<2x2x128xf32, #tpu.memory_space<vmem>>, vector<1x2x128xf32>
    %129 = vector.shape_cast %128 : vector<1x2x128xf32> to vector<2x128xf32>
    %c0_55 = arith.constant 0 : index
    %c0_56 = arith.constant 0 : index
    %130 = vector.load %arg4[%c0_55, %c0_56] : memref<128x384xf32, #tpu.memory_space<vmem>>, vector<128x384xf32>
    %cst_57 = arith.constant dense<0.000000e+00> : vector<2x384xf32>
    %131 = tpu.matmul %129, %130, %cst_57 {dimension_numbers = #tpu.dot_dimension_numbers<[1], [0], [0], [1], [0, 0, 1, 1], [], []>} : vector<2x128xf32>, vector<128x384xf32>, vector<2x384xf32> -> vector<2x384xf32>
    %132 = arith.addf %131, %6 : vector<2x384xf32>
    %133 = vector.extract_strided_slice %127 {offsets = [0, 0], sizes = [2, 256], strides = [1, 1]} : vector<2x384xf32> to vector<2x256xf32>
    %134 = vector.extract_strided_slice %132 {offsets = [0, 0], sizes = [2, 256], strides = [1, 1]} : vector<2x384xf32> to vector<2x256xf32>
    %135 = arith.addf %133, %134 : vector<2x256xf32>
    %136 = arith.negf %135 : vector<2x256xf32>
    %137 = math.exp %136 : vector<2x256xf32>
    %cst_58 = arith.constant 1.000000e+00 : f32
    %138 = vector.broadcast %cst_58 : f32 to vector<2x256xf32>
    %139 = arith.addf %138, %137 : vector<2x256xf32>
    %140 = arith.divf %138, %139 : vector<2x256xf32>
    %141 = vector.extract_strided_slice %127 {offsets = [0, 256], sizes = [2, 128], strides = [1, 1]} : vector<2x384xf32> to vector<2x128xf32>
    %142 = vector.extract_strided_slice %140 {offsets = [0, 0], sizes = [2, 128], strides = [1, 1]} : vector<2x256xf32> to vector<2x128xf32>
    %143 = vector.extract_strided_slice %132 {offsets = [0, 256], sizes = [2, 128], strides = [1, 1]} : vector<2x384xf32> to vector<2x128xf32>
    %144 = arith.mulf %142, %143 : vector<2x128xf32>
    %145 = arith.addf %141, %144 : vector<2x128xf32>
    %146 = math.tanh %145 : vector<2x128xf32>
    %147 = vector.extract_strided_slice %140 {offsets = [0, 128], sizes = [2, 128], strides = [1, 1]} : vector<2x256xf32> to vector<2x128xf32>
    %148 = arith.subf %129, %146 : vector<2x128xf32>
    %149 = arith.mulf %147, %148 : vector<2x128xf32>
    %150 = arith.addf %146, %149 : vector<2x128xf32>
    %c0_59 = arith.constant 0 : index
    %c0_60 = arith.constant 0 : index
    %c0_61 = arith.constant 0 : index
    %151 = vector.load %arg10[%c0_59, %c0_60, %c0_61] : memref<2x2x128xf32, #tpu.memory_space<vmem>>, vector<1x2x128xf32>
    %152 = vector.shape_cast %151 : vector<1x2x128xf32> to vector<2x128xf32>
    %153 = vector.shape_cast %150 : vector<2x128xf32> to vector<1x2x128xf32>
    tpu.vector_store %arg10[%c0_59, %c0_60, %c0_61], %153 {strides = array<i32>} : memref<2x2x128xf32, #tpu.memory_space<vmem>>, vector<1x2x128xf32>,
    %c1_62 = arith.constant 1 : index
    %c0_63 = arith.constant 0 : index
    %c0_64 = arith.constant 0 : index
    %154 = vector.load %arg10[%c1_62, %c0_63, %c0_64] : memref<2x2x128xf32, #tpu.memory_space<vmem>>, vector<1x2x128xf32>
    %155 = vector.shape_cast %154 : vector<1x2x128xf32> to vector<2x128xf32>
    %156 = tpu.concatenate %150, %155 in 1 : vector<2x128xf32>, vector<2x128xf32> -> vector<2x256xf32>
    %c0_65 = arith.constant 0 : index
    %c0_66 = arith.constant 0 : index
    %c0_67 = arith.constant 0 : index
    %157 = vector.load %arg6[%c0_65, %c0_66, %c0_67] : memref<1x256x512xf32, #tpu.memory_space<vmem>>, vector<1x256x512xf32>
    %158 = vector.shape_cast %157 : vector<1x256x512xf32> to vector<256x512xf32>
    %cst_68 = arith.constant dense<0.000000e+00> : vector<2x512xf32>
    %159 = tpu.matmul %156, %158, %cst_68 {dimension_numbers = #tpu.dot_dimension_numbers<[1], [0], [0], [1], [0, 0, 1, 1], [], []>} : vector<2x256xf32>, vector<256x512xf32>, vector<2x512xf32> -> vector<2x512xf32>
    %160 = arith.addf %159, %10 : vector<2x512xf32>
    %161 = vector.extract_strided_slice %160 {offsets = [0, 0], sizes = [2, 256], strides = [1, 1]} : vector<2x512xf32> to vector<2x256xf32>
    %162 = arith.negf %161 : vector<2x256xf32>
    %163 = math.exp %162 : vector<2x256xf32>
    %cst_69 = arith.constant 1.000000e+00 : f32
    %164 = vector.broadcast %cst_69 : f32 to vector<2x256xf32>
    %165 = arith.addf %164, %163 : vector<2x256xf32>
    %166 = arith.divf %164, %165 : vector<2x256xf32>
    %167 = vector.extract_strided_slice %160 {offsets = [0, 256], sizes = [2, 128], strides = [1, 1]} : vector<2x512xf32> to vector<2x128xf32>
    %168 = vector.extract_strided_slice %166 {offsets = [0, 0], sizes = [2, 128], strides = [1, 1]} : vector<2x256xf32> to vector<2x128xf32>
    %169 = vector.extract_strided_slice %160 {offsets = [0, 384], sizes = [2, 128], strides = [1, 1]} : vector<2x512xf32> to vector<2x128xf32>
    %170 = arith.mulf %168, %169 : vector<2x128xf32>
    %171 = arith.addf %167, %170 : vector<2x128xf32>
    %172 = math.tanh %171 : vector<2x128xf32>
    %173 = vector.extract_strided_slice %166 {offsets = [0, 128], sizes = [2, 128], strides = [1, 1]} : vector<2x256xf32> to vector<2x128xf32>
    %174 = arith.subf %155, %172 : vector<2x128xf32>
    %175 = arith.mulf %173, %174 : vector<2x128xf32>
    %176 = arith.addf %172, %175 : vector<2x128xf32>
    %c1_70 = arith.constant 1 : index
    %c0_71 = arith.constant 0 : index
    %c0_72 = arith.constant 0 : index
    %177 = vector.load %arg10[%c1_70, %c0_71, %c0_72] : memref<2x2x128xf32, #tpu.memory_space<vmem>>, vector<1x2x128xf32>
    %178 = vector.shape_cast %177 : vector<1x2x128xf32> to vector<2x128xf32>
    %179 = vector.shape_cast %176 : vector<2x128xf32> to vector<1x2x128xf32>
    tpu.vector_store %arg10[%c1_70, %c0_71, %c0_72], %179 {strides = array<i32>} : memref<2x2x128xf32, #tpu.memory_space<vmem>>, vector<1x2x128xf32>,
    %180 = vector.extract_strided_slice %176 {offsets = [1, 0], sizes = [1, 128], strides = [1, 1]} : vector<2x128xf32> to vector<1x128xf32>
    %181 = vector.extract_strided_slice %18 {offsets = [6, 0], sizes = [2, 384], strides = [1, 1]} : vector<16x384xf32> to vector<2x384xf32>
    %c0_73 = arith.constant 0 : index
    %c0_74 = arith.constant 0 : index
    %c0_75 = arith.constant 0 : index
    %182 = vector.load %arg10[%c0_73, %c0_74, %c0_75] : memref<2x2x128xf32, #tpu.memory_space<vmem>>, vector<1x2x128xf32>
    %183 = vector.shape_cast %182 : vector<1x2x128xf32> to vector<2x128xf32>
    %c0_76 = arith.constant 0 : index
    %c0_77 = arith.constant 0 : index
    %184 = vector.load %arg4[%c0_76, %c0_77] : memref<128x384xf32, #tpu.memory_space<vmem>>, vector<128x384xf32>
    %cst_78 = arith.constant dense<0.000000e+00> : vector<2x384xf32>
    %185 = tpu.matmul %183, %184, %cst_78 {dimension_numbers = #tpu.dot_dimension_numbers<[1], [0], [0], [1], [0, 0, 1, 1], [], []>} : vector<2x128xf32>, vector<128x384xf32>, vector<2x384xf32> -> vector<2x384xf32>
    %186 = arith.addf %185, %6 : vector<2x384xf32>
    %187 = vector.extract_strided_slice %181 {offsets = [0, 0], sizes = [2, 256], strides = [1, 1]} : vector<2x384xf32> to vector<2x256xf32>
    %188 = vector.extract_strided_slice %186 {offsets = [0, 0], sizes = [2, 256], strides = [1, 1]} : vector<2x384xf32> to vector<2x256xf32>
    %189 = arith.addf %187, %188 : vector<2x256xf32>
    %190 = arith.negf %189 : vector<2x256xf32>
    %191 = math.exp %190 : vector<2x256xf32>
    %cst_79 = arith.constant 1.000000e+00 : f32
    %192 = vector.broadcast %cst_79 : f32 to vector<2x256xf32>
    %193 = arith.addf %192, %191 : vector<2x256xf32>
    %194 = arith.divf %192, %193 : vector<2x256xf32>
    %195 = vector.extract_strided_slice %181 {offsets = [0, 256], sizes = [2, 128], strides = [1, 1]} : vector<2x384xf32> to vector<2x128xf32>
    %196 = vector.extract_strided_slice %194 {offsets = [0, 0], sizes = [2, 128], strides = [1, 1]} : vector<2x256xf32> to vector<2x128xf32>
    %197 = vector.extract_strided_slice %186 {offsets = [0, 256], sizes = [2, 128], strides = [1, 1]} : vector<2x384xf32> to vector<2x128xf32>
    %198 = arith.mulf %196, %197 : vector<2x128xf32>
    %199 = arith.addf %195, %198 : vector<2x128xf32>
    %200 = math.tanh %199 : vector<2x128xf32>
    %201 = vector.extract_strided_slice %194 {offsets = [0, 128], sizes = [2, 128], strides = [1, 1]} : vector<2x256xf32> to vector<2x128xf32>
    %202 = arith.subf %183, %200 : vector<2x128xf32>
    %203 = arith.mulf %201, %202 : vector<2x128xf32>
    %204 = arith.addf %200, %203 : vector<2x128xf32>
    %c0_80 = arith.constant 0 : index
    %c0_81 = arith.constant 0 : index
    %c0_82 = arith.constant 0 : index
    %205 = vector.load %arg10[%c0_80, %c0_81, %c0_82] : memref<2x2x128xf32, #tpu.memory_space<vmem>>, vector<1x2x128xf32>
    %206 = vector.shape_cast %205 : vector<1x2x128xf32> to vector<2x128xf32>
    %207 = vector.shape_cast %204 : vector<2x128xf32> to vector<1x2x128xf32>
    tpu.vector_store %arg10[%c0_80, %c0_81, %c0_82], %207 {strides = array<i32>} : memref<2x2x128xf32, #tpu.memory_space<vmem>>, vector<1x2x128xf32>,
    %c1_83 = arith.constant 1 : index
    %c0_84 = arith.constant 0 : index
    %c0_85 = arith.constant 0 : index
    %208 = vector.load %arg10[%c1_83, %c0_84, %c0_85] : memref<2x2x128xf32, #tpu.memory_space<vmem>>, vector<1x2x128xf32>
    %209 = vector.shape_cast %208 : vector<1x2x128xf32> to vector<2x128xf32>
    %210 = tpu.concatenate %204, %209 in 1 : vector<2x128xf32>, vector<2x128xf32> -> vector<2x256xf32>
    %c0_86 = arith.constant 0 : index
    %c0_87 = arith.constant 0 : index
    %c0_88 = arith.constant 0 : index
    %211 = vector.load %arg6[%c0_86, %c0_87, %c0_88] : memref<1x256x512xf32, #tpu.memory_space<vmem>>, vector<1x256x512xf32>
    %212 = vector.shape_cast %211 : vector<1x256x512xf32> to vector<256x512xf32>
    %cst_89 = arith.constant dense<0.000000e+00> : vector<2x512xf32>
    %213 = tpu.matmul %210, %212, %cst_89 {dimension_numbers = #tpu.dot_dimension_numbers<[1], [0], [0], [1], [0, 0, 1, 1], [], []>} : vector<2x256xf32>, vector<256x512xf32>, vector<2x512xf32> -> vector<2x512xf32>
    %214 = arith.addf %213, %10 : vector<2x512xf32>
    %215 = vector.extract_strided_slice %214 {offsets = [0, 0], sizes = [2, 256], strides = [1, 1]} : vector<2x512xf32> to vector<2x256xf32>
    %216 = arith.negf %215 : vector<2x256xf32>
    %217 = math.exp %216 : vector<2x256xf32>
    %cst_90 = arith.constant 1.000000e+00 : f32
    %218 = vector.broadcast %cst_90 : f32 to vector<2x256xf32>
    %219 = arith.addf %218, %217 : vector<2x256xf32>
    %220 = arith.divf %218, %219 : vector<2x256xf32>
    %221 = vector.extract_strided_slice %214 {offsets = [0, 256], sizes = [2, 128], strides = [1, 1]} : vector<2x512xf32> to vector<2x128xf32>
    %222 = vector.extract_strided_slice %220 {offsets = [0, 0], sizes = [2, 128], strides = [1, 1]} : vector<2x256xf32> to vector<2x128xf32>
    %223 = vector.extract_strided_slice %214 {offsets = [0, 384], sizes = [2, 128], strides = [1, 1]} : vector<2x512xf32> to vector<2x128xf32>
    %224 = arith.mulf %222, %223 : vector<2x128xf32>
    %225 = arith.addf %221, %224 : vector<2x128xf32>
    %226 = math.tanh %225 : vector<2x128xf32>
    %227 = vector.extract_strided_slice %220 {offsets = [0, 128], sizes = [2, 128], strides = [1, 1]} : vector<2x256xf32> to vector<2x128xf32>
    %228 = arith.subf %209, %226 : vector<2x128xf32>
    %229 = arith.mulf %227, %228 : vector<2x128xf32>
    %230 = arith.addf %226, %229 : vector<2x128xf32>
    %c1_91 = arith.constant 1 : index
    %c0_92 = arith.constant 0 : index
    %c0_93 = arith.constant 0 : index
    %231 = vector.load %arg10[%c1_91, %c0_92, %c0_93] : memref<2x2x128xf32, #tpu.memory_space<vmem>>, vector<1x2x128xf32>
    %232 = vector.shape_cast %231 : vector<1x2x128xf32> to vector<2x128xf32>
    %233 = vector.shape_cast %230 : vector<2x128xf32> to vector<1x2x128xf32>
    tpu.vector_store %arg10[%c1_91, %c0_92, %c0_93], %233 {strides = array<i32>} : memref<2x2x128xf32, #tpu.memory_space<vmem>>, vector<1x2x128xf32>,
    %234 = vector.extract_strided_slice %230 {offsets = [1, 0], sizes = [1, 128], strides = [1, 1]} : vector<2x128xf32> to vector<1x128xf32>
    %235 = vector.extract_strided_slice %18 {offsets = [8, 0], sizes = [2, 384], strides = [1, 1]} : vector<16x384xf32> to vector<2x384xf32>
    %c0_94 = arith.constant 0 : index
    %c0_95 = arith.constant 0 : index
    %c0_96 = arith.constant 0 : index
    %236 = vector.load %arg10[%c0_94, %c0_95, %c0_96] : memref<2x2x128xf32, #tpu.memory_space<vmem>>, vector<1x2x128xf32>
    %237 = vector.shape_cast %236 : vector<1x2x128xf32> to vector<2x128xf32>
    %c0_97 = arith.constant 0 : index
    %c0_98 = arith.constant 0 : index
    %238 = vector.load %arg4[%c0_97, %c0_98] : memref<128x384xf32, #tpu.memory_space<vmem>>, vector<128x384xf32>
    %cst_99 = arith.constant dense<0.000000e+00> : vector<2x384xf32>
    %239 = tpu.matmul %237, %238, %cst_99 {dimension_numbers = #tpu.dot_dimension_numbers<[1], [0], [0], [1], [0, 0, 1, 1], [], []>} : vector<2x128xf32>, vector<128x384xf32>, vector<2x384xf32> -> vector<2x384xf32>
    %240 = arith.addf %239, %6 : vector<2x384xf32>
    %241 = vector.extract_strided_slice %235 {offsets = [0, 0], sizes = [2, 256], strides = [1, 1]} : vector<2x384xf32> to vector<2x256xf32>
    %242 = vector.extract_strided_slice %240 {offsets = [0, 0], sizes = [2, 256], strides = [1, 1]} : vector<2x384xf32> to vector<2x256xf32>
    %243 = arith.addf %241, %242 : vector<2x256xf32>
    %244 = arith.negf %243 : vector<2x256xf32>
    %245 = math.exp %244 : vector<2x256xf32>
    %cst_100 = arith.constant 1.000000e+00 : f32
    %246 = vector.broadcast %cst_100 : f32 to vector<2x256xf32>
    %247 = arith.addf %246, %245 : vector<2x256xf32>
    %248 = arith.divf %246, %247 : vector<2x256xf32>
    %249 = vector.extract_strided_slice %235 {offsets = [0, 256], sizes = [2, 128], strides = [1, 1]} : vector<2x384xf32> to vector<2x128xf32>
    %250 = vector.extract_strided_slice %248 {offsets = [0, 0], sizes = [2, 128], strides = [1, 1]} : vector<2x256xf32> to vector<2x128xf32>
    %251 = vector.extract_strided_slice %240 {offsets = [0, 256], sizes = [2, 128], strides = [1, 1]} : vector<2x384xf32> to vector<2x128xf32>
    %252 = arith.mulf %250, %251 : vector<2x128xf32>
    %253 = arith.addf %249, %252 : vector<2x128xf32>
    %254 = math.tanh %253 : vector<2x128xf32>
    %255 = vector.extract_strided_slice %248 {offsets = [0, 128], sizes = [2, 128], strides = [1, 1]} : vector<2x256xf32> to vector<2x128xf32>
    %256 = arith.subf %237, %254 : vector<2x128xf32>
    %257 = arith.mulf %255, %256 : vector<2x128xf32>
    %258 = arith.addf %254, %257 : vector<2x128xf32>
    %c0_101 = arith.constant 0 : index
    %c0_102 = arith.constant 0 : index
    %c0_103 = arith.constant 0 : index
    %259 = vector.load %arg10[%c0_101, %c0_102, %c0_103] : memref<2x2x128xf32, #tpu.memory_space<vmem>>, vector<1x2x128xf32>
    %260 = vector.shape_cast %259 : vector<1x2x128xf32> to vector<2x128xf32>
    %261 = vector.shape_cast %258 : vector<2x128xf32> to vector<1x2x128xf32>
    tpu.vector_store %arg10[%c0_101, %c0_102, %c0_103], %261 {strides = array<i32>} : memref<2x2x128xf32, #tpu.memory_space<vmem>>, vector<1x2x128xf32>,
    %c1_104 = arith.constant 1 : index
    %c0_105 = arith.constant 0 : index
    %c0_106 = arith.constant 0 : index
    %262 = vector.load %arg10[%c1_104, %c0_105, %c0_106] : memref<2x2x128xf32, #tpu.memory_space<vmem>>, vector<1x2x128xf32>
    %263 = vector.shape_cast %262 : vector<1x2x128xf32> to vector<2x128xf32>
    %264 = tpu.concatenate %258, %263 in 1 : vector<2x128xf32>, vector<2x128xf32> -> vector<2x256xf32>
    %c0_107 = arith.constant 0 : index
    %c0_108 = arith.constant 0 : index
    %c0_109 = arith.constant 0 : index
    %265 = vector.load %arg6[%c0_107, %c0_108, %c0_109] : memref<1x256x512xf32, #tpu.memory_space<vmem>>, vector<1x256x512xf32>
    %266 = vector.shape_cast %265 : vector<1x256x512xf32> to vector<256x512xf32>
    %cst_110 = arith.constant dense<0.000000e+00> : vector<2x512xf32>
    %267 = tpu.matmul %264, %266, %cst_110 {dimension_numbers = #tpu.dot_dimension_numbers<[1], [0], [0], [1], [0, 0, 1, 1], [], []>} : vector<2x256xf32>, vector<256x512xf32>, vector<2x512xf32> -> vector<2x512xf32>
    %268 = arith.addf %267, %10 : vector<2x512xf32>
    %269 = vector.extract_strided_slice %268 {offsets = [0, 0], sizes = [2, 256], strides = [1, 1]} : vector<2x512xf32> to vector<2x256xf32>
    %270 = arith.negf %269 : vector<2x256xf32>
    %271 = math.exp %270 : vector<2x256xf32>
    %cst_111 = arith.constant 1.000000e+00 : f32
    %272 = vector.broadcast %cst_111 : f32 to vector<2x256xf32>
    %273 = arith.addf %272, %271 : vector<2x256xf32>
    %274 = arith.divf %272, %273 : vector<2x256xf32>
    %275 = vector.extract_strided_slice %268 {offsets = [0, 256], sizes = [2, 128], strides = [1, 1]} : vector<2x512xf32> to vector<2x128xf32>
    %276 = vector.extract_strided_slice %274 {offsets = [0, 0], sizes = [2, 128], strides = [1, 1]} : vector<2x256xf32> to vector<2x128xf32>
    %277 = vector.extract_strided_slice %268 {offsets = [0, 384], sizes = [2, 128], strides = [1, 1]} : vector<2x512xf32> to vector<2x128xf32>
    %278 = arith.mulf %276, %277 : vector<2x128xf32>
    %279 = arith.addf %275, %278 : vector<2x128xf32>
    %280 = math.tanh %279 : vector<2x128xf32>
    %281 = vector.extract_strided_slice %274 {offsets = [0, 128], sizes = [2, 128], strides = [1, 1]} : vector<2x256xf32> to vector<2x128xf32>
    %282 = arith.subf %263, %280 : vector<2x128xf32>
    %283 = arith.mulf %281, %282 : vector<2x128xf32>
    %284 = arith.addf %280, %283 : vector<2x128xf32>
    %c1_112 = arith.constant 1 : index
    %c0_113 = arith.constant 0 : index
    %c0_114 = arith.constant 0 : index
    %285 = vector.load %arg10[%c1_112, %c0_113, %c0_114] : memref<2x2x128xf32, #tpu.memory_space<vmem>>, vector<1x2x128xf32>
    %286 = vector.shape_cast %285 : vector<1x2x128xf32> to vector<2x128xf32>
    %287 = vector.shape_cast %284 : vector<2x128xf32> to vector<1x2x128xf32>
    tpu.vector_store %arg10[%c1_112, %c0_113, %c0_114], %287 {strides = array<i32>} : memref<2x2x128xf32, #tpu.memory_space<vmem>>, vector<1x2x128xf32>,
    %288 = vector.extract_strided_slice %284 {offsets = [1, 0], sizes = [1, 128], strides = [1, 1]} : vector<2x128xf32> to vector<1x128xf32>
    %289 = vector.extract_strided_slice %18 {offsets = [10, 0], sizes = [2, 384], strides = [1, 1]} : vector<16x384xf32> to vector<2x384xf32>
    %c0_115 = arith.constant 0 : index
    %c0_116 = arith.constant 0 : index
    %c0_117 = arith.constant 0 : index
    %290 = vector.load %arg10[%c0_115, %c0_116, %c0_117] : memref<2x2x128xf32, #tpu.memory_space<vmem>>, vector<1x2x128xf32>
    %291 = vector.shape_cast %290 : vector<1x2x128xf32> to vector<2x128xf32>
    %c0_118 = arith.constant 0 : index
    %c0_119 = arith.constant 0 : index
    %292 = vector.load %arg4[%c0_118, %c0_119] : memref<128x384xf32, #tpu.memory_space<vmem>>, vector<128x384xf32>
    %cst_120 = arith.constant dense<0.000000e+00> : vector<2x384xf32>
    %293 = tpu.matmul %291, %292, %cst_120 {dimension_numbers = #tpu.dot_dimension_numbers<[1], [0], [0], [1], [0, 0, 1, 1], [], []>} : vector<2x128xf32>, vector<128x384xf32>, vector<2x384xf32> -> vector<2x384xf32>
    %294 = arith.addf %293, %6 : vector<2x384xf32>
    %295 = vector.extract_strided_slice %289 {offsets = [0, 0], sizes = [2, 256], strides = [1, 1]} : vector<2x384xf32> to vector<2x256xf32>
    %296 = vector.extract_strided_slice %294 {offsets = [0, 0], sizes = [2, 256], strides = [1, 1]} : vector<2x384xf32> to vector<2x256xf32>
    %297 = arith.addf %295, %296 : vector<2x256xf32>
    %298 = arith.negf %297 : vector<2x256xf32>
    %299 = math.exp %298 : vector<2x256xf32>
    %cst_121 = arith.constant 1.000000e+00 : f32
    %300 = vector.broadcast %cst_121 : f32 to vector<2x256xf32>
    %301 = arith.addf %300, %299 : vector<2x256xf32>
    %302 = arith.divf %300, %301 : vector<2x256xf32>
    %303 = vector.extract_strided_slice %289 {offsets = [0, 256], sizes = [2, 128], strides = [1, 1]} : vector<2x384xf32> to vector<2x128xf32>
    %304 = vector.extract_strided_slice %302 {offsets = [0, 0], sizes = [2, 128], strides = [1, 1]} : vector<2x256xf32> to vector<2x128xf32>
    %305 = vector.extract_strided_slice %294 {offsets = [0, 256], sizes = [2, 128], strides = [1, 1]} : vector<2x384xf32> to vector<2x128xf32>
    %306 = arith.mulf %304, %305 : vector<2x128xf32>
    %307 = arith.addf %303, %306 : vector<2x128xf32>
    %308 = math.tanh %307 : vector<2x128xf32>
    %309 = vector.extract_strided_slice %302 {offsets = [0, 128], sizes = [2, 128], strides = [1, 1]} : vector<2x256xf32> to vector<2x128xf32>
    %310 = arith.subf %291, %308 : vector<2x128xf32>
    %311 = arith.mulf %309, %310 : vector<2x128xf32>
    %312 = arith.addf %308, %311 : vector<2x128xf32>
    %c0_122 = arith.constant 0 : index
    %c0_123 = arith.constant 0 : index
    %c0_124 = arith.constant 0 : index
    %313 = vector.load %arg10[%c0_122, %c0_123, %c0_124] : memref<2x2x128xf32, #tpu.memory_space<vmem>>, vector<1x2x128xf32>
    %314 = vector.shape_cast %313 : vector<1x2x128xf32> to vector<2x128xf32>
    %315 = vector.shape_cast %312 : vector<2x128xf32> to vector<1x2x128xf32>
    tpu.vector_store %arg10[%c0_122, %c0_123, %c0_124], %315 {strides = array<i32>} : memref<2x2x128xf32, #tpu.memory_space<vmem>>, vector<1x2x128xf32>,
    %c1_125 = arith.constant 1 : index
    %c0_126 = arith.constant 0 : index
    %c0_127 = arith.constant 0 : index
    %316 = vector.load %arg10[%c1_125, %c0_126, %c0_127] : memref<2x2x128xf32, #tpu.memory_space<vmem>>, vector<1x2x128xf32>
    %317 = vector.shape_cast %316 : vector<1x2x128xf32> to vector<2x128xf32>
    %318 = tpu.concatenate %312, %317 in 1 : vector<2x128xf32>, vector<2x128xf32> -> vector<2x256xf32>
    %c0_128 = arith.constant 0 : index
    %c0_129 = arith.constant 0 : index
    %c0_130 = arith.constant 0 : index
    %319 = vector.load %arg6[%c0_128, %c0_129, %c0_130] : memref<1x256x512xf32, #tpu.memory_space<vmem>>, vector<1x256x512xf32>
    %320 = vector.shape_cast %319 : vector<1x256x512xf32> to vector<256x512xf32>
    %cst_131 = arith.constant dense<0.000000e+00> : vector<2x512xf32>
    %321 = tpu.matmul %318, %320, %cst_131 {dimension_numbers = #tpu.dot_dimension_numbers<[1], [0], [0], [1], [0, 0, 1, 1], [], []>} : vector<2x256xf32>, vector<256x512xf32>, vector<2x512xf32> -> vector<2x512xf32>
    %322 = arith.addf %321, %10 : vector<2x512xf32>
    %323 = vector.extract_strided_slice %322 {offsets = [0, 0], sizes = [2, 256], strides = [1, 1]} : vector<2x512xf32> to vector<2x256xf32>
    %324 = arith.negf %323 : vector<2x256xf32>
    %325 = math.exp %324 : vector<2x256xf32>
    %cst_132 = arith.constant 1.000000e+00 : f32
    %326 = vector.broadcast %cst_132 : f32 to vector<2x256xf32>
    %327 = arith.addf %326, %325 : vector<2x256xf32>
    %328 = arith.divf %326, %327 : vector<2x256xf32>
    %329 = vector.extract_strided_slice %322 {offsets = [0, 256], sizes = [2, 128], strides = [1, 1]} : vector<2x512xf32> to vector<2x128xf32>
    %330 = vector.extract_strided_slice %328 {offsets = [0, 0], sizes = [2, 128], strides = [1, 1]} : vector<2x256xf32> to vector<2x128xf32>
    %331 = vector.extract_strided_slice %322 {offsets = [0, 384], sizes = [2, 128], strides = [1, 1]} : vector<2x512xf32> to vector<2x128xf32>
    %332 = arith.mulf %330, %331 : vector<2x128xf32>
    %333 = arith.addf %329, %332 : vector<2x128xf32>
    %334 = math.tanh %333 : vector<2x128xf32>
    %335 = vector.extract_strided_slice %328 {offsets = [0, 128], sizes = [2, 128], strides = [1, 1]} : vector<2x256xf32> to vector<2x128xf32>
    %336 = arith.subf %317, %334 : vector<2x128xf32>
    %337 = arith.mulf %335, %336 : vector<2x128xf32>
    %338 = arith.addf %334, %337 : vector<2x128xf32>
    %c1_133 = arith.constant 1 : index
    %c0_134 = arith.constant 0 : index
    %c0_135 = arith.constant 0 : index
    %339 = vector.load %arg10[%c1_133, %c0_134, %c0_135] : memref<2x2x128xf32, #tpu.memory_space<vmem>>, vector<1x2x128xf32>
    %340 = vector.shape_cast %339 : vector<1x2x128xf32> to vector<2x128xf32>
    %341 = vector.shape_cast %338 : vector<2x128xf32> to vector<1x2x128xf32>
    tpu.vector_store %arg10[%c1_133, %c0_134, %c0_135], %341 {strides = array<i32>} : memref<2x2x128xf32, #tpu.memory_space<vmem>>, vector<1x2x128xf32>,
    %342 = vector.extract_strided_slice %338 {offsets = [1, 0], sizes = [1, 128], strides = [1, 1]} : vector<2x128xf32> to vector<1x128xf32>
    %343 = vector.extract_strided_slice %18 {offsets = [12, 0], sizes = [2, 384], strides = [1, 1]} : vector<16x384xf32> to vector<2x384xf32>
    %c0_136 = arith.constant 0 : index
    %c0_137 = arith.constant 0 : index
    %c0_138 = arith.constant 0 : index
    %344 = vector.load %arg10[%c0_136, %c0_137, %c0_138] : memref<2x2x128xf32, #tpu.memory_space<vmem>>, vector<1x2x128xf32>
    %345 = vector.shape_cast %344 : vector<1x2x128xf32> to vector<2x128xf32>
    %c0_139 = arith.constant 0 : index
    %c0_140 = arith.constant 0 : index
    %346 = vector.load %arg4[%c0_139, %c0_140] : memref<128x384xf32, #tpu.memory_space<vmem>>, vector<128x384xf32>
    %cst_141 = arith.constant dense<0.000000e+00> : vector<2x384xf32>
    %347 = tpu.matmul %345, %346, %cst_141 {dimension_numbers = #tpu.dot_dimension_numbers<[1], [0], [0], [1], [0, 0, 1, 1], [], []>} : vector<2x128xf32>, vector<128x384xf32>, vector<2x384xf32> -> vector<2x384xf32>
    %348 = arith.addf %347, %6 : vector<2x384xf32>
    %349 = vector.extract_strided_slice %343 {offsets = [0, 0], sizes = [2, 256], strides = [1, 1]} : vector<2x384xf32> to vector<2x256xf32>
    %350 = vector.extract_strided_slice %348 {offsets = [0, 0], sizes = [2, 256], strides = [1, 1]} : vector<2x384xf32> to vector<2x256xf32>
    %351 = arith.addf %349, %350 : vector<2x256xf32>
    %352 = arith.negf %351 : vector<2x256xf32>
    %353 = math.exp %352 : vector<2x256xf32>
    %cst_142 = arith.constant 1.000000e+00 : f32
    %354 = vector.broadcast %cst_142 : f32 to vector<2x256xf32>
    %355 = arith.addf %354, %353 : vector<2x256xf32>
    %356 = arith.divf %354, %355 : vector<2x256xf32>
    %357 = vector.extract_strided_slice %343 {offsets = [0, 256], sizes = [2, 128], strides = [1, 1]} : vector<2x384xf32> to vector<2x128xf32>
    %358 = vector.extract_strided_slice %356 {offsets = [0, 0], sizes = [2, 128], strides = [1, 1]} : vector<2x256xf32> to vector<2x128xf32>
    %359 = vector.extract_strided_slice %348 {offsets = [0, 256], sizes = [2, 128], strides = [1, 1]} : vector<2x384xf32> to vector<2x128xf32>
    %360 = arith.mulf %358, %359 : vector<2x128xf32>
    %361 = arith.addf %357, %360 : vector<2x128xf32>
    %362 = math.tanh %361 : vector<2x128xf32>
    %363 = vector.extract_strided_slice %356 {offsets = [0, 128], sizes = [2, 128], strides = [1, 1]} : vector<2x256xf32> to vector<2x128xf32>
    %364 = arith.subf %345, %362 : vector<2x128xf32>
    %365 = arith.mulf %363, %364 : vector<2x128xf32>
    %366 = arith.addf %362, %365 : vector<2x128xf32>
    %c0_143 = arith.constant 0 : index
    %c0_144 = arith.constant 0 : index
    %c0_145 = arith.constant 0 : index
    %367 = vector.load %arg10[%c0_143, %c0_144, %c0_145] : memref<2x2x128xf32, #tpu.memory_space<vmem>>, vector<1x2x128xf32>
    %368 = vector.shape_cast %367 : vector<1x2x128xf32> to vector<2x128xf32>
    %369 = vector.shape_cast %366 : vector<2x128xf32> to vector<1x2x128xf32>
    tpu.vector_store %arg10[%c0_143, %c0_144, %c0_145], %369 {strides = array<i32>} : memref<2x2x128xf32, #tpu.memory_space<vmem>>, vector<1x2x128xf32>,
    %c1_146 = arith.constant 1 : index
    %c0_147 = arith.constant 0 : index
    %c0_148 = arith.constant 0 : index
    %370 = vector.load %arg10[%c1_146, %c0_147, %c0_148] : memref<2x2x128xf32, #tpu.memory_space<vmem>>, vector<1x2x128xf32>
    %371 = vector.shape_cast %370 : vector<1x2x128xf32> to vector<2x128xf32>
    %372 = tpu.concatenate %366, %371 in 1 : vector<2x128xf32>, vector<2x128xf32> -> vector<2x256xf32>
    %c0_149 = arith.constant 0 : index
    %c0_150 = arith.constant 0 : index
    %c0_151 = arith.constant 0 : index
    %373 = vector.load %arg6[%c0_149, %c0_150, %c0_151] : memref<1x256x512xf32, #tpu.memory_space<vmem>>, vector<1x256x512xf32>
    %374 = vector.shape_cast %373 : vector<1x256x512xf32> to vector<256x512xf32>
    %cst_152 = arith.constant dense<0.000000e+00> : vector<2x512xf32>
    %375 = tpu.matmul %372, %374, %cst_152 {dimension_numbers = #tpu.dot_dimension_numbers<[1], [0], [0], [1], [0, 0, 1, 1], [], []>} : vector<2x256xf32>, vector<256x512xf32>, vector<2x512xf32> -> vector<2x512xf32>
    %376 = arith.addf %375, %10 : vector<2x512xf32>
    %377 = vector.extract_strided_slice %376 {offsets = [0, 0], sizes = [2, 256], strides = [1, 1]} : vector<2x512xf32> to vector<2x256xf32>
    %378 = arith.negf %377 : vector<2x256xf32>
    %379 = math.exp %378 : vector<2x256xf32>
    %cst_153 = arith.constant 1.000000e+00 : f32
    %380 = vector.broadcast %cst_153 : f32 to vector<2x256xf32>
    %381 = arith.addf %380, %379 : vector<2x256xf32>
    %382 = arith.divf %380, %381 : vector<2x256xf32>
    %383 = vector.extract_strided_slice %376 {offsets = [0, 256], sizes = [2, 128], strides = [1, 1]} : vector<2x512xf32> to vector<2x128xf32>
    %384 = vector.extract_strided_slice %382 {offsets = [0, 0], sizes = [2, 128], strides = [1, 1]} : vector<2x256xf32> to vector<2x128xf32>
    %385 = vector.extract_strided_slice %376 {offsets = [0, 384], sizes = [2, 128], strides = [1, 1]} : vector<2x512xf32> to vector<2x128xf32>
    %386 = arith.mulf %384, %385 : vector<2x128xf32>
    %387 = arith.addf %383, %386 : vector<2x128xf32>
    %388 = math.tanh %387 : vector<2x128xf32>
    %389 = vector.extract_strided_slice %382 {offsets = [0, 128], sizes = [2, 128], strides = [1, 1]} : vector<2x256xf32> to vector<2x128xf32>
    %390 = arith.subf %371, %388 : vector<2x128xf32>
    %391 = arith.mulf %389, %390 : vector<2x128xf32>
    %392 = arith.addf %388, %391 : vector<2x128xf32>
    %c1_154 = arith.constant 1 : index
    %c0_155 = arith.constant 0 : index
    %c0_156 = arith.constant 0 : index
    %393 = vector.load %arg10[%c1_154, %c0_155, %c0_156] : memref<2x2x128xf32, #tpu.memory_space<vmem>>, vector<1x2x128xf32>
    %394 = vector.shape_cast %393 : vector<1x2x128xf32> to vector<2x128xf32>
    %395 = vector.shape_cast %392 : vector<2x128xf32> to vector<1x2x128xf32>
    tpu.vector_store %arg10[%c1_154, %c0_155, %c0_156], %395 {strides = array<i32>} : memref<2x2x128xf32, #tpu.memory_space<vmem>>, vector<1x2x128xf32>,
    %396 = vector.extract_strided_slice %392 {offsets = [1, 0], sizes = [1, 128], strides = [1, 1]} : vector<2x128xf32> to vector<1x128xf32>
    %397 = vector.extract_strided_slice %18 {offsets = [14, 0], sizes = [2, 384], strides = [1, 1]} : vector<16x384xf32> to vector<2x384xf32>
    %c0_157 = arith.constant 0 : index
    %c0_158 = arith.constant 0 : index
    %c0_159 = arith.constant 0 : index
    %398 = vector.load %arg10[%c0_157, %c0_158, %c0_159] : memref<2x2x128xf32, #tpu.memory_space<vmem>>, vector<1x2x128xf32>
    %399 = vector.shape_cast %398 : vector<1x2x128xf32> to vector<2x128xf32>
    %c0_160 = arith.constant 0 : index
    %c0_161 = arith.constant 0 : index
    %400 = vector.load %arg4[%c0_160, %c0_161] : memref<128x384xf32, #tpu.memory_space<vmem>>, vector<128x384xf32>
    %cst_162 = arith.constant dense<0.000000e+00> : vector<2x384xf32>
    %401 = tpu.matmul %399, %400, %cst_162 {dimension_numbers = #tpu.dot_dimension_numbers<[1], [0], [0], [1], [0, 0, 1, 1], [], []>} : vector<2x128xf32>, vector<128x384xf32>, vector<2x384xf32> -> vector<2x384xf32>
    %402 = arith.addf %401, %6 : vector<2x384xf32>
    %403 = vector.extract_strided_slice %397 {offsets = [0, 0], sizes = [2, 256], strides = [1, 1]} : vector<2x384xf32> to vector<2x256xf32>
    %404 = vector.extract_strided_slice %402 {offsets = [0, 0], sizes = [2, 256], strides = [1, 1]} : vector<2x384xf32> to vector<2x256xf32>
    %405 = arith.addf %403, %404 : vector<2x256xf32>
    %406 = arith.negf %405 : vector<2x256xf32>
    %407 = math.exp %406 : vector<2x256xf32>
    %cst_163 = arith.constant 1.000000e+00 : f32
    %408 = vector.broadcast %cst_163 : f32 to vector<2x256xf32>
    %409 = arith.addf %408, %407 : vector<2x256xf32>
    %410 = arith.divf %408, %409 : vector<2x256xf32>
    %411 = vector.extract_strided_slice %397 {offsets = [0, 256], sizes = [2, 128], strides = [1, 1]} : vector<2x384xf32> to vector<2x128xf32>
    %412 = vector.extract_strided_slice %410 {offsets = [0, 0], sizes = [2, 128], strides = [1, 1]} : vector<2x256xf32> to vector<2x128xf32>
    %413 = vector.extract_strided_slice %402 {offsets = [0, 256], sizes = [2, 128], strides = [1, 1]} : vector<2x384xf32> to vector<2x128xf32>
    %414 = arith.mulf %412, %413 : vector<2x128xf32>
    %415 = arith.addf %411, %414 : vector<2x128xf32>
    %416 = math.tanh %415 : vector<2x128xf32>
    %417 = vector.extract_strided_slice %410 {offsets = [0, 128], sizes = [2, 128], strides = [1, 1]} : vector<2x256xf32> to vector<2x128xf32>
    %418 = arith.subf %399, %416 : vector<2x128xf32>
    %419 = arith.mulf %417, %418 : vector<2x128xf32>
    %420 = arith.addf %416, %419 : vector<2x128xf32>
    %c0_164 = arith.constant 0 : index
    %c0_165 = arith.constant 0 : index
    %c0_166 = arith.constant 0 : index
    %421 = vector.load %arg10[%c0_164, %c0_165, %c0_166] : memref<2x2x128xf32, #tpu.memory_space<vmem>>, vector<1x2x128xf32>
    %422 = vector.shape_cast %421 : vector<1x2x128xf32> to vector<2x128xf32>
    %423 = vector.shape_cast %420 : vector<2x128xf32> to vector<1x2x128xf32>
    tpu.vector_store %arg10[%c0_164, %c0_165, %c0_166], %423 {strides = array<i32>} : memref<2x2x128xf32, #tpu.memory_space<vmem>>, vector<1x2x128xf32>,
    %c1_167 = arith.constant 1 : index
    %c0_168 = arith.constant 0 : index
    %c0_169 = arith.constant 0 : index
    %424 = vector.load %arg10[%c1_167, %c0_168, %c0_169] : memref<2x2x128xf32, #tpu.memory_space<vmem>>, vector<1x2x128xf32>
    %425 = vector.shape_cast %424 : vector<1x2x128xf32> to vector<2x128xf32>
    %426 = tpu.concatenate %420, %425 in 1 : vector<2x128xf32>, vector<2x128xf32> -> vector<2x256xf32>
    %c0_170 = arith.constant 0 : index
    %c0_171 = arith.constant 0 : index
    %c0_172 = arith.constant 0 : index
    %427 = vector.load %arg6[%c0_170, %c0_171, %c0_172] : memref<1x256x512xf32, #tpu.memory_space<vmem>>, vector<1x256x512xf32>
    %428 = vector.shape_cast %427 : vector<1x256x512xf32> to vector<256x512xf32>
    %cst_173 = arith.constant dense<0.000000e+00> : vector<2x512xf32>
    %429 = tpu.matmul %426, %428, %cst_173 {dimension_numbers = #tpu.dot_dimension_numbers<[1], [0], [0], [1], [0, 0, 1, 1], [], []>} : vector<2x256xf32>, vector<256x512xf32>, vector<2x512xf32> -> vector<2x512xf32>
    %430 = arith.addf %429, %10 : vector<2x512xf32>
    %431 = vector.extract_strided_slice %430 {offsets = [0, 0], sizes = [2, 256], strides = [1, 1]} : vector<2x512xf32> to vector<2x256xf32>
    %432 = arith.negf %431 : vector<2x256xf32>
    %433 = math.exp %432 : vector<2x256xf32>
    %cst_174 = arith.constant 1.000000e+00 : f32
    %434 = vector.broadcast %cst_174 : f32 to vector<2x256xf32>
    %435 = arith.addf %434, %433 : vector<2x256xf32>
    %436 = arith.divf %434, %435 : vector<2x256xf32>
    %437 = vector.extract_strided_slice %430 {offsets = [0, 256], sizes = [2, 128], strides = [1, 1]} : vector<2x512xf32> to vector<2x128xf32>
    %438 = vector.extract_strided_slice %436 {offsets = [0, 0], sizes = [2, 128], strides = [1, 1]} : vector<2x256xf32> to vector<2x128xf32>
    %439 = vector.extract_strided_slice %430 {offsets = [0, 384], sizes = [2, 128], strides = [1, 1]} : vector<2x512xf32> to vector<2x128xf32>
    %440 = arith.mulf %438, %439 : vector<2x128xf32>
    %441 = arith.addf %437, %440 : vector<2x128xf32>
    %442 = math.tanh %441 : vector<2x128xf32>
    %443 = vector.extract_strided_slice %436 {offsets = [0, 128], sizes = [2, 128], strides = [1, 1]} : vector<2x256xf32> to vector<2x128xf32>
    %444 = arith.subf %425, %442 : vector<2x128xf32>
    %445 = arith.mulf %443, %444 : vector<2x128xf32>
    %446 = arith.addf %442, %445 : vector<2x128xf32>
    %c1_175 = arith.constant 1 : index
    %c0_176 = arith.constant 0 : index
    %c0_177 = arith.constant 0 : index
    %447 = vector.load %arg10[%c1_175, %c0_176, %c0_177] : memref<2x2x128xf32, #tpu.memory_space<vmem>>, vector<1x2x128xf32>
    %448 = vector.shape_cast %447 : vector<1x2x128xf32> to vector<2x128xf32>
    %449 = vector.shape_cast %446 : vector<2x128xf32> to vector<1x2x128xf32>
    tpu.vector_store %arg10[%c1_175, %c0_176, %c0_177], %449 {strides = array<i32>} : memref<2x2x128xf32, #tpu.memory_space<vmem>>, vector<1x2x128xf32>,
    %450 = vector.extract_strided_slice %446 {offsets = [1, 0], sizes = [1, 128], strides = [1, 1]} : vector<2x128xf32> to vector<1x128xf32>
    %451 = tpu.concatenate %72, %126, %180, %234, %288, %342, %396, %450 in 0 : vector<1x128xf32>, vector<1x128xf32>, vector<1x128xf32>, vector<1x128xf32>, vector<1x128xf32>, vector<1x128xf32>, vector<1x128xf32>, vector<1x128xf32> -> vector<8x128xf32>
    %c8_i32 = arith.constant 8 : i32
    %452 = arith.muli %c0_i32_7, %c8_i32 : i32
    %453 = tpu.assume_multiple %452, 8 : i32
    %454 = arith.index_cast %453 : i32 to index
    %c0_178 = arith.constant 0 : index
    %455 = vector.load %arg8[%454, %c0_178] : memref<8x128xf32, #tpu.memory_space<vmem>>, vector<8x128xf32>
    tpu.vector_store %arg8[%454, %c0_178], %451 {strides = array<i32>} : memref<8x128xf32, #tpu.memory_space<vmem>>, vector<8x128xf32>,
    %c1_i32 = arith.constant 1 : i32
    %c0_i32_179 = arith.constant 0 : i32
    %456 = arith.cmpi eq, %arg0, %c0_i32_179 : i32
    %457 = arith.extui %456 : i1 to i32
    %c0_i32_180 = arith.constant 0 : i32
    %458 = arith.cmpi ne, %457, %c0_i32_180 : i32
    scf.if %458 {
      %c1_181 = arith.constant 1 : index
      %c0_182 = arith.constant 0 : index
      %c0_183 = arith.constant 0 : index
      %459 = vector.load %arg10[%c1_181, %c0_182, %c0_183] : memref<2x2x128xf32, #tpu.memory_space<vmem>>, vector<1x2x128xf32>
      %460 = vector.shape_cast %459 : vector<1x2x128xf32> to vector<2x128xf32>
      %c0_184 = arith.constant 0 : index
      %c0_185 = arith.constant 0 : index
      %461 = vector.load %arg9[%c0_184, %c0_185] : memref<2x128xf32, #tpu.memory_space<vmem>>, vector<2x128xf32>
      tpu.vector_store %arg9[%c0_184, %c0_185], %460 {strides = array<i32>} : memref<2x128xf32, #tpu.memory_space<vmem>>, vector<2x128xf32>,
    } else {
    }
    return
  }
  func.func @transform_0(%arg0: i32) -> (i32, i32) {
    %c0_i32 = arith.constant 0 : i32
    %c0_i32_0 = arith.constant 0 : i32
    return %arg0, %c0_i32 : i32, i32
  }
  func.func @transform_1(%arg0: i32) -> (i32, i32) {
    %c0_i32 = arith.constant 0 : i32
    %c0_i32_0 = arith.constant 0 : i32
    %c0_i32_1 = arith.constant 0 : i32
    return %c0_i32, %c0_i32_0 : i32, i32
  }
  func.func @transform_2(%arg0: i32) -> (i32, i32) {
    %c0_i32 = arith.constant 0 : i32
    %c0_i32_0 = arith.constant 0 : i32
    %c0_i32_1 = arith.constant 0 : i32
    return %c0_i32, %c0_i32_0 : i32, i32
  }
  func.func @transform_3(%arg0: i32) -> (i32, i32) {
    %c0_i32 = arith.constant 0 : i32
    %c0_i32_0 = arith.constant 0 : i32
    %c0_i32_1 = arith.constant 0 : i32
    return %c0_i32, %c0_i32_0 : i32, i32
  }
  func.func @transform_4(%arg0: i32) -> (i32, i32) {
    %c0_i32 = arith.constant 0 : i32
    %c0_i32_0 = arith.constant 0 : i32
    %c0_i32_1 = arith.constant 0 : i32
    return %c0_i32, %c0_i32_0 : i32, i32
  }
  func.func @transform_5(%arg0: i32) -> (i32, i32, i32) {
    %c0_i32 = arith.constant 0 : i32
    %c0_i32_0 = arith.constant 0 : i32
    %c0_i32_1 = arith.constant 0 : i32
    %c0_i32_2 = arith.constant 0 : i32
    return %c0_i32, %c0_i32_0, %c0_i32_1 : i32, i32, i32
  }
  func.func @transform_6(%arg0: i32) -> (i32, i32, i32) {
    %c0_i32 = arith.constant 0 : i32
    %c0_i32_0 = arith.constant 0 : i32
    %c0_i32_1 = arith.constant 0 : i32
    %c0_i32_2 = arith.constant 0 : i32
    return %c0_i32, %c0_i32_0, %c0_i32_1 : i32, i32, i32
  }
  func.func @transform_7(%arg0: i32) -> (i32, i32) {
    %c0_i32 = arith.constant 0 : i32
    %c0_i32_0 = arith.constant 0 : i32
    return %arg0, %c0_i32 : i32, i32
  }
  func.func @transform_8(%arg0: i32) -> (i32, i32) {
    %c0_i32 = arith.constant 0 : i32
    %c0_i32_0 = arith.constant 0 : i32
    %c0_i32_1 = arith.constant 0 : i32
    return %c0_i32, %c0_i32_0 : i32, i32
  }
}

</mosaic_0001>

<llo_original>
// kernel: tpu_custom_call.1
$region0: #{tpu_custom_call.1}
  #allocation0 [shape = 'u32[]', space=smem, size = 0x4, offset = 0x4, fixed_abs, tag = 'smem constant byte address 0x4 - core index']
  #allocation1 [shape = 'u32[144,128]{1,0:T(1,128)}', space=vmem, size = 0x12000, scoped, tag = 'internal scratch']
  #allocation2 [shape = 'f32[2,2,128]{2,1,0:T(2,128)}', space=vmem, size = 0x800, scoped, tag = 'scratch operand']
  %s0 = inlined_call_operand.hbm [shape: f32[16,16], index: 0, kind: input, shape index: {}]
  %s1 = inlined_call_operand.hbm [shape: f32[16,384], index: 1, kind: input, shape index: {}]
  %s2 = inlined_call_operand.vmem [shape: f32[1,384], index: 2, kind: input, shape index: {}]
  %s3 = inlined_call_operand.hbm [shape: f32[128,384], index: 3, kind: input, shape index: {}]
  %s4 = inlined_call_operand.hbm [shape: f32[1,384], index: 4, kind: input, shape index: {}]
  %s5 = inlined_call_operand.hbm [shape: f32[1,256,512], index: 5, kind: input, shape index: {}]
  %s6 = inlined_call_operand.vmem [shape: f32[1,1,512], index: 6, kind: input, shape index: {}]
  %s7 = inlined_call_operand.hbm [shape: f32[8,128], index: 7, kind: output, shape index: {0}]
  %s8 = inlined_call_operand.hbm [shape: f32[2,128], index: 8, kind: output, shape index: {1}]
  %9 = xla_tuple %s7, %s8
  %s10 = sld [smem:[#allocation0]]
  $region74: #{tpu_custom_call.1} parent=0
    _
  %s12 = ssub.s32 1, %s10
  %s13 = scalar_select 0, %s12, %s10
  $region1: #{tpu_custom_call.1} parent=0
    #allocation3 [shape = 'u8[8192]{0}', space=vmem, size = 0x2000, scoped, tag = 'input window, operand 0, single buffered']
    #allocation4 [shape = 's32[1]{0}', space=sflag, size = 0x4, scoped, tag = 'scoped memory for tpu_custom_call.1']
    #allocation5 [shape = 's32[1]{0}', space=sflag, size = 0x4, scoped, tag = 'scoped memory for tpu_custom_call.1']
    #allocation6 [shape = 'u8[24576]{0}', space=vmem, size = 0x6000, scoped, tag = 'input window, operand 1, single buffered']
    #allocation7 [shape = 's32[1]{0}', space=sflag, size = 0x4, scoped, tag = 'scoped memory for tpu_custom_call.1']
    #allocation8 [shape = 'u8[196608]{0}', space=vmem, size = 0x30000, scoped, tag = 'input window, operand 3, single buffered']
    #allocation9 [shape = 'u8[1536]{0}', space=vmem, size = 0x800, scoped, tag = 'input window, operand 4, single buffered']
    #allocation10 [shape = 's32[1]{0}', space=sflag, size = 0x4, scoped, tag = 'scoped memory for tpu_custom_call.1']
    #allocation11 [shape = 'u8[524288]{0}', space=vmem, size = 0x80000, scoped, tag = 'input window, operand 5, single buffered']
    #allocation12 [shape = 'u8[4096]{0}', space=vmem, size = 0x1000, scoped, tag = 'output window, operand 0, single buffered']
    #allocation13 [shape = 'u8[1024]{0}', space=vmem, size = 0x400, scoped, tag = 'output window, operand 1, single buffered']
    #allocation14 [shape = 's32[1]{0}', space=sflag, size = 0x4, scoped, tag = 'scoped memory for tpu_custom_call.1']
    %14 = vsyncpa [#allocation4], 0
    %15 = vsyncpa [#allocation7], 0
    %16 = vsyncpa [#allocation10], 0
    %17 = vsyncpa [#allocation5], 0
    %18 = vsyncpa [#allocation14], 0
    // Predicated region
    $region2: #{tpu_custom_call.1} parent=1 // pred_check
      _
    $region3: #{tpu_custom_call.1} parent=1 // pred_check_branch
      %20 = sbr.rel (0) target = $region5
    $region4: #{tpu_custom_call.1} parent=1 // pred_region
      %s22 = ssub.s32 256, 256
      %23 = vsyncadd [#allocation4], %s22
      %s24 = sshll.u32 [#allocation3], 4
      %s25 = int_to_ptr.vmem [resolvable:$true] %s24
      %30 = dma.hbm_to_vmem [thread:$0]  %s0, 256, %s25, [#allocation4], 128, 128, 8
    $region5: #{tpu_custom_call.1} parent=1 // pred_fallthru
      _
    // Predicated region
    $region6: #{tpu_custom_call.1} parent=1 // pred_check
      _
    $region7: #{tpu_custom_call.1} parent=1 // pred_check_branch
      %32 = sbr.rel (0) target = $region9
    $region8: #{tpu_custom_call.1} parent=1 // pred_region
      %s34 = ssub.s32 768, 768
      %35 = vsyncadd [#allocation7], %s34
      %s36 = sshll.u32 [#allocation6], 4
      %s37 = int_to_ptr.vmem [resolvable:$true] %s36
      %42 = dma.hbm_to_vmem [thread:$0]  %s1, 768, %s37, [#allocation7], 384, 384, 24
    $region9: #{tpu_custom_call.1} parent=1 // pred_fallthru
      _
    // Predicated region
    $region10: #{tpu_custom_call.1} parent=1 // pred_check
      _
    $region11: #{tpu_custom_call.1} parent=1 // pred_check_branch
      %44 = sbr.rel (0) target = $region13
    $region12: #{tpu_custom_call.1} parent=1 // pred_region
      _
    $region13: #{tpu_custom_call.1} parent=1 // pred_fallthru
      _
    // Predicated region
    $region14: #{tpu_custom_call.1} parent=1 // pred_check
      _
    $region15: #{tpu_custom_call.1} parent=1 // pred_check_branch
      %46 = sbr.rel (0) target = $region17
    $region16: #{tpu_custom_call.1} parent=1 // pred_region
      %s48 = ssub.s32 6144, 6144
      %49 = vsyncadd [#allocation7], %s48
      %s50 = sshll.u32 [#allocation8], 4
      %s51 = int_to_ptr.vmem [resolvable:$true] %s50
      %56 = dma.hbm_to_vmem [thread:$0]  %s3, 6144, %s51, [#allocation7], 384, 384, 24
    $region17: #{tpu_custom_call.1} parent=1 // pred_fallthru
      _
    // Predicated region
    $region18: #{tpu_custom_call.1} parent=1 // pred_check
      _
    $region19: #{tpu_custom_call.1} parent=1 // pred_check_branch
      %58 = sbr.rel (0) target = $region21
    $region20: #{tpu_custom_call.1} parent=1 // pred_region
      %s60 = ssub.s32 48, 48
      %61 = vsyncadd [#allocation10], %s60
      %s63 = sshll.u32 [#allocation9], 4
      %s64 = int_to_ptr.vmem [resolvable:$true] %s63
      %66 = dma.hbm_to_vmem [thread:$0]  %s4, 48, %s64, [#allocation10]
    $region21: #{tpu_custom_call.1} parent=1 // pred_fallthru
      _
    // Predicated region
    $region22: #{tpu_custom_call.1} parent=1 // pred_check
      _
    $region23: #{tpu_custom_call.1} parent=1 // pred_check_branch
      %68 = sbr.rel (0) target = $region25
    $region24: #{tpu_custom_call.1} parent=1 // pred_region
      %s70 = ssub.s32 16384, 16384
      %71 = vsyncadd [#allocation10], %s70
      %s72 = sshll.u32 [#allocation11], 4
      %s73 = int_to_ptr.vmem [resolvable:$true] %s72
      %78 = dma.hbm_to_vmem [thread:$0]  %s5, 16384, %s73, [#allocation10], 512, 512, 32
    $region25: #{tpu_custom_call.1} parent=1 // pred_fallthru
      _
    // Predicated region
    $region26: #{tpu_custom_call.1} parent=1 // pred_check
      _
    $region27: #{tpu_custom_call.1} parent=1 // pred_check_branch
      %80 = sbr.rel (0) target = $region29
    $region28: #{tpu_custom_call.1} parent=1 // pred_region
      _
    $region29: #{tpu_custom_call.1} parent=1 // pred_fallthru
      _
    // Predicated region
    $region30: #{tpu_custom_call.1} parent=1 // pred_check
      _
    $region31: #{tpu_custom_call.1} parent=1 // pred_check_branch
      %82 = sbr.rel (0) target = $region33
    $region32: #{tpu_custom_call.1} parent=1 // pred_region
      %83 = dma.done [#allocation4], 256
    $region33: #{tpu_custom_call.1} parent=1 // pred_fallthru
      _
    // Predicated region
    $region34: #{tpu_custom_call.1} parent=1 // pred_check
      _
    $region35: #{tpu_custom_call.1} parent=1 // pred_check_branch
      %85 = sbr.rel (0) target = $region37
    $region36: #{tpu_custom_call.1} parent=1 // pred_region
      %86 = dma.done [#allocation7], 768
    $region37: #{tpu_custom_call.1} parent=1 // pred_fallthru
      _
    // Predicated region
    $region38: #{tpu_custom_call.1} parent=1 // pred_check
      _
    $region39: #{tpu_custom_call.1} parent=1 // pred_check_branch
      %88 = sbr.rel (0) target = $region41
    $region40: #{tpu_custom_call.1} parent=1 // pred_region
      %89 = dma.done [#allocation7], 6144
    $region41: #{tpu_custom_call.1} parent=1 // pred_fallthru
      _
    // Predicated region
    $region42: #{tpu_custom_call.1} parent=1 // pred_check
      _
    $region43: #{tpu_custom_call.1} parent=1 // pred_check_branch
      %91 = sbr.rel (0) target = $region45
    $region44: #{tpu_custom_call.1} parent=1 // pred_region
      %92 = dma.done [#allocation10], 48
    $region45: #{tpu_custom_call.1} parent=1 // pred_fallthru
      _
    // Predicated region
    $region46: #{tpu_custom_call.1} parent=1 // pred_check
      _
    $region47: #{tpu_custom_call.1} parent=1 // pred_check_branch
      %94 = sbr.rel (0) target = $region49
    $region48: #{tpu_custom_call.1} parent=1 // pred_region
      %95 = dma.done [#allocation10], 16384
    $region49: #{tpu_custom_call.1} parent=1 // pred_fallthru
      _
    %p96 = scmp.eq.s32.totalorder 0, 0
    // Predicated region
    $region50: #{tpu_custom_call.1} parent=1 // pred_check
      %p97 = pneg %p96
    $region51: #{tpu_custom_call.1} parent=1 // pred_check_branch
      %99 = sbr.rel (%p97) target = $region53
    $region52: #{tpu_custom_call.1} parent=1 // pred_region
      %100 = vst [vmem:[#allocation2] sm:$0x3] 0.0
      %101 = vst [vmem:[#allocation2 + $0x2] sm:$0x3] 0.0
    $region53: #{tpu_custom_call.1} parent=1 // pred_fallthru
      _
    %v102 = vld [vmem:[%s2] sm:$0x7]
    %v103 = vld [vmem:[#allocation9] sm:$0x7]
    %v105 = vlaneseq
    %v106 = vshrl.u32 %v105, 7
    %v107 = vsub.s32 0, %v106
    %v108 = vrot.slane %v103, %v107
    %v109 = vlaneseq
    %v110 = vshrl.u32 %v109, 7
    %v111 = vsub.s32 1, %v110
    %v112 = vrot.slane %v103, %v111
    %v113 = vlaneseq
    %v114 = vshrl.u32 %v113, 7
    %v115 = vsub.s32 2, %v114
    %v116 = vrot.slane %v103, %v115
    %v120 = vld [vmem:[%s6] sm:$0xf]
    %v122 = vlaneseq
    %v123 = vshrl.u32 %v122, 7
    %v124 = vsub.s32 0, %v123
    %v125 = vrot.slane %v120, %v124
    %v126 = vlaneseq
    %v127 = vshrl.u32 %v126, 7
    %v128 = vsub.s32 1, %v127
    %v129 = vrot.slane %v120, %v128
    %v130 = vlaneseq
    %v131 = vshrl.u32 %v130, 7
    %v132 = vsub.s32 2, %v131
    %v133 = vrot.slane %v120, %v132
    %v134 = vlaneseq
    %v135 = vshrl.u32 %v134, 7
    %v136 = vsub.s32 3, %v135
    %v137 = vrot.slane %v120, %v136
    %v142 = vld [vmem:[#allocation3] sm:$0xff]
    %v143 = vld [vmem:[#allocation3 + $0x8] sm:$0xff]
    %v144 = vld [vmem:[#allocation6] sm:$0xff]
    %v145 = vld [vmem:[#allocation6 + $0x8] sm:$0xff]
    %v146 = vld [vmem:[#allocation6 + $0x10] sm:$0xff]
    %v147 = vld [vmem:[#allocation6 + $0x18] sm:$0xff]
    %v148 = vld [vmem:[#allocation6 + $0x20] sm:$0xff]
    %v149 = vld [vmem:[#allocation6 + $0x28] sm:$0xff]
    %v151 = vlaneseq
    %v152 = vshrl.u32 %v151, 7
    %v153 = vsub.s32 0, %v152
    %v154 = vrot.slane %v102, %v153
    %v155 = vlaneseq
    %v156 = vshrl.u32 %v155, 7
    %v157 = vsub.s32 1, %v156
    %v158 = vrot.slane %v102, %v157
    %v159 = vlaneseq
    %v160 = vshrl.u32 %v159, 7
    %v161 = vsub.s32 2, %v160
    %v162 = vrot.slane %v102, %v161
    %vm166 = vcmask 130048
    %v168 = vsel %vm166, %v142, 0
    %v171 = vsel %vm166, %v143, 0
    %173 = vmatprep.subr.mxu0 0.0
    %174 = vmatpush1.msra.mxu0 0.0
    %175 = vmatprep.subr.mxu0 0.0
    %176 = vmatpush1.msra.mxu0 0.0
    %177 = vmatprep.subr.mxu0 0.0
    %178 = vmatpush1.msra.mxu0 0.0
    %179 = vmatprep.subr.mxu0 0.0
    %180 = vmatpush1.msra.mxu0 0.0
    %181 = vmatprep.subr.mxu0 0.0
    %182 = vmatpush1.msra.mxu0 0.0
    %183 = vmatprep.subr.mxu0 0.0
    %184 = vmatpush1.msra.mxu0 0.0
    %185 = vmatprep.subr.mxu0 0.0
    %186 = vmatpush1.msra.mxu0 0.0
    %187 = vmatprep.subr.mxu0 0.0
    %188 = vmatpush1.msra.mxu0 0.0
    %189 = vmatprep.subr.mxu0 0.0
    %190 = vmatpush1.msra.mxu0 0.0
    %191 = vmatprep.subr.mxu0 0.0
    %192 = vmatpush1.msra.mxu0 0.0
    %193 = vmatprep.subr.mxu0 0.0
    %194 = vmatpush1.msra.mxu0 0.0
    %195 = vmatprep.subr.mxu0 0.0
    %196 = vmatpush1.msra.mxu0 0.0
    %197 = vmatprep.subr.mxu0 0.0
    %198 = vmatpush1.msra.mxu0 0.0
    %199 = vmatprep.subr.mxu0 0.0
    %200 = vmatpush1.msra.mxu0 0.0
    %201 = vmatprep.subr.mxu0 %v148
    %202 = vmatpush1.msra.mxu0 %v147
    %203 = vmatprep.subr.mxu0 %v145
    %204 = vmatpush1.msra.mxu0 %v144
    %205 = vmatprep.subr.mxu0 0.0
    %206 = vmatpush2.msra.mxu0 0.0
    %207 = vmatprep.subr.mxu0 0.0
    %208 = vmatpush2.msra.mxu0 0.0
    %209 = vmatprep.subr.mxu0 0.0
    %210 = vmatpush2.msra.mxu0 0.0
    %211 = vmatprep.subr.mxu0 0.0
    %212 = vmatpush2.msra.mxu0 0.0
    %213 = vmatprep.subr.mxu0 0.0
    %214 = vmatpush2.msra.mxu0 0.0
    %215 = vmatprep.subr.mxu0 0.0
    %216 = vmatpush2.msra.mxu0 0.0
    %217 = vmatprep.subr.mxu0 0.0
    %218 = vmatpush2.msra.mxu0 0.0
    %219 = vmatprep.subr.mxu0 0.0
    %220 = vmatpush2.msra.mxu0 0.0
    %221 = vmatprep.subr.mxu0 0.0
    %222 = vmatpush2.msra.mxu0 0.0
    %223 = vmatprep.subr.mxu0 0.0
    %224 = vmatpush2.msra.mxu0 0.0
    %225 = vmatprep.subr.mxu0 0.0
    %226 = vmatpush2.msra.mxu0 0.0
    %227 = vmatprep.subr.mxu0 0.0
    %228 = vmatpush2.msra.mxu0 0.0
    %229 = vmatprep.subr.mxu0 0.0
    %230 = vmatpush2.msra.mxu0 0.0
    %231 = vmatprep.subr.mxu0 0.0
    %232 = vmatpush2.msra.mxu0 0.0
    %233 = vmatprep.subr.mxu0 0.0
    %234 = vmatpush2.msra.mxu0 0.0
    %235 = vmatprep.subr.mxu0 0.0
    %236 = vmatpush2.msra.mxu0 0.0
    %237 = vmatprep.mubr.f32.mxu0 0.0
    %238 = vmatmul.mubr.f32.gmra.mxu0 %v168
    %v239 = vpop.f32.mrf.mxu0
    %v240 = vadd.f32 %v154, %v239
    %v241 = vpop.f32.mrf.mxu0
    %v242 = vadd.f32 %v158, %v241
    %243 = vmatprep.mubr.f32.mxu0 0.0
    %244 = vmatmul.mubr.f32.gmra.mxu0 %v171
    %v245 = vpop.f32.mrf.mxu0
    %v246 = vadd.f32 %v154, %v245
    %v247 = vpop.f32.mrf.mxu0
    %v248 = vadd.f32 %v158, %v247
    %249 = vdwg.mxu0
    %250 = vmatprep.subr.mxu0 0.0
    %251 = vmatpush1.msra.mxu0 0.0
    %252 = vmatprep.subr.mxu0 0.0
    %253 = vmatpush1.msra.mxu0 0.0
    %254 = vmatprep.subr.mxu0 0.0
    %255 = vmatpush1.msra.mxu0 0.0
    %256 = vmatprep.subr.mxu0 0.0
    %257 = vmatpush1.msra.mxu0 0.0
    %258 = vmatprep.subr.mxu0 0.0
    %259 = vmatpush1.msra.mxu0 0.0
    %260 = vmatprep.subr.mxu0 0.0
    %261 = vmatpush1.msra.mxu0 0.0
    %262 = vmatprep.subr.mxu0 0.0
    %263 = vmatpush1.msra.mxu0 0.0
    %264 = vmatprep.subr.mxu0 0.0
    %265 = vmatpush1.msra.mxu0 0.0
    %266 = vmatprep.subr.mxu0 0.0
    %267 = vmatpush1.msra.mxu0 0.0
    %268 = vmatprep.subr.mxu0 0.0
    %269 = vmatpush1.msra.mxu0 0.0
    %270 = vmatprep.subr.mxu0 0.0
    %271 = vmatpush1.msra.mxu0 0.0
    %272 = vmatprep.subr.mxu0 0.0
    %273 = vmatpush1.msra.mxu0 0.0
    %274 = vmatprep.subr.mxu0 0.0
    %275 = vmatpush1.msra.mxu0 0.0
    %276 = vmatprep.subr.mxu0 0.0
    %277 = vmatpush1.msra.mxu0 0.0
    %278 = vmatprep.subr.mxu0 0.0
    %279 = vmatpush1.msra.mxu0 %v149
    %280 = vmatprep.subr.mxu0 0.0
    %281 = vmatpush1.msra.mxu0 %v146
    %282 = vmatprep.subr.mxu0 0.0
    %283 = vmatpush2.msra.mxu0 0.0
    %284 = vmatprep.subr.mxu0 0.0
    %285 = vmatpush2.msra.mxu0 0.0
    %286 = vmatprep.subr.mxu0 0.0
    %287 = vmatpush2.msra.mxu0 0.0
    %288 = vmatprep.subr.mxu0 0.0
    %289 = vmatpush2.msra.mxu0 0.0
    %290 = vmatprep.subr.mxu0 0.0
    %291 = vmatpush2.msra.mxu0 0.0
    %292 = vmatprep.subr.mxu0 0.0
    %293 = vmatpush2.msra.mxu0 0.0
    %294 = vmatprep.subr.mxu0 0.0
    %295 = vmatpush2.msra.mxu0 0.0
    %296 = vmatprep.subr.mxu0 0.0
    %297 = vmatpush2.msra.mxu0 0.0
    %298 = vmatprep.subr.mxu0 0.0
    %299 = vmatpush2.msra.mxu0 0.0
    %300 = vmatprep.subr.mxu0 0.0
    %301 = vmatpush2.msra.mxu0 0.0
    %302 = vmatprep.subr.mxu0 0.0
    %303 = vmatpush2.msra.mxu0 0.0
    %304 = vmatprep.subr.mxu0 0.0
    %305 = vmatpush2.msra.mxu0 0.0
    %306 = vmatprep.subr.mxu0 0.0
    %307 = vmatpush2.msra.mxu0 0.0
    %308 = vmatprep.subr.mxu0 0.0
    %309 = vmatpush2.msra.mxu0 0.0
    %310 = vmatprep.subr.mxu0 0.0
    %311 = vmatpush2.msra.mxu0 0.0
    %312 = vmatprep.subr.mxu0 0.0
    %313 = vmatpush2.msra.mxu0 0.0
    %314 = vmatprep.mubr.f32.mxu0 0.0
    %315 = vmatmul.mubr.f32.gmra.mxu0 %v168
    %v316 = vpop.f32.mrf.mxu0
    %v317 = vadd.f32 %v162, %v316
    %v318 = vpop.f32.mrf.mxu0
    %319 = vmatprep.mubr.f32.mxu0 0.0
    %320 = vmatmul.mubr.f32.gmra.mxu0 %v171
    %v321 = vpop.f32.mrf.mxu0
    %v322 = vadd.f32 %v162, %v321
    %v323 = vpop.f32.mrf.mxu0
    %324 = vdwg.mxu0
    %v325 = vld [vmem:[#allocation2] sm:$0x3]
    %v326 = vld [vmem:[#allocation8] sm:$0xff]
    %v327 = vld [vmem:[#allocation8 + $0x8] sm:$0xff]
    %v328 = vld [vmem:[#allocation8 + $0x10] sm:$0xff]
    %v329 = vld [vmem:[#allocation8 + $0x18] sm:$0xff]
    %v330 = vld [vmem:[#allocation8 + $0x20] sm:$0xff]
    %v331 = vld [vmem:[#allocation8 + $0x28] sm:$0xff]
    %v332 = vld [vmem:[#allocation8 + $0x30] sm:$0xff]
    %v333 = vld [vmem:[#allocation8 + $0x38] sm:$0xff]
    %v334 = vld [vmem:[#allocation8 + $0x40] sm:$0xff]
    %v335 = vld [vmem:[#allocation8 + $0x48] sm:$0xff]
    %v336 = vld [vmem:[#allocation8 + $0x50] sm:$0xff]
    %v337 = vld [vmem:[#allocation8 + $0x58] sm:$0xff]
    %v338 = vld [vmem:[#allocation8 + $0x60] sm:$0xff]
    %v339 = vld [vmem:[#allocation8 + $0x68] sm:$0xff]
    %v340 = vld [vmem:[#allocation8 + $0x70] sm:$0xff]
    %v341 = vld [vmem:[#allocation8 + $0x78] sm:$0xff]
    %v342 = vld [vmem:[#allocation8 + $0x80] sm:$0xff]
    %v343 = vld [vmem:[#allocation8 + $0x88] sm:$0xff]
    %v344 = vld [vmem:[#allocation8 + $0x90] sm:$0xff]
    %v345 = vld [vmem:[#allocation8 + $0x98] sm:$0xff]
    %v346 = vld [vmem:[#allocation8 + $0xa0] sm:$0xff]
    %v347 = vld [vmem:[#allocation8 + $0xa8] sm:$0xff]
    %v348 = vld [vmem:[#allocation8 + $0xb0] sm:$0xff]
    %v349 = vld [vmem:[#allocation8 + $0xb8] sm:$0xff]
    %v350 = vld [vmem:[#allocation8 + $0xc0] sm:$0xff]
    %v351 = vld [vmem:[#allocation8 + $0xc8] sm:$0xff]
    %v352 = vld [vmem:[#allocation8 + $0xd0] sm:$0xff]
    %v353 = vld [vmem:[#allocation8 + $0xd8] sm:$0xff]
    %v354 = vld [vmem:[#allocation8 + $0xe0] sm:$0xff]
    %v355 = vld [vmem:[#allocation8 + $0xe8] sm:$0xff]
    %v356 = vld [vmem:[#allocation8 + $0xf0] sm:$0xff]
    %v357 = vld [vmem:[#allocation8 + $0xf8] sm:$0xff]
    %v358 = vld [vmem:[#allocation8 + $0x100] sm:$0xff]
    %v359 = vld [vmem:[#allocation8 + $0x108] sm:$0xff]
    %v360 = vld [vmem:[#allocation8 + $0x110] sm:$0xff]
    %v361 = vld [vmem:[#allocation8 + $0x118] sm:$0xff]
    %v362 = vld [vmem:[#allocation8 + $0x120] sm:$0xff]
    %v363 = vld [vmem:[#allocation8 + $0x128] sm:$0xff]
    %v364 = vld [vmem:[#allocation8 + $0x130] sm:$0xff]
    %v365 = vld [vmem:[#allocation8 + $0x138] sm:$0xff]
    %v366 = vld [vmem:[#allocation8 + $0x140] sm:$0xff]
    %v367 = vld [vmem:[#allocation8 + $0x148] sm:$0xff]
    %v368 = vld [vmem:[#allocation8 + $0x150] sm:$0xff]
    %v369 = vld [vmem:[#allocation8 + $0x158] sm:$0xff]
    %v370 = vld [vmem:[#allocation8 + $0x160] sm:$0xff]
    %v371 = vld [vmem:[#allocation8 + $0x168] sm:$0xff]
    %v372 = vld [vmem:[#allocation8 + $0x170] sm:$0xff]
    %v373 = vld [vmem:[#allocation8 + $0x178] sm:$0xff]
    %374 = vmatprep.subr.mxu0 %v372
    %375 = vmatpush1.msra.mxu0 %v371
    %376 = vmatprep.subr.mxu0 %v369
    %377 = vmatpush1.msra.mxu0 %v368
    %378 = vmatprep.subr.mxu0 %v366
    %379 = vmatpush1.msra.mxu0 %v365
    %380 = vmatprep.subr.mxu0 %v363
    %381 = vmatpush1.msra.mxu0 %v362
    %382 = vmatprep.subr.mxu0 %v360
    %383 = vmatpush1.msra.mxu0 %v359
    %384 = vmatprep.subr.mxu0 %v357
    %385 = vmatpush1.msra.mxu0 %v356
    %386 = vmatprep.subr.mxu0 %v354
    %387 = vmatpush1.msra.mxu0 %v353
    %388 = vmatprep.subr.mxu0 %v351
    %389 = vmatpush1.msra.mxu0 %v350
    %390 = vmatprep.subr.mxu0 %v348
    %391 = vmatpush1.msra.mxu0 %v347
    %392 = vmatprep.subr.mxu0 %v345
    %393 = vmatpush1.msra.mxu0 %v344
    %394 = vmatprep.subr.mxu0 %v342
    %395 = vmatpush1.msra.mxu0 %v341
    %396 = vmatprep.subr.mxu0 %v339
    %397 = vmatpush1.msra.mxu0 %v338
    %398 = vmatprep.subr.mxu0 %v336
    %399 = vmatpush1.msra.mxu0 %v335
    %400 = vmatprep.subr.mxu0 %v333
    %401 = vmatpush1.msra.mxu0 %v332
    %402 = vmatprep.subr.mxu0 %v330
    %403 = vmatpush1.msra.mxu0 %v329
    %404 = vmatprep.subr.mxu0 %v327
    %405 = vmatpush1.msra.mxu0 %v326
    %406 = vmatprep.subr.mxu0 0.0
    %407 = vmatpush2.msra.mxu0 0.0
    %408 = vmatprep.subr.mxu0 0.0
    %409 = vmatpush2.msra.mxu0 0.0
    %410 = vmatprep.subr.mxu0 0.0
    %411 = vmatpush2.msra.mxu0 0.0
    %412 = vmatprep.subr.mxu0 0.0
    %413 = vmatpush2.msra.mxu0 0.0
    %414 = vmatprep.subr.mxu0 0.0
    %415 = vmatpush2.msra.mxu0 0.0
    %416 = vmatprep.subr.mxu0 0.0
    %417 = vmatpush2.msra.mxu0 0.0
    %418 = vmatprep.subr.mxu0 0.0
    %419 = vmatpush2.msra.mxu0 0.0
    %420 = vmatprep.subr.mxu0 0.0
    %421 = vmatpush2.msra.mxu0 0.0
    %422 = vmatprep.subr.mxu0 0.0
    %423 = vmatpush2.msra.mxu0 0.0
    %424 = vmatprep.subr.mxu0 0.0
    %425 = vmatpush2.msra.mxu0 0.0
    %426 = vmatprep.subr.mxu0 0.0
    %427 = vmatpush2.msra.mxu0 0.0
    %428 = vmatprep.subr.mxu0 0.0
    %429 = vmatpush2.msra.mxu0 0.0
    %430 = vmatprep.subr.mxu0 0.0
    %431 = vmatpush2.msra.mxu0 0.0
    %432 = vmatprep.subr.mxu0 0.0
    %433 = vmatpush2.msra.mxu0 0.0
    %434 = vmatprep.subr.mxu0 0.0
    %435 = vmatpush2.msra.mxu0 0.0
    %436 = vmatprep.subr.mxu0 0.0
    %437 = vmatpush2.msra.mxu0 0.0
    %438 = vmatprep.mubr.f32.mxu0 0.0
    %439 = vmatmul.mubr.f32.gmra.mxu0 %v325
    %v440 = vpop.f32.mrf.mxu0
    %v441 = vadd.f32 %v108, %v440
    %v442 = vpop.f32.mrf.mxu0
    %v443 = vadd.f32 %v112, %v442
    %444 = vdwg.mxu0
    %445 = vmatprep.subr.mxu0 0.0
    %446 = vmatpush1.msra.mxu0 %v373
    %447 = vmatprep.subr.mxu0 0.0
    %448 = vmatpush1.msra.mxu0 %v370
    %449 = vmatprep.subr.mxu0 0.0
    %450 = vmatpush1.msra.mxu0 %v367
    %451 = vmatprep.subr.mxu0 0.0
    %452 = vmatpush1.msra.mxu0 %v364
    %453 = vmatprep.subr.mxu0 0.0
    %454 = vmatpush1.msra.mxu0 %v361
    %455 = vmatprep.subr.mxu0 0.0
    %456 = vmatpush1.msra.mxu0 %v358
    %457 = vmatprep.subr.mxu0 0.0
    %458 = vmatpush1.msra.mxu0 %v355
    %459 = vmatprep.subr.mxu0 0.0
    %460 = vmatpush1.msra.mxu0 %v352
    %461 = vmatprep.subr.mxu0 0.0
    %462 = vmatpush1.msra.mxu0 %v349
    %463 = vmatprep.subr.mxu0 0.0
    %464 = vmatpush1.msra.mxu0 %v346
    %465 = vmatprep.subr.mxu0 0.0
    %466 = vmatpush1.msra.mxu0 %v343
    %467 = vmatprep.subr.mxu0 0.0
    %468 = vmatpush1.msra.mxu0 %v340
    %469 = vmatprep.subr.mxu0 0.0
    %470 = vmatpush1.msra.mxu0 %v337
    %471 = vmatprep.subr.mxu0 0.0
    %472 = vmatpush1.msra.mxu0 %v334
    %473 = vmatprep.subr.mxu0 0.0
    %474 = vmatpush1.msra.mxu0 %v331
    %475 = vmatprep.subr.mxu0 0.0
    %476 = vmatpush1.msra.mxu0 %v328
    %477 = vmatprep.subr.mxu0 0.0
    %478 = vmatpush2.msra.mxu0 0.0
    %479 = vmatprep.subr.mxu0 0.0
    %480 = vmatpush2.msra.mxu0 0.0
    %481 = vmatprep.subr.mxu0 0.0
    %482 = vmatpush2.msra.mxu0 0.0
    %483 = vmatprep.subr.mxu0 0.0
    %484 = vmatpush2.msra.mxu0 0.0
    %485 = vmatprep.subr.mxu0 0.0
    %486 = vmatpush2.msra.mxu0 0.0
    %487 = vmatprep.subr.mxu0 0.0
    %488 = vmatpush2.msra.mxu0 0.0
    %489 = vmatprep.subr.mxu0 0.0
    %490 = vmatpush2.msra.mxu0 0.0
    %491 = vmatprep.subr.mxu0 0.0
    %492 = vmatpush2.msra.mxu0 0.0
    %493 = vmatprep.subr.mxu0 0.0
    %494 = vmatpush2.msra.mxu0 0.0
    %495 = vmatprep.subr.mxu0 0.0
    %496 = vmatpush2.msra.mxu0 0.0
    %497 = vmatprep.subr.mxu0 0.0
    %498 = vmatpush2.msra.mxu0 0.0
    %499 = vmatprep.subr.mxu0 0.0
    %500 = vmatpush2.msra.mxu0 0.0
    %501 = vmatprep.subr.mxu0 0.0
    %502 = vmatpush2.msra.mxu0 0.0
    %503 = vmatprep.subr.mxu0 0.0
    %504 = vmatpush2.msra.mxu0 0.0
    %505 = vmatprep.subr.mxu0 0.0
    %506 = vmatpush2.msra.mxu0 0.0
    %507 = vmatprep.subr.mxu0 0.0
    %508 = vmatpush2.msra.mxu0 0.0
    %509 = vmatprep.mubr.f32.mxu0 0.0
    %510 = vmatmul.mubr.f32.gmra.mxu0 %v325
    %v511 = vpop.f32.mrf.mxu0
    %v512 = vadd.f32 %v116, %v511
    %v513 = vpop.f32.mrf.mxu0
    %514 = vdwg.mxu0
    %v515 = vadd.f32 %v240, %v441
    %v516 = vadd.f32 %v242, %v443
    %v517 = vxor.u32 %v515, 2147483648
    %v518 = vxor.u32 %v516, 2147483648
    %v519 = vmul.f32 %v517, 1.442695
    %v520 = vpow.pop %v519
    %v521 = vmul.f32 %v518, 1.442695
    %v522 = vpow.pop %v521
    %v523 = vadd.f32 %v520, 1.0
    %v524 = vadd.f32 %v522, 1.0
    %v525 = vrcp.pop %v523
    %v526 = vmul.f32 1.0, %v525
    %v527 = vrcp.pop %v524
    %v528 = vmul.f32 1.0, %v527
    %v529 = vmul.f32 %v526, %v512
    %v530 = vadd.f32 %v317, %v529
    %v531 = vtanh.pop %v530
    %v532 = vsub.f32 %v325, %v531
    %v533 = vmul.f32 %v528, %v532
    %v534 = vadd.f32 %v531, %v533
    %535 = vst [vmem:[#allocation2] sm:$0x3] %v534
    %s536 = scalar_lea.vmem [#allocation2], 2
    %v537 = vld [vmem:[%s536] sm:$0x3]
    %v538 = vld [vmem:[#allocation11] sm:$0xff]
    %v539 = vld [vmem:[#allocation11 + $0x8] sm:$0xff]
    %v540 = vld [vmem:[#allocation11 + $0x10] sm:$0xff]
    %v541 = vld [vmem:[#allocation11 + $0x18] sm:$0xff]
    %v542 = vld [vmem:[#allocation11 + $0x20] sm:$0xff]
    %v543 = vld [vmem:[#allocation11 + $0x28] sm:$0xff]
    %v544 = vld [vmem:[#allocation11 + $0x30] sm:$0xff]
    %v545 = vld [vmem:[#allocation11 + $0x38] sm:$0xff]
    %v546 = vld [vmem:[#allocation11 + $0x40] sm:$0xff]
    %v547 = vld [vmem:[#allocation11 + $0x48] sm:$0xff]
    %v548 = vld [vmem:[#allocation11 + $0x50] sm:$0xff]
    %v549 = vld [vmem:[#allocation11 + $0x58] sm:$0xff]
    %v550 = vld [vmem:[#allocation11 + $0x60] sm:$0xff]
    %v551 = vld [vmem:[#allocation11 + $0x68] sm:$0xff]
    %v552 = vld [vmem:[#allocation11 + $0x70] sm:$0xff]
    %v553 = vld [vmem:[#allocation11 + $0x78] sm:$0xff]
    %v554 = vld [vmem:[#allocation11 + $0x80] sm:$0xff]
    %v555 = vld [vmem:[#allocation11 + $0x88] sm:$0xff]
    %v556 = vld [vmem:[#allocation11 + $0x90] sm:$0xff]
    %v557 = vld [vmem:[#allocation11 + $0x98] sm:$0xff]
    %v558 = vld [vmem:[#allocation11 + $0xa0] sm:$0xff]
    %v559 = vld [vmem:[#allocation11 + $0xa8] sm:$0xff]
    %v560 = vld [vmem:[#allocation11 + $0xb0] sm:$0xff]
    %v561 = vld [vmem:[#allocation11 + $0xb8] sm:$0xff]
    %v562 = vld [vmem:[#allocation11 + $0xc0] sm:$0xff]
    %v563 = vld [vmem:[#allocation11 + $0xc8] sm:$0xff]
    %v564 = vld [vmem:[#allocation11 + $0xd0] sm:$0xff]
    %v565 = vld [vmem:[#allocation11 + $0xd8] sm:$0xff]
    %v566 = vld [vmem:[#allocation11 + $0xe0] sm:$0xff]
    %v567 = vld [vmem:[#allocation11 + $0xe8] sm:$0xff]
    %v568 = vld [vmem:[#allocation11 + $0xf0] sm:$0xff]
    %v569 = vld [vmem:[#allocation11 + $0xf8] sm:$0xff]
    %v570 = vld [vmem:[#allocation11 + $0x100] sm:$0xff]
    %v571 = vld [vmem:[#allocation11 + $0x108] sm:$0xff]
    %v572 = vld [vmem:[#allocation11 + $0x110] sm:$0xff]
    %v573 = vld [vmem:[#allocation11 + $0x118] sm:$0xff]
    %v574 = vld [vmem:[#allocation11 + $0x120] sm:$0xff]
    %v575 = vld [vmem:[#allocation11 + $0x128] sm:$0xff]
    %v576 = vld [vmem:[#allocation11 + $0x130] sm:$0xff]
    %v577 = vld [vmem:[#allocation11 + $0x138] sm:$0xff]
    %v578 = vld [vmem:[#allocation11 + $0x140] sm:$0xff]
    %v579 = vld [vmem:[#allocation11 + $0x148] sm:$0xff]
    %v580 = vld [vmem:[#allocation11 + $0x150] sm:$0xff]
    %v581 = vld [vmem:[#allocation11 + $0x158] sm:$0xff]
    %v582 = vld [vmem:[#allocation11 + $0x160] sm:$0xff]
    %v583 = vld [vmem:[#allocation11 + $0x168] sm:$0xff]
    %v584 = vld [vmem:[#allocation11 + $0x170] sm:$0xff]
    %v585 = vld [vmem:[#allocation11 + $0x178] sm:$0xff]
    %v586 = vld [vmem:[#allocation11 + $0x180] sm:$0xff]
    %v587 = vld [vmem:[#allocation11 + $0x188] sm:$0xff]
    %v588 = vld [vmem:[#allocation11 + $0x190] sm:$0xff]
    %v589 = vld [vmem:[#allocation11 + $0x198] sm:$0xff]
    %v590 = vld [vmem:[#allocation11 + $0x1a0] sm:$0xff]
    %v591 = vld [vmem:[#allocation11 + $0x1a8] sm:$0xff]
    %v592 = vld [vmem:[#allocation11 + $0x1b0] sm:$0xff]
    %v593 = vld [vmem:[#allocation11 + $0x1b8] sm:$0xff]
    %v594 = vld [vmem:[#allocation11 + $0x1c0] sm:$0xff]
    %v595 = vld [vmem:[#allocation11 + $0x1c8] sm:$0xff]
    %v596 = vld [vmem:[#allocation11 + $0x1d0] sm:$0xff]
    %v597 = vld [vmem:[#allocation11 + $0x1d8] sm:$0xff]
    %v598 = vld [vmem:[#allocation11 + $0x1e0] sm:$0xff]
    %v599 = vld [vmem:[#allocation11 + $0x1e8] sm:$0xff]
    %v600 = vld [vmem:[#allocation11 + $0x1f0] sm:$0xff]
    %v601 = vld [vmem:[#allocation11 + $0x1f8] sm:$0xff]
    %v602 = vld [vmem:[#allocation11 + $0x200] sm:$0xff]
    %v603 = vld [vmem:[#allocation11 + $0x208] sm:$0xff]
    %v604 = vld [vmem:[#allocation11 + $0x210] sm:$0xff]
    %v605 = vld [vmem:[#allocation11 + $0x218] sm:$0xff]
    %v606 = vld [vmem:[#allocation11 + $0x220] sm:$0xff]
    %v607 = vld [vmem:[#allocation11 + $0x228] sm:$0xff]
    %v608 = vld [vmem:[#allocation11 + $0x230] sm:$0xff]
    %v609 = vld [vmem:[#allocation11 + $0x238] sm:$0xff]
    %v610 = vld [vmem:[#allocation11 + $0x240] sm:$0xff]
    %v611 = vld [vmem:[#allocation11 + $0x248] sm:$0xff]
    %v612 = vld [vmem:[#allocation11 + $0x250] sm:$0xff]
    %v613 = vld [vmem:[#allocation11 + $0x258] sm:$0xff]
    %v614 = vld [vmem:[#allocation11 + $0x260] sm:$0xff]
    %v615 = vld [vmem:[#allocation11 + $0x268] sm:$0xff]
    %v616 = vld [vmem:[#allocation11 + $0x270] sm:$0xff]
    %v617 = vld [vmem:[#allocation11 + $0x278] sm:$0xff]
    %v618 = vld [vmem:[#allocation11 + $0x280] sm:$0xff]
    %v619 = vld [vmem:[#allocation11 + $0x288] sm:$0xff]
    %v620 = vld [vmem:[#allocation11 + $0x290] sm:$0xff]
    %v621 = vld [vmem:[#allocation11 + $0x298] sm:$0xff]
    %v622 = vld [vmem:[#allocation11 + $0x2a0] sm:$0xff]
    %v623 = vld [vmem:[#allocation11 + $0x2a8] sm:$0xff]
    %v624 = vld [vmem:[#allocation11 + $0x2b0] sm:$0xff]
    %v625 = vld [vmem:[#allocation11 + $0x2b8] sm:$0xff]
    %v626 = vld [vmem:[#allocation11 + $0x2c0] sm:$0xff]
    %v627 = vld [vmem:[#allocation11 + $0x2c8] sm:$0xff]
    %v628 = vld [vmem:[#allocation11 + $0x2d0] sm:$0xff]
    %v629 = vld [vmem:[#allocation11 + $0x2d8] sm:$0xff]
    %v630 = vld [vmem:[#allocation11 + $0x2e0] sm:$0xff]
    %v631 = vld [vmem:[#allocation11 + $0x2e8] sm:$0xff]
    %v632 = vld [vmem:[#allocation11 + $0x2f0] sm:$0xff]
    %v633 = vld [vmem:[#allocation11 + $0x2f8] sm:$0xff]
    %v634 = vld [vmem:[#allocation11 + $0x300] sm:$0xff]
    %v635 = vld [vmem:[#allocation11 + $0x308] sm:$0xff]
    %v636 = vld [vmem:[#allocation11 + $0x310] sm:$0xff]
    %v637 = vld [vmem:[#allocation11 + $0x318] sm:$0xff]
    %v638 = vld [vmem:[#allocation11 + $0x320] sm:$0xff]
    %v639 = vld [vmem:[#allocation11 + $0x328] sm:$0xff]
    %v640 = vld [vmem:[#allocation11 + $0x330] sm:$0xff]
    %v641 = vld [vmem:[#allocation11 + $0x338] sm:$0xff]
    %v642 = vld [vmem:[#allocation11 + $0x340] sm:$0xff]
    %v643 = vld [vmem:[#allocation11 + $0x348] sm:$0xff]
    %v644 = vld [vmem:[#allocation11 + $0x350] sm:$0xff]
    %v645 = vld [vmem:[#allocation11 + $0x358] sm:$0xff]
    %v646 = vld [vmem:[#allocation11 + $0x360] sm:$0xff]
    %v647 = vld [vmem:[#allocation11 + $0x368] sm:$0xff]
    %v648 = vld [vmem:[#allocation11 + $0x370] sm:$0xff]
    %v649 = vld [vmem:[#allocation11 + $0x378] sm:$0xff]
    %v650 = vld [vmem:[#allocation11 + $0x380] sm:$0xff]
    %v651 = vld [vmem:[#allocation11 + $0x388] sm:$0xff]
    %v652 = vld [vmem:[#allocation11 + $0x390] sm:$0xff]
    %v653 = vld [vmem:[#allocation11 + $0x398] sm:$0xff]
    %v654 = vld [vmem:[#allocation11 + $0x3a0] sm:$0xff]
    %v655 = vld [vmem:[#allocation11 + $0x3a8] sm:$0xff]
    %v656 = vld [vmem:[#allocation11 + $0x3b0] sm:$0xff]
    %v657 = vld [vmem:[#allocation11 + $0x3b8] sm:$0xff]
    %v658 = vld [vmem:[#allocation11 + $0x3c0] sm:$0xff]
    %v659 = vld [vmem:[#allocation11 + $0x3c8] sm:$0xff]
    %v660 = vld [vmem:[#allocation11 + $0x3d0] sm:$0xff]
    %v661 = vld [vmem:[#allocation11 + $0x3d8] sm:$0xff]
    %v662 = vld [vmem:[#allocation11 + $0x3e0] sm:$0xff]
    %v663 = vld [vmem:[#allocation11 + $0x3e8] sm:$0xff]
    %v664 = vld [vmem:[#allocation11 + $0x3f0] sm:$0xff]
    %v665 = vld [vmem:[#allocation11 + $0x3f8] sm:$0xff]
    %666 = vmatprep.subr.mxu0 %v599
    %667 = vmatpush1.msra.mxu0 %v598
    %668 = vmatprep.subr.mxu0 %v595
    %669 = vmatpush1.msra.mxu0 %v594
    %670 = vmatprep.subr.mxu0 %v591
    %671 = vmatpush1.msra.mxu0 %v590
    %672 = vmatprep.subr.mxu0 %v587
    %673 = vmatpush1.msra.mxu0 %v586
    %674 = vmatprep.subr.mxu0 %v583
    %675 = vmatpush1.msra.mxu0 %v582
    %676 = vmatprep.subr.mxu0 %v579
    %677 = vmatpush1.msra.mxu0 %v578
    %678 = vmatprep.subr.mxu0 %v575
    %679 = vmatpush1.msra.mxu0 %v574
    %680 = vmatprep.subr.mxu0 %v571
    %681 = vmatpush1.msra.mxu0 %v570
    %682 = vmatprep.subr.mxu0 %v567
    %683 = vmatpush1.msra.mxu0 %v566
    %684 = vmatprep.subr.mxu0 %v563
    %685 = vmatpush1.msra.mxu0 %v562
    %686 = vmatprep.subr.mxu0 %v559
    %687 = vmatpush1.msra.mxu0 %v558
    %688 = vmatprep.subr.mxu0 %v555
    %689 = vmatpush1.msra.mxu0 %v554
    %690 = vmatprep.subr.mxu0 %v551
    %691 = vmatpush1.msra.mxu0 %v550
    %692 = vmatprep.subr.mxu0 %v547
    %693 = vmatpush1.msra.mxu0 %v546
    %694 = vmatprep.subr.mxu0 %v543
    %695 = vmatpush1.msra.mxu0 %v542
    %696 = vmatprep.subr.mxu0 %v539
    %697 = vmatpush1.msra.mxu0 %v538
    %698 = vmatprep.subr.mxu0 %v663
    %699 = vmatpush2.msra.mxu0 %v662
    %700 = vmatprep.subr.mxu0 %v659
    %701 = vmatpush2.msra.mxu0 %v658
    %702 = vmatprep.subr.mxu0 %v655
    %703 = vmatpush2.msra.mxu0 %v654
    %704 = vmatprep.subr.mxu0 %v651
    %705 = vmatpush2.msra.mxu0 %v650
    %706 = vmatprep.subr.mxu0 %v647
    %707 = vmatpush2.msra.mxu0 %v646
    %708 = vmatprep.subr.mxu0 %v643
    %709 = vmatpush2.msra.mxu0 %v642
    %710 = vmatprep.subr.mxu0 %v639
    %711 = vmatpush2.msra.mxu0 %v638
    %712 = vmatprep.subr.mxu0 %v635
    %713 = vmatpush2.msra.mxu0 %v634
    %714 = vmatprep.subr.mxu0 %v631
    %715 = vmatpush2.msra.mxu0 %v630
    %716 = vmatprep.subr.mxu0 %v627
    %717 = vmatpush2.msra.mxu0 %v626
    %718 = vmatprep.subr.mxu0 %v623
    %719 = vmatpush2.msra.mxu0 %v622
    %720 = vmatprep.subr.mxu0 %v619
    %721 = vmatpush2.msra.mxu0 %v618
    %722 = vmatprep.subr.mxu0 %v615
    %723 = vmatpush2.msra.mxu0 %v614
    %724 = vmatprep.subr.mxu0 %v611
    %725 = vmatpush2.msra.mxu0 %v610
    %726 = vmatprep.subr.mxu0 %v607
    %727 = vmatpush2.msra.mxu0 %v606
    %728 = vmatprep.subr.mxu0 %v603
    %729 = vmatpush2.msra.mxu0 %v602
    %730 = vmatprep.mubr.f32.mxu0 %v537
    %731 = vmatmul.mubr.f32.gmra.mxu0 %v534
    %v732 = vpop.f32.mrf.mxu0
    %v733 = vadd.f32 %v125, %v732
    %v734 = vpop.f32.mrf.mxu0
    %v735 = vadd.f32 %v129, %v734
    %736 = vdwg.mxu0
    %737 = vmatprep.subr.mxu0 %v601
    %738 = vmatpush1.msra.mxu0 %v600
    %739 = vmatprep.subr.mxu0 %v597
    %740 = vmatpush1.msra.mxu0 %v596
    %741 = vmatprep.subr.mxu0 %v593
    %742 = vmatpush1.msra.mxu0 %v592
    %743 = vmatprep.subr.mxu0 %v589
    %744 = vmatpush1.msra.mxu0 %v588
    %745 = vmatprep.subr.mxu0 %v585
    %746 = vmatpush1.msra.mxu0 %v584
    %747 = vmatprep.subr.mxu0 %v581
    %748 = vmatpush1.msra.mxu0 %v580
    %749 = vmatprep.subr.mxu0 %v577
    %750 = vmatpush1.msra.mxu0 %v576
    %751 = vmatprep.subr.mxu0 %v573
    %752 = vmatpush1.msra.mxu0 %v572
    %753 = vmatprep.subr.mxu0 %v569
    %754 = vmatpush1.msra.mxu0 %v568
    %755 = vmatprep.subr.mxu0 %v565
    %756 = vmatpush1.msra.mxu0 %v564
    %757 = vmatprep.subr.mxu0 %v561
    %758 = vmatpush1.msra.mxu0 %v560
    %759 = vmatprep.subr.mxu0 %v557
    %760 = vmatpush1.msra.mxu0 %v556
    %761 = vmatprep.subr.mxu0 %v553
    %762 = vmatpush1.msra.mxu0 %v552
    %763 = vmatprep.subr.mxu0 %v549
    %764 = vmatpush1.msra.mxu0 %v548
    %765 = vmatprep.subr.mxu0 %v545
    %766 = vmatpush1.msra.mxu0 %v544
    %767 = vmatprep.subr.mxu0 %v541
    %768 = vmatpush1.msra.mxu0 %v540
    %769 = vmatprep.subr.mxu0 %v665
    %770 = vmatpush2.msra.mxu0 %v664
    %771 = vmatprep.subr.mxu0 %v661
    %772 = vmatpush2.msra.mxu0 %v660
    %773 = vmatprep.subr.mxu0 %v657
    %774 = vmatpush2.msra.mxu0 %v656
    %775 = vmatprep.subr.mxu0 %v653
    %776 = vmatpush2.msra.mxu0 %v652
    %777 = vmatprep.subr.mxu0 %v649
    %778 = vmatpush2.msra.mxu0 %v648
    %779 = vmatprep.subr.mxu0 %v645
    %780 = vmatpush2.msra.mxu0 %v644
    %781 = vmatprep.subr.mxu0 %v641
    %782 = vmatpush2.msra.mxu0 %v640
    %783 = vmatprep.subr.mxu0 %v637
    %784 = vmatpush2.msra.mxu0 %v636
    %785 = vmatprep.subr.mxu0 %v633
    %786 = vmatpush2.msra.mxu0 %v632
    %787 = vmatprep.subr.mxu0 %v629
    %788 = vmatpush2.msra.mxu0 %v628
    %789 = vmatprep.subr.mxu0 %v625
    %790 = vmatpush2.msra.mxu0 %v624
    %791 = vmatprep.subr.mxu0 %v621
    %792 = vmatpush2.msra.mxu0 %v620
    %793 = vmatprep.subr.mxu0 %v617
    %794 = vmatpush2.msra.mxu0 %v616
    %795 = vmatprep.subr.mxu0 %v613
    %796 = vmatpush2.msra.mxu0 %v612
    %797 = vmatprep.subr.mxu0 %v609
    %798 = vmatpush2.msra.mxu0 %v608
    %799 = vmatprep.subr.mxu0 %v605
    %800 = vmatpush2.msra.mxu0 %v604
    %801 = vmatprep.mubr.f32.mxu0 %v537
    %802 = vmatmul.mubr.f32.gmra.mxu0 %v534
    %v803 = vpop.f32.mrf.mxu0
    %v804 = vadd.f32 %v133, %v803
    %v805 = vpop.f32.mrf.mxu0
    %v806 = vadd.f32 %v137, %v805
    %807 = vdwg.mxu0
    %v808 = vxor.u32 %v733, 2147483648
    %v809 = vxor.u32 %v735, 2147483648
    %v810 = vmul.f32 %v808, 1.442695
    %v811 = vpow.pop %v810
    %v812 = vmul.f32 %v809, 1.442695
    %v813 = vpow.pop %v812
    %v814 = vadd.f32 %v811, 1.0
    %v815 = vadd.f32 %v813, 1.0
    %v816 = vrcp.pop %v814
    %v817 = vmul.f32 1.0, %v816
    %v818 = vrcp.pop %v815
    %v819 = vmul.f32 1.0, %v818
    %v820 = vmul.f32 %v817, %v806
    %v821 = vadd.f32 %v804, %v820
    %v822 = vtanh.pop %v821
    %v823 = vsub.f32 %v537, %v822
    %v824 = vmul.f32 %v819, %v823
    %v825 = vadd.f32 %v822, %v824
    %826 = vst [vmem:[%s536] sm:$0x3] %v825
    %v827 = vld [vmem:[#allocation2] sm:$0x3]
    %v828 = vld [vmem:[#allocation8] sm:$0xff]
    %v829 = vld [vmem:[#allocation8 + $0x8] sm:$0xff]
    %v830 = vld [vmem:[#allocation8 + $0x10] sm:$0xff]
    %v831 = vld [vmem:[#allocation8 + $0x18] sm:$0xff]
    %v832 = vld [vmem:[#allocation8 + $0x20] sm:$0xff]
    %v833 = vld [vmem:[#allocation8 + $0x28] sm:$0xff]
    %v834 = vld [vmem:[#allocation8 + $0x30] sm:$0xff]
    %v835 = vld [vmem:[#allocation8 + $0x38] sm:$0xff]
    %v836 = vld [vmem:[#allocation8 + $0x40] sm:$0xff]
    %v837 = vld [vmem:[#allocation8 + $0x48] sm:$0xff]
    %v838 = vld [vmem:[#allocation8 + $0x50] sm:$0xff]
    %v839 = vld [vmem:[#allocation8 + $0x58] sm:$0xff]
    %v840 = vld [vmem:[#allocation8 + $0x60] sm:$0xff]
    %v841 = vld [vmem:[#allocation8 + $0x68] sm:$0xff]
    %v842 = vld [vmem:[#allocation8 + $0x70] sm:$0xff]
    %v843 = vld [vmem:[#allocation8 + $0x78] sm:$0xff]
    %v844 = vld [vmem:[#allocation8 + $0x80] sm:$0xff]
    %v845 = vld [vmem:[#allocation8 + $0x88] sm:$0xff]
    %v846 = vld [vmem:[#allocation8 + $0x90] sm:$0xff]
    %v847 = vld [vmem:[#allocation8 + $0x98] sm:$0xff]
    %v848 = vld [vmem:[#allocation8 + $0xa0] sm:$0xff]
    %v849 = vld [vmem:[#allocation8 + $0xa8] sm:$0xff]
    %v850 = vld [vmem:[#allocation8 + $0xb0] sm:$0xff]
    %v851 = vld [vmem:[#allocation8 + $0xb8] sm:$0xff]
    %v852 = vld [vmem:[#allocation8 + $0xc0] sm:$0xff]
    %v853 = vld [vmem:[#allocation8 + $0xc8] sm:$0xff]
    %v854 = vld [vmem:[#allocation8 + $0xd0] sm:$0xff]
    %v855 = vld [vmem:[#allocation8 + $0xd8] sm:$0xff]
    %v856 = vld [vmem:[#allocation8 + $0xe0] sm:$0xff]
    %v857 = vld [vmem:[#allocation8 + $0xe8] sm:$0xff]
    %v858 = vld [vmem:[#allocation8 + $0xf0] sm:$0xff]
    %v859 = vld [vmem:[#allocation8 + $0xf8] sm:$0xff]
    %v860 = vld [vmem:[#allocation8 + $0x100] sm:$0xff]
    %v861 = vld [vmem:[#allocation8 + $0x108] sm:$0xff]
    %v862 = vld [vmem:[#allocation8 + $0x110] sm:$0xff]
    %v863 = vld [vmem:[#allocation8 + $0x118] sm:$0xff]
    %v864 = vld [vmem:[#allocation8 + $0x120] sm:$0xff]
    %v865 = vld [vmem:[#allocation8 + $0x128] sm:$0xff]
    %v866 = vld [vmem:[#allocation8 + $0x130] sm:$0xff]
    %v867 = vld [vmem:[#allocation8 + $0x138] sm:$0xff]
    %v868 = vld [vmem:[#allocation8 + $0x140] sm:$0xff]
    %v869 = vld [vmem:[#allocation8 + $0x148] sm:$0xff]
    %v870 = vld [vmem:[#allocation8 + $0x150] sm:$0xff]
    %v871 = vld [vmem:[#allocation8 + $0x158] sm:$0xff]
    %v872 = vld [vmem:[#allocation8 + $0x160] sm:$0xff]
    %v873 = vld [vmem:[#allocation8 + $0x168] sm:$0xff]
    %v874 = vld [vmem:[#allocation8 + $0x170] sm:$0xff]
    %v875 = vld [vmem:[#allocation8 + $0x178] sm:$0xff]
    %876 = vmatprep.subr.mxu0 %v874
    %877 = vmatpush1.msra.mxu0 %v873
    %878 = vmatprep.subr.mxu0 %v871
    %879 = vmatpush1.msra.mxu0 %v870
    %880 = vmatprep.subr.mxu0 %v868
    %881 = vmatpush1.msra.mxu0 %v867
    %882 = vmatprep.subr.mxu0 %v865
    %883 = vmatpush1.msra.mxu0 %v864
    %884 = vmatprep.subr.mxu0 %v862
    %885 = vmatpush1.msra.mxu0 %v861
    %886 = vmatprep.subr.mxu0 %v859
    %887 = vmatpush1.msra.mxu0 %v858
    %888 = vmatprep.subr.mxu0 %v856
    %889 = vmatpush1.msra.mxu0 %v855
    %890 = vmatprep.subr.mxu0 %v853
    %891 = vmatpush1.msra.mxu0 %v852
    %892 = vmatprep.subr.mxu0 %v850
    %893 = vmatpush1.msra.mxu0 %v849
    %894 = vmatprep.subr.mxu0 %v847
    %895 = vmatpush1.msra.mxu0 %v846
    %896 = vmatprep.subr.mxu0 %v844
    %897 = vmatpush1.msra.mxu0 %v843
    %898 = vmatprep.subr.mxu0 %v841
    %899 = vmatpush1.msra.mxu0 %v840
    %900 = vmatprep.subr.mxu0 %v838
    %901 = vmatpush1.msra.mxu0 %v837
    %902 = vmatprep.subr.mxu0 %v835
    %903 = vmatpush1.msra.mxu0 %v834
    %904 = vmatprep.subr.mxu0 %v832
    %905 = vmatpush1.msra.mxu0 %v831
    %906 = vmatprep.subr.mxu0 %v829
    %907 = vmatpush1.msra.mxu0 %v828
    %908 = vmatprep.subr.mxu0 0.0
    %909 = vmatpush2.msra.mxu0 0.0
    %910 = vmatprep.subr.mxu0 0.0
    %911 = vmatpush2.msra.mxu0 0.0
    %912 = vmatprep.subr.mxu0 0.0
    %913 = vmatpush2.msra.mxu0 0.0
    %914 = vmatprep.subr.mxu0 0.0
    %915 = vmatpush2.msra.mxu0 0.0
    %916 = vmatprep.subr.mxu0 0.0
    %917 = vmatpush2.msra.mxu0 0.0
    %918 = vmatprep.subr.mxu0 0.0
    %919 = vmatpush2.msra.mxu0 0.0
    %920 = vmatprep.subr.mxu0 0.0
    %921 = vmatpush2.msra.mxu0 0.0
    %922 = vmatprep.subr.mxu0 0.0
    %923 = vmatpush2.msra.mxu0 0.0
    %924 = vmatprep.subr.mxu0 0.0
    %925 = vmatpush2.msra.mxu0 0.0
    %926 = vmatprep.subr.mxu0 0.0
    %927 = vmatpush2.msra.mxu0 0.0
    %928 = vmatprep.subr.mxu0 0.0
    %929 = vmatpush2.msra.mxu0 0.0
    %930 = vmatprep.subr.mxu0 0.0
    %931 = vmatpush2.msra.mxu0 0.0
    %932 = vmatprep.subr.mxu0 0.0
    %933 = vmatpush2.msra.mxu0 0.0
    %934 = vmatprep.subr.mxu0 0.0
    %935 = vmatpush2.msra.mxu0 0.0
    %936 = vmatprep.subr.mxu0 0.0
    %937 = vmatpush2.msra.mxu0 0.0
    %938 = vmatprep.subr.mxu0 0.0
    %939 = vmatpush2.msra.mxu0 0.0
    %940 = vmatprep.mubr.f32.mxu0 0.0
    %941 = vmatmul.mubr.f32.gmra.mxu0 %v827
    %v942 = vpop.f32.mrf.mxu0
    %v943 = vadd.f32 %v108, %v942
    %v944 = vpop.f32.mrf.mxu0
    %v945 = vadd.f32 %v112, %v944
    %946 = vdwg.mxu0
    %947 = vmatprep.subr.mxu0 0.0
    %948 = vmatpush1.msra.mxu0 %v875
    %949 = vmatprep.subr.mxu0 0.0
    %950 = vmatpush1.msra.mxu0 %v872
    %951 = vmatprep.subr.mxu0 0.0
    %952 = vmatpush1.msra.mxu0 %v869
    %953 = vmatprep.subr.mxu0 0.0
    %954 = vmatpush1.msra.mxu0 %v866
    %955 = vmatprep.subr.mxu0 0.0
    %956 = vmatpush1.msra.mxu0 %v863
    %957 = vmatprep.subr.mxu0 0.0
    %958 = vmatpush1.msra.mxu0 %v860
    %959 = vmatprep.subr.mxu0 0.0
    %960 = vmatpush1.msra.mxu0 %v857
    %961 = vmatprep.subr.mxu0 0.0
    %962 = vmatpush1.msra.mxu0 %v854
    %963 = vmatprep.subr.mxu0 0.0
    %964 = vmatpush1.msra.mxu0 %v851
    %965 = vmatprep.subr.mxu0 0.0
    %966 = vmatpush1.msra.mxu0 %v848
    %967 = vmatprep.subr.mxu0 0.0
    %968 = vmatpush1.msra.mxu0 %v845
    %969 = vmatprep.subr.mxu0 0.0
    %970 = vmatpush1.msra.mxu0 %v842
    %971 = vmatprep.subr.mxu0 0.0
    %972 = vmatpush1.msra.mxu0 %v839
    %973 = vmatprep.subr.mxu0 0.0
    %974 = vmatpush1.msra.mxu0 %v836
    %975 = vmatprep.subr.mxu0 0.0
    %976 = vmatpush1.msra.mxu0 %v833
    %977 = vmatprep.subr.mxu0 0.0
    %978 = vmatpush1.msra.mxu0 %v830
    %979 = vmatprep.subr.mxu0 0.0
    %980 = vmatpush2.msra.mxu0 0.0
    %981 = vmatprep.subr.mxu0 0.0
    %982 = vmatpush2.msra.mxu0 0.0
    %983 = vmatprep.subr.mxu0 0.0
    %984 = vmatpush2.msra.mxu0 0.0
    %985 = vmatprep.subr.mxu0 0.0
    %986 = vmatpush2.msra.mxu0 0.0
    %987 = vmatprep.subr.mxu0 0.0
    %988 = vmatpush2.msra.mxu0 0.0
    %989 = vmatprep.subr.mxu0 0.0
    %990 = vmatpush2.msra.mxu0 0.0
    %991 = vmatprep.subr.mxu0 0.0
    %992 = vmatpush2.msra.mxu0 0.0
    %993 = vmatprep.subr.mxu0 0.0
    %994 = vmatpush2.msra.mxu0 0.0
    %995 = vmatprep.subr.mxu0 0.0
    %996 = vmatpush2.msra.mxu0 0.0
    %997 = vmatprep.subr.mxu0 0.0
    %998 = vmatpush2.msra.mxu0 0.0
    %999 = vmatprep.subr.mxu0 0.0
    %1000 = vmatpush2.msra.mxu0 0.0
    %1001 = vmatprep.subr.mxu0 0.0
    %1002 = vmatpush2.msra.mxu0 0.0
    %1003 = vmatprep.subr.mxu0 0.0
    %1004 = vmatpush2.msra.mxu0 0.0
    %1005 = vmatprep.subr.mxu0 0.0
    %1006 = vmatpush2.msra.mxu0 0.0
    %1007 = vmatprep.subr.mxu0 0.0
    %1008 = vmatpush2.msra.mxu0 0.0
    %1009 = vmatprep.subr.mxu0 0.0
    %1010 = vmatpush2.msra.mxu0 0.0
    %1011 = vmatprep.mubr.f32.mxu0 0.0
    %1012 = vmatmul.mubr.f32.gmra.mxu0 %v827
    %v1013 = vpop.f32.mrf.mxu0
    %v1014 = vadd.f32 %v116, %v1013
    %v1015 = vpop.f32.mrf.mxu0
    %1016 = vdwg.mxu0
    %v1019 = vrot.slane %v943, 6
    %v1020 = vrot.slane %v945, 6
    %v1023 = vadd.f32 %v240, %v1019
    %v1024 = vadd.f32 %v242, %v1020
    %v1025 = vxor.u32 %v1023, 2147483648
    %v1026 = vxor.u32 %v1024, 2147483648
    %v1027 = vmul.f32 %v1025, 1.442695
    %v1028 = vpow.pop %v1027
    %v1029 = vmul.f32 %v1026, 1.442695
    %v1030 = vpow.pop %v1029
    %v1031 = vadd.f32 %v1028, 1.0
    %v1032 = vadd.f32 %v1030, 1.0
    %v1033 = vrcp.pop %v1031
    %v1034 = vmul.f32 1.0, %v1033
    %v1035 = vrcp.pop %v1032
    %v1036 = vmul.f32 1.0, %v1035
    %v1038 = vrot.slane %v1014, 6
    %v1040 = vmul.f32 %v1034, %v1038
    %v1041 = vadd.f32 %v317, %v1040
    %v1042 = vtanh.pop %v1041
    %v1044 = vrot.slane %v1042, 2
    %v1046 = vsub.f32 %v827, %v1044
    %v1048 = vrot.slane %v1046, 6
    %v1050 = vmul.f32 %v1036, %v1048
    %v1051 = vadd.f32 %v1042, %v1050
    %1052 = vst [vmem:[#allocation2 - $0x2] sm:$0xc] %v1051
    %v1053 = vld [vmem:[%s536] sm:$0x3]
    %v1055 = vrot.slane %v1053, 6
    %v1056 = vld [vmem:[#allocation11] sm:$0xff]
    %v1057 = vld [vmem:[#allocation11 + $0x8] sm:$0xff]
    %v1058 = vld [vmem:[#allocation11 + $0x10] sm:$0xff]
    %v1059 = vld [vmem:[#allocation11 + $0x18] sm:$0xff]
    %v1060 = vld [vmem:[#allocation11 + $0x20] sm:$0xff]
    %v1061 = vld [vmem:[#allocation11 + $0x28] sm:$0xff]
    %v1062 = vld [vmem:[#allocation11 + $0x30] sm:$0xff]
    %v1063 = vld [vmem:[#allocation11 + $0x38] sm:$0xff]
    %v1064 = vld [vmem:[#allocation11 + $0x40] sm:$0xff]
    %v1065 = vld [vmem:[#allocation11 + $0x48] sm:$0xff]
    %v1066 = vld [vmem:[#allocation11 + $0x50] sm:$0xff]
    %v1067 = vld [vmem:[#allocation11 + $0x58] sm:$0xff]
    %v1068 = vld [vmem:[#allocation11 + $0x60] sm:$0xff]
    %v1069 = vld [vmem:[#allocation11 + $0x68] sm:$0xff]
    %v1070 = vld [vmem:[#allocation11 + $0x70] sm:$0xff]
    %v1071 = vld [vmem:[#allocation11 + $0x78] sm:$0xff]
    %v1072 = vld [vmem:[#allocation11 + $0x80] sm:$0xff]
    %v1073 = vld [vmem:[#allocation11 + $0x88] sm:$0xff]
    %v1074 = vld [vmem:[#allocation11 + $0x90] sm:$0xff]
    %v1075 = vld [vmem:[#allocation11 + $0x98] sm:$0xff]
    %v1076 = vld [vmem:[#allocation11 + $0xa0] sm:$0xff]
    %v1077 = vld [vmem:[#allocation11 + $0xa8] sm:$0xff]
    %v1078 = vld [vmem:[#allocation11 + $0xb0] sm:$0xff]
    %v1079 = vld [vmem:[#allocation11 + $0xb8] sm:$0xff]
    %v1080 = vld [vmem:[#allocation11 + $0xc0] sm:$0xff]
    %v1081 = vld [vmem:[#allocation11 + $0xc8] sm:$0xff]
    %v1082 = vld [vmem:[#allocation11 + $0xd0] sm:$0xff]
    %v1083 = vld [vmem:[#allocation11 + $0xd8] sm:$0xff]
    %v1084 = vld [vmem:[#allocation11 + $0xe0] sm:$0xff]
    %v1085 = vld [vmem:[#allocation11 + $0xe8] sm:$0xff]
    %v1086 = vld [vmem:[#allocation11 + $0xf0] sm:$0xff]
    %v1087 = vld [vmem:[#allocation11 + $0xf8] sm:$0xff]
    %v1088 = vld [vmem:[#allocation11 + $0x100] sm:$0xff]
    %v1089 = vld [vmem:[#allocation11 + $0x108] sm:$0xff]
    %v1090 = vld [vmem:[#allocation11 + $0x110] sm:$0xff]
    %v1091 = vld [vmem:[#allocation11 + $0x118] sm:$0xff]
    %v1092 = vld [vmem:[#allocation11 + $0x120] sm:$0xff]
    %v1093 = vld [vmem:[#allocation11 + $0x128] sm:$0xff]
    %v1094 = vld [vmem:[#allocation11 + $0x130] sm:$0xff]
    %v1095 = vld [vmem:[#allocation11 + $0x138] sm:$0xff]
    %v1096 = vld [vmem:[#allocation11 + $0x140] sm:$0xff]
    %v1097 = vld [vmem:[#allocation11 + $0x148] sm:$0xff]
    %v1098 = vld [vmem:[#allocation11 + $0x150] sm:$0xff]
    %v1099 = vld [vmem:[#allocation11 + $0x158] sm:$0xff]
    %v1100 = vld [vmem:[#allocation11 + $0x160] sm:$0xff]
    %v1101 = vld [vmem:[#allocation11 + $0x168] sm:$0xff]
    %v1102 = vld [vmem:[#allocation11 + $0x170] sm:$0xff]
    %v1103 = vld [vmem:[#allocation11 + $0x178] sm:$0xff]
    %v1104 = vld [vmem:[#allocation11 + $0x180] sm:$0xff]
    %v1105 = vld [vmem:[#allocation11 + $0x188] sm:$0xff]
    %v1106 = vld [vmem:[#allocation11 + $0x190] sm:$0xff]
    %v1107 = vld [vmem:[#allocation11 + $0x198] sm:$0xff]
    %v1108 = vld [vmem:[#allocation11 + $0x1a0] sm:$0xff]
    %v1109 = vld [vmem:[#allocation11 + $0x1a8] sm:$0xff]
    %v1110 = vld [vmem:[#allocation11 + $0x1b0] sm:$0xff]
    %v1111 = vld [vmem:[#allocation11 + $0x1b8] sm:$0xff]
    %v1112 = vld [vmem:[#allocation11 + $0x1c0] sm:$0xff]
    %v1113 = vld [vmem:[#allocation11 + $0x1c8] sm:$0xff]
    %v1114 = vld [vmem:[#allocation11 + $0x1d0] sm:$0xff]
    %v1115 = vld [vmem:[#allocation11 + $0x1d8] sm:$0xff]
    %v1116 = vld [vmem:[#allocation11 + $0x1e0] sm:$0xff]
    %v1117 = vld [vmem:[#allocation11 + $0x1e8] sm:$0xff]
    %v1118 = vld [vmem:[#allocation11 + $0x1f0] sm:$0xff]
    %v1119 = vld [vmem:[#allocation11 + $0x1f8] sm:$0xff]
    %v1120 = vld [vmem:[#allocation11 + $0x200] sm:$0xff]
    %v1121 = vld [vmem:[#allocation11 + $0x208] sm:$0xff]
    %v1122 = vld [vmem:[#allocation11 + $0x210] sm:$0xff]
    %v1123 = vld [vmem:[#allocation11 + $0x218] sm:$0xff]
    %v1124 = vld [vmem:[#allocation11 + $0x220] sm:$0xff]
    %v1125 = vld [vmem:[#allocation11 + $0x228] sm:$0xff]
    %v1126 = vld [vmem:[#allocation11 + $0x230] sm:$0xff]
    %v1127 = vld [vmem:[#allocation11 + $0x238] sm:$0xff]
    %v1128 = vld [vmem:[#allocation11 + $0x240] sm:$0xff]
    %v1129 = vld [vmem:[#allocation11 + $0x248] sm:$0xff]
    %v1130 = vld [vmem:[#allocation11 + $0x250] sm:$0xff]
    %v1131 = vld [vmem:[#allocation11 + $0x258] sm:$0xff]
    %v1132 = vld [vmem:[#allocation11 + $0x260] sm:$0xff]
    %v1133 = vld [vmem:[#allocation11 + $0x268] sm:$0xff]
    %v1134 = vld [vmem:[#allocation11 + $0x270] sm:$0xff]
    %v1135 = vld [vmem:[#allocation11 + $0x278] sm:$0xff]
    %v1136 = vld [vmem:[#allocation11 + $0x280] sm:$0xff]
    %v1137 = vld [vmem:[#allocation11 + $0x288] sm:$0xff]
    %v1138 = vld [vmem:[#allocation11 + $0x290] sm:$0xff]
    %v1139 = vld [vmem:[#allocation11 + $0x298] sm:$0xff]
    %v1140 = vld [vmem:[#allocation11 + $0x2a0] sm:$0xff]
    %v1141 = vld [vmem:[#allocation11 + $0x2a8] sm:$0xff]
    %v1142 = vld [vmem:[#allocation11 + $0x2b0] sm:$0xff]
    %v1143 = vld [vmem:[#allocation11 + $0x2b8] sm:$0xff]
    %v1144 = vld [vmem:[#allocation11 + $0x2c0] sm:$0xff]
    %v1145 = vld [vmem:[#allocation11 + $0x2c8] sm:$0xff]
    %v1146 = vld [vmem:[#allocation11 + $0x2d0] sm:$0xff]
    %v1147 = vld [vmem:[#allocation11 + $0x2d8] sm:$0xff]
    %v1148 = vld [vmem:[#allocation11 + $0x2e0] sm:$0xff]
    %v1149 = vld [vmem:[#allocation11 + $0x2e8] sm:$0xff]
    %v1150 = vld [vmem:[#allocation11 + $0x2f0] sm:$0xff]
    %v1151 = vld [vmem:[#allocation11 + $0x2f8] sm:$0xff]
    %v1152 = vld [vmem:[#allocation11 + $0x300] sm:$0xff]
    %v1153 = vld [vmem:[#allocation11 + $0x308] sm:$0xff]
    %v1154 = vld [vmem:[#allocation11 + $0x310] sm:$0xff]
    %v1155 = vld [vmem:[#allocation11 + $0x318] sm:$0xff]
    %v1156 = vld [vmem:[#allocation11 + $0x320] sm:$0xff]
    %v1157 = vld [vmem:[#allocation11 + $0x328] sm:$0xff]
    %v1158 = vld [vmem:[#allocation11 + $0x330] sm:$0xff]
    %v1159 = vld [vmem:[#allocation11 + $0x338] sm:$0xff]
    %v1160 = vld [vmem:[#allocation11 + $0x340] sm:$0xff]
    %v1161 = vld [vmem:[#allocation11 + $0x348] sm:$0xff]
    %v1162 = vld [vmem:[#allocation11 + $0x350] sm:$0xff]
    %v1163 = vld [vmem:[#allocation11 + $0x358] sm:$0xff]
    %v1164 = vld [vmem:[#allocation11 + $0x360] sm:$0xff]
    %v1165 = vld [vmem:[#allocation11 + $0x368] sm:$0xff]
    %v1166 = vld [vmem:[#allocation11 + $0x370] sm:$0xff]
    %v1167 = vld [vmem:[#allocation11 + $0x378] sm:$0xff]
    %v1168 = vld [vmem:[#allocation11 + $0x380] sm:$0xff]
    %v1169 = vld [vmem:[#allocation11 + $0x388] sm:$0xff]
    %v1170 = vld [vmem:[#allocation11 + $0x390] sm:$0xff]
    %v1171 = vld [vmem:[#allocation11 + $0x398] sm:$0xff]
    %v1172 = vld [vmem:[#allocation11 + $0x3a0] sm:$0xff]
    %v1173 = vld [vmem:[#allocation11 + $0x3a8] sm:$0xff]
    %v1174 = vld [vmem:[#allocation11 + $0x3b0] sm:$0xff]
    %v1175 = vld [vmem:[#allocation11 + $0x3b8] sm:$0xff]
    %v1176 = vld [vmem:[#allocation11 + $0x3c0] sm:$0xff]
    %v1177 = vld [vmem:[#allocation11 + $0x3c8] sm:$0xff]
    %v1178 = vld [vmem:[#allocation11 + $0x3d0] sm:$0xff]
    %v1179 = vld [vmem:[#allocation11 + $0x3d8] sm:$0xff]
    %v1180 = vld [vmem:[#allocation11 + $0x3e0] sm:$0xff]
    %v1181 = vld [vmem:[#allocation11 + $0x3e8] sm:$0xff]
    %v1182 = vld [vmem:[#allocation11 + $0x3f0] sm:$0xff]
    %v1183 = vld [vmem:[#allocation11 + $0x3f8] sm:$0xff]
    %v1185 = vrot.slane %v1051, 2
    %v1186 = vrot.slane %v1055, 2
    %1189 = vmatprep.subr.mxu0 %v1117
    %1190 = vmatpush1.msra.mxu0 %v1116
    %1191 = vmatprep.subr.mxu0 %v1113
    %1192 = vmatpush1.msra.mxu0 %v1112
    %1193 = vmatprep.subr.mxu0 %v1109
    %1194 = vmatpush1.msra.mxu0 %v1108
    %1195 = vmatprep.subr.mxu0 %v1105
    %1196 = vmatpush1.msra.mxu0 %v1104
    %1197 = vmatprep.subr.mxu0 %v1101
    %1198 = vmatpush1.msra.mxu0 %v1100
    %1199 = vmatprep.subr.mxu0 %v1097
    %1200 = vmatpush1.msra.mxu0 %v1096
    %1201 = vmatprep.subr.mxu0 %v1093
    %1202 = vmatpush1.msra.mxu0 %v1092
    %1203 = vmatprep.subr.mxu0 %v1089
    %1204 = vmatpush1.msra.mxu0 %v1088
    %1205 = vmatprep.subr.mxu0 %v1085
    %1206 = vmatpush1.msra.mxu0 %v1084
    %1207 = vmatprep.subr.mxu0 %v1081
    %1208 = vmatpush1.msra.mxu0 %v1080
    %1209 = vmatprep.subr.mxu0 %v1077
    %1210 = vmatpush1.msra.mxu0 %v1076
    %1211 = vmatprep.subr.mxu0 %v1073
    %1212 = vmatpush1.msra.mxu0 %v1072
    %1213 = vmatprep.subr.mxu0 %v1069
    %1214 = vmatpush1.msra.mxu0 %v1068
    %1215 = vmatprep.subr.mxu0 %v1065
    %1216 = vmatpush1.msra.mxu0 %v1064
    %1217 = vmatprep.subr.mxu0 %v1061
    %1218 = vmatpush1.msra.mxu0 %v1060
    %1219 = vmatprep.subr.mxu0 %v1057
    %1220 = vmatpush1.msra.mxu0 %v1056
    %1221 = vmatprep.subr.mxu0 %v1181
    %1222 = vmatpush2.msra.mxu0 %v1180
    %1223 = vmatprep.subr.mxu0 %v1177
    %1224 = vmatpush2.msra.mxu0 %v1176
    %1225 = vmatprep.subr.mxu0 %v1173
    %1226 = vmatpush2.msra.mxu0 %v1172
    %1227 = vmatprep.subr.mxu0 %v1169
    %1228 = vmatpush2.msra.mxu0 %v1168
    %1229 = vmatprep.subr.mxu0 %v1165
    %1230 = vmatpush2.msra.mxu0 %v1164
    %1231 = vmatprep.subr.mxu0 %v1161
    %1232 = vmatpush2.msra.mxu0 %v1160
    %1233 = vmatprep.subr.mxu0 %v1157
    %1234 = vmatpush2.msra.mxu0 %v1156
    %1235 = vmatprep.subr.mxu0 %v1153
    %1236 = vmatpush2.msra.mxu0 %v1152
    %1237 = vmatprep.subr.mxu0 %v1149
    %1238 = vmatpush2.msra.mxu0 %v1148
    %1239 = vmatprep.subr.mxu0 %v1145
    %1240 = vmatpush2.msra.mxu0 %v1144
    %1241 = vmatprep.subr.mxu0 %v1141
    %1242 = vmatpush2.msra.mxu0 %v1140
    %1243 = vmatprep.subr.mxu0 %v1137
    %1244 = vmatpush2.msra.mxu0 %v1136
    %1245 = vmatprep.subr.mxu0 %v1133
    %1246 = vmatpush2.msra.mxu0 %v1132
    %1247 = vmatprep.subr.mxu0 %v1129
    %1248 = vmatpush2.msra.mxu0 %v1128
    %1249 = vmatprep.subr.mxu0 %v1125
    %1250 = vmatpush2.msra.mxu0 %v1124
    %1251 = vmatprep.subr.mxu0 %v1121
    %1252 = vmatpush2.msra.mxu0 %v1120
    %1253 = vmatprep.mubr.f32.mxu0 %v1186
    %1254 = vmatmul.mubr.f32.gmra.mxu0 %v1185
    %v1255 = vpop.f32.mrf.mxu0
    %v1256 = vadd.f32 %v125, %v1255
    %v1257 = vpop.f32.mrf.mxu0
    %v1258 = vadd.f32 %v129, %v1257
    %1259 = vdwg.mxu0
    %1260 = vmatprep.subr.mxu0 %v1119
    %1261 = vmatpush1.msra.mxu0 %v1118
    %1262 = vmatprep.subr.mxu0 %v1115
    %1263 = vmatpush1.msra.mxu0 %v1114
    %1264 = vmatprep.subr.mxu0 %v1111
    %1265 = vmatpush1.msra.mxu0 %v1110
    %1266 = vmatprep.subr.mxu0 %v1107
    %1267 = vmatpush1.msra.mxu0 %v1106
    %1268 = vmatprep.subr.mxu0 %v1103
    %1269 = vmatpush1.msra.mxu0 %v1102
    %1270 = vmatprep.subr.mxu0 %v1099
    %1271 = vmatpush1.msra.mxu0 %v1098
    %1272 = vmatprep.subr.mxu0 %v1095
    %1273 = vmatpush1.msra.mxu0 %v1094
    %1274 = vmatprep.subr.mxu0 %v1091
    %1275 = vmatpush1.msra.mxu0 %v1090
    %1276 = vmatprep.subr.mxu0 %v1087
    %1277 = vmatpush1.msra.mxu0 %v1086
    %1278 = vmatprep.subr.mxu0 %v1083
    %1279 = vmatpush1.msra.mxu0 %v1082
    %1280 = vmatprep.subr.mxu0 %v1079
    %1281 = vmatpush1.msra.mxu0 %v1078
    %1282 = vmatprep.subr.mxu0 %v1075
    %1283 = vmatpush1.msra.mxu0 %v1074
    %1284 = vmatprep.subr.mxu0 %v1071
    %1285 = vmatpush1.msra.mxu0 %v1070
    %1286 = vmatprep.subr.mxu0 %v1067
    %1287 = vmatpush1.msra.mxu0 %v1066
    %1288 = vmatprep.subr.mxu0 %v1063
    %1289 = vmatpush1.msra.mxu0 %v1062
    %1290 = vmatprep.subr.mxu0 %v1059
    %1291 = vmatpush1.msra.mxu0 %v1058
    %1292 = vmatprep.subr.mxu0 %v1183
    %1293 = vmatpush2.msra.mxu0 %v1182
    %1294 = vmatprep.subr.mxu0 %v1179
    %1295 = vmatpush2.msra.mxu0 %v1178
    %1296 = vmatprep.subr.mxu0 %v1175
    %1297 = vmatpush2.msra.mxu0 %v1174
    %1298 = vmatprep.subr.mxu0 %v1171
    %1299 = vmatpush2.msra.mxu0 %v1170
    %1300 = vmatprep.subr.mxu0 %v1167
    %1301 = vmatpush2.msra.mxu0 %v1166
    %1302 = vmatprep.subr.mxu0 %v1163
    %1303 = vmatpush2.msra.mxu0 %v1162
    %1304 = vmatprep.subr.mxu0 %v1159
    %1305 = vmatpush2.msra.mxu0 %v1158
    %1306 = vmatprep.subr.mxu0 %v1155
    %1307 = vmatpush2.msra.mxu0 %v1154
    %1308 = vmatprep.subr.mxu0 %v1151
    %1309 = vmatpush2.msra.mxu0 %v1150
    %1310 = vmatprep.subr.mxu0 %v1147
    %1311 = vmatpush2.msra.mxu0 %v1146
    %1312 = vmatprep.subr.mxu0 %v1143
    %1313 = vmatpush2.msra.mxu0 %v1142
    %1314 = vmatprep.subr.mxu0 %v1139
    %1315 = vmatpush2.msra.mxu0 %v1138
    %1316 = vmatprep.subr.mxu0 %v1135
    %1317 = vmatpush2.msra.mxu0 %v1134
    %1318 = vmatprep.subr.mxu0 %v1131
    %1319 = vmatpush2.msra.mxu0 %v1130
    %1320 = vmatprep.subr.mxu0 %v1127
    %1321 = vmatpush2.msra.mxu0 %v1126
    %1322 = vmatprep.subr.mxu0 %v1123
    %1323 = vmatpush2.msra.mxu0 %v1122
    %1324 = vmatprep.mubr.f32.mxu0 %v1186
    %1325 = vmatmul.mubr.f32.gmra.mxu0 %v1185
    %v1326 = vpop.f32.mrf.mxu0
    %v1327 = vadd.f32 %v133, %v1326
    %v1328 = vpop.f32.mrf.mxu0
    %v1329 = vadd.f32 %v137, %v1328
    %1330 = vdwg.mxu0
    %v1331 = vxor.u32 %v1256, 2147483648
    %v1332 = vxor.u32 %v1258, 2147483648
    %v1333 = vmul.f32 %v1331, 1.442695
    %v1334 = vpow.pop %v1333
    %v1335 = vmul.f32 %v1332, 1.442695
    %v1336 = vpow.pop %v1335
    %v1337 = vadd.f32 %v1334, 1.0
    %v1338 = vadd.f32 %v1336, 1.0
    %v1339 = vrcp.pop %v1337
    %v1340 = vmul.f32 1.0, %v1339
    %v1341 = vrcp.pop %v1338
    %v1342 = vmul.f32 1.0, %v1341
    %v1343 = vmul.f32 %v1340, %v1329
    %v1344 = vadd.f32 %v1327, %v1343
    %v1345 = vtanh.pop %v1344
    %v1346 = vsub.f32 %v1053, %v1345
    %v1347 = vmul.f32 %v1342, %v1346
    %v1348 = vadd.f32 %v1345, %v1347
    %1349 = vst [vmem:[%s536] sm:$0x3] %v1348
    %v1350 = vld [vmem:[#allocation2] sm:$0x3]
    %v1351 = vld [vmem:[#allocation8] sm:$0xff]
    %v1352 = vld [vmem:[#allocation8 + $0x8] sm:$0xff]
    %v1353 = vld [vmem:[#allocation8 + $0x10] sm:$0xff]
    %v1354 = vld [vmem:[#allocation8 + $0x18] sm:$0xff]
    %v1355 = vld [vmem:[#allocation8 + $0x20] sm:$0xff]
    %v1356 = vld [vmem:[#allocation8 + $0x28] sm:$0xff]
    %v1357 = vld [vmem:[#allocation8 + $0x30] sm:$0xff]
    %v1358 = vld [vmem:[#allocation8 + $0x38] sm:$0xff]
    %v1359 = vld [vmem:[#allocation8 + $0x40] sm:$0xff]
    %v1360 = vld [vmem:[#allocation8 + $0x48] sm:$0xff]
    %v1361 = vld [vmem:[#allocation8 + $0x50] sm:$0xff]
    %v1362 = vld [vmem:[#allocation8 + $0x58] sm:$0xff]
    %v1363 = vld [vmem:[#allocation8 + $0x60] sm:$0xff]
    %v1364 = vld [vmem:[#allocation8 + $0x68] sm:$0xff]
    %v1365 = vld [vmem:[#allocation8 + $0x70] sm:$0xff]
    %v1366 = vld [vmem:[#allocation8 + $0x78] sm:$0xff]
    %v1367 = vld [vmem:[#allocation8 + $0x80] sm:$0xff]
    %v1368 = vld [vmem:[#allocation8 + $0x88] sm:$0xff]
    %v1369 = vld [vmem:[#allocation8 + $0x90] sm:$0xff]
    %v1370 = vld [vmem:[#allocation8 + $0x98] sm:$0xff]
    %v1371 = vld [vmem:[#allocation8 + $0xa0] sm:$0xff]
    %v1372 = vld [vmem:[#allocation8 + $0xa8] sm:$0xff]
    %v1373 = vld [vmem:[#allocation8 + $0xb0] sm:$0xff]
    %v1374 = vld [vmem:[#allocation8 + $0xb8] sm:$0xff]
    %v1375 = vld [vmem:[#allocation8 + $0xc0] sm:$0xff]
    %v1376 = vld [vmem:[#allocation8 + $0xc8] sm:$0xff]
    %v1377 = vld [vmem:[#allocation8 + $0xd0] sm:$0xff]
    %v1378 = vld [vmem:[#allocation8 + $0xd8] sm:$0xff]
    %v1379 = vld [vmem:[#allocation8 + $0xe0] sm:$0xff]
    %v1380 = vld [vmem:[#allocation8 + $0xe8] sm:$0xff]
    %v1381 = vld [vmem:[#allocation8 + $0xf0] sm:$0xff]
    %v1382 = vld [vmem:[#allocation8 + $0xf8] sm:$0xff]
    %v1383 = vld [vmem:[#allocation8 + $0x100] sm:$0xff]
    %v1384 = vld [vmem:[#allocation8 + $0x108] sm:$0xff]
    %v1385 = vld [vmem:[#allocation8 + $0x110] sm:$0xff]
    %v1386 = vld [vmem:[#allocation8 + $0x118] sm:$0xff]
    %v1387 = vld [vmem:[#allocation8 + $0x120] sm:$0xff]
    %v1388 = vld [vmem:[#allocation8 + $0x128] sm:$0xff]
    %v1389 = vld [vmem:[#allocation8 + $0x130] sm:$0xff]
    %v1390 = vld [vmem:[#allocation8 + $0x138] sm:$0xff]
    %v1391 = vld [vmem:[#allocation8 + $0x140] sm:$0xff]
    %v1392 = vld [vmem:[#allocation8 + $0x148] sm:$0xff]
    %v1393 = vld [vmem:[#allocation8 + $0x150] sm:$0xff]
    %v1394 = vld [vmem:[#allocation8 + $0x158] sm:$0xff]
    %v1395 = vld [vmem:[#allocation8 + $0x160] sm:$0xff]
    %v1396 = vld [vmem:[#allocation8 + $0x168] sm:$0xff]
    %v1397 = vld [vmem:[#allocation8 + $0x170] sm:$0xff]
    %v1398 = vld [vmem:[#allocation8 + $0x178] sm:$0xff]
    %1399 = vmatprep.subr.mxu0 %v1397
    %1400 = vmatpush1.msra.mxu0 %v1396
    %1401 = vmatprep.subr.mxu0 %v1394
    %1402 = vmatpush1.msra.mxu0 %v1393
    %1403 = vmatprep.subr.mxu0 %v1391
    %1404 = vmatpush1.msra.mxu0 %v1390
    %1405 = vmatprep.subr.mxu0 %v1388
    %1406 = vmatpush1.msra.mxu0 %v1387
    %1407 = vmatprep.subr.mxu0 %v1385
    %1408 = vmatpush1.msra.mxu0 %v1384
    %1409 = vmatprep.subr.mxu0 %v1382
    %1410 = vmatpush1.msra.mxu0 %v1381
    %1411 = vmatprep.subr.mxu0 %v1379
    %1412 = vmatpush1.msra.mxu0 %v1378
    %1413 = vmatprep.subr.mxu0 %v1376
    %1414 = vmatpush1.msra.mxu0 %v1375
    %1415 = vmatprep.subr.mxu0 %v1373
    %1416 = vmatpush1.msra.mxu0 %v1372
    %1417 = vmatprep.subr.mxu0 %v1370
    %1418 = vmatpush1.msra.mxu0 %v1369
    %1419 = vmatprep.subr.mxu0 %v1367
    %1420 = vmatpush1.msra.mxu0 %v1366
    %1421 = vmatprep.subr.mxu0 %v1364
    %1422 = vmatpush1.msra.mxu0 %v1363
    %1423 = vmatprep.subr.mxu0 %v1361
    %1424 = vmatpush1.msra.mxu0 %v1360
    %1425 = vmatprep.subr.mxu0 %v1358
    %1426 = vmatpush1.msra.mxu0 %v1357
    %1427 = vmatprep.subr.mxu0 %v1355
    %1428 = vmatpush1.msra.mxu0 %v1354
    %1429 = vmatprep.subr.mxu0 %v1352
    %1430 = vmatpush1.msra.mxu0 %v1351
    %1431 = vmatprep.subr.mxu0 0.0
    %1432 = vmatpush2.msra.mxu0 0.0
    %1433 = vmatprep.subr.mxu0 0.0
    %1434 = vmatpush2.msra.mxu0 0.0
    %1435 = vmatprep.subr.mxu0 0.0
    %1436 = vmatpush2.msra.mxu0 0.0
    %1437 = vmatprep.subr.mxu0 0.0
    %1438 = vmatpush2.msra.mxu0 0.0
    %1439 = vmatprep.subr.mxu0 0.0
    %1440 = vmatpush2.msra.mxu0 0.0
    %1441 = vmatprep.subr.mxu0 0.0
    %1442 = vmatpush2.msra.mxu0 0.0
    %1443 = vmatprep.subr.mxu0 0.0
    %1444 = vmatpush2.msra.mxu0 0.0
    %1445 = vmatprep.subr.mxu0 0.0
    %1446 = vmatpush2.msra.mxu0 0.0
    %1447 = vmatprep.subr.mxu0 0.0
    %1448 = vmatpush2.msra.mxu0 0.0
    %1449 = vmatprep.subr.mxu0 0.0
    %1450 = vmatpush2.msra.mxu0 0.0
    %1451 = vmatprep.subr.mxu0 0.0
    %1452 = vmatpush2.msra.mxu0 0.0
    %1453 = vmatprep.subr.mxu0 0.0
    %1454 = vmatpush2.msra.mxu0 0.0
    %1455 = vmatprep.subr.mxu0 0.0
    %1456 = vmatpush2.msra.mxu0 0.0
    %1457 = vmatprep.subr.mxu0 0.0
    %1458 = vmatpush2.msra.mxu0 0.0
    %1459 = vmatprep.subr.mxu0 0.0
    %1460 = vmatpush2.msra.mxu0 0.0
    %1461 = vmatprep.subr.mxu0 0.0
    %1462 = vmatpush2.msra.mxu0 0.0
    %1463 = vmatprep.mubr.f32.mxu0 0.0
    %1464 = vmatmul.mubr.f32.gmra.mxu0 %v1350
    %v1465 = vpop.f32.mrf.mxu0
    %v1466 = vadd.f32 %v108, %v1465
    %v1467 = vpop.f32.mrf.mxu0
    %v1468 = vadd.f32 %v112, %v1467
    %1469 = vdwg.mxu0
    %1470 = vmatprep.subr.mxu0 0.0
    %1471 = vmatpush1.msra.mxu0 %v1398
    %1472 = vmatprep.subr.mxu0 0.0
    %1473 = vmatpush1.msra.mxu0 %v1395
    %1474 = vmatprep.subr.mxu0 0.0
    %1475 = vmatpush1.msra.mxu0 %v1392
    %1476 = vmatprep.subr.mxu0 0.0
    %1477 = vmatpush1.msra.mxu0 %v1389
    %1478 = vmatprep.subr.mxu0 0.0
    %1479 = vmatpush1.msra.mxu0 %v1386
    %1480 = vmatprep.subr.mxu0 0.0
    %1481 = vmatpush1.msra.mxu0 %v1383
    %1482 = vmatprep.subr.mxu0 0.0
    %1483 = vmatpush1.msra.mxu0 %v1380
    %1484 = vmatprep.subr.mxu0 0.0
    %1485 = vmatpush1.msra.mxu0 %v1377
    %1486 = vmatprep.subr.mxu0 0.0
    %1487 = vmatpush1.msra.mxu0 %v1374
    %1488 = vmatprep.subr.mxu0 0.0
    %1489 = vmatpush1.msra.mxu0 %v1371
    %1490 = vmatprep.subr.mxu0 0.0
    %1491 = vmatpush1.msra.mxu0 %v1368
    %1492 = vmatprep.subr.mxu0 0.0
    %1493 = vmatpush1.msra.mxu0 %v1365
    %1494 = vmatprep.subr.mxu0 0.0
    %1495 = vmatpush1.msra.mxu0 %v1362
    %1496 = vmatprep.subr.mxu0 0.0
    %1497 = vmatpush1.msra.mxu0 %v1359
    %1498 = vmatprep.subr.mxu0 0.0
    %1499 = vmatpush1.msra.mxu0 %v1356
    %1500 = vmatprep.subr.mxu0 0.0
    %1501 = vmatpush1.msra.mxu0 %v1353
    %1502 = vmatprep.subr.mxu0 0.0
    %1503 = vmatpush2.msra.mxu0 0.0
    %1504 = vmatprep.subr.mxu0 0.0
    %1505 = vmatpush2.msra.mxu0 0.0
    %1506 = vmatprep.subr.mxu0 0.0
    %1507 = vmatpush2.msra.mxu0 0.0
    %1508 = vmatprep.subr.mxu0 0.0
    %1509 = vmatpush2.msra.mxu0 0.0
    %1510 = vmatprep.subr.mxu0 0.0
    %1511 = vmatpush2.msra.mxu0 0.0
    %1512 = vmatprep.subr.mxu0 0.0
    %1513 = vmatpush2.msra.mxu0 0.0
    %1514 = vmatprep.subr.mxu0 0.0
    %1515 = vmatpush2.msra.mxu0 0.0
    %1516 = vmatprep.subr.mxu0 0.0
    %1517 = vmatpush2.msra.mxu0 0.0
    %1518 = vmatprep.subr.mxu0 0.0
    %1519 = vmatpush2.msra.mxu0 0.0
    %1520 = vmatprep.subr.mxu0 0.0
    %1521 = vmatpush2.msra.mxu0 0.0
    %1522 = vmatprep.subr.mxu0 0.0
    %1523 = vmatpush2.msra.mxu0 0.0
    %1524 = vmatprep.subr.mxu0 0.0
    %1525 = vmatpush2.msra.mxu0 0.0
    %1526 = vmatprep.subr.mxu0 0.0
    %1527 = vmatpush2.msra.mxu0 0.0
    %1528 = vmatprep.subr.mxu0 0.0
    %1529 = vmatpush2.msra.mxu0 0.0
    %1530 = vmatprep.subr.mxu0 0.0
    %1531 = vmatpush2.msra.mxu0 0.0
    %1532 = vmatprep.subr.mxu0 0.0
    %1533 = vmatpush2.msra.mxu0 0.0
    %1534 = vmatprep.mubr.f32.mxu0 0.0
    %1535 = vmatmul.mubr.f32.gmra.mxu0 %v1350
    %v1536 = vpop.f32.mrf.mxu0
    %v1537 = vadd.f32 %v116, %v1536
    %v1538 = vpop.f32.mrf.mxu0
    %1539 = vdwg.mxu0
    %v1542 = vrot.slane %v1466, 4
    %v1543 = vrot.slane %v1468, 4
    %v1546 = vadd.f32 %v240, %v1542
    %v1547 = vadd.f32 %v242, %v1543
    %v1548 = vxor.u32 %v1546, 2147483648
    %v1549 = vxor.u32 %v1547, 2147483648
    %v1550 = vmul.f32 %v1548, 1.442695
    %v1551 = vpow.pop %v1550
    %v1552 = vmul.f32 %v1549, 1.442695
    %v1553 = vpow.pop %v1552
    %v1554 = vadd.f32 %v1551, 1.0
    %v1555 = vadd.f32 %v1553, 1.0
    %v1556 = vrcp.pop %v1554
    %v1557 = vmul.f32 1.0, %v1556
    %v1558 = vrcp.pop %v1555
    %v1559 = vmul.f32 1.0, %v1558
    %v1561 = vrot.slane %v1537, 4
    %v1563 = vmul.f32 %v1557, %v1561
    %v1564 = vadd.f32 %v317, %v1563
    %v1565 = vtanh.pop %v1564
    %v1567 = vrot.slane %v1565, 4
    %v1569 = vsub.f32 %v1350, %v1567
    %v1571 = vrot.slane %v1569, 4
    %v1573 = vmul.f32 %v1559, %v1571
    %v1574 = vadd.f32 %v1565, %v1573
    %1575 = vst [vmem:[#allocation2 - $0x4] sm:$0x30] %v1574
    %v1576 = vld [vmem:[%s536] sm:$0x3]
    %v1578 = vrot.slane %v1576, 4
    %v1579 = vld [vmem:[#allocation11] sm:$0xff]
    %v1580 = vld [vmem:[#allocation11 + $0x8] sm:$0xff]
    %v1581 = vld [vmem:[#allocation11 + $0x10] sm:$0xff]
    %v1582 = vld [vmem:[#allocation11 + $0x18] sm:$0xff]
    %v1583 = vld [vmem:[#allocation11 + $0x20] sm:$0xff]
    %v1584 = vld [vmem:[#allocation11 + $0x28] sm:$0xff]
    %v1585 = vld [vmem:[#allocation11 + $0x30] sm:$0xff]
    %v1586 = vld [vmem:[#allocation11 + $0x38] sm:$0xff]
    %v1587 = vld [vmem:[#allocation11 + $0x40] sm:$0xff]
    %v1588 = vld [vmem:[#allocation11 + $0x48] sm:$0xff]
    %v1589 = vld [vmem:[#allocation11 + $0x50] sm:$0xff]
    %v1590 = vld [vmem:[#allocation11 + $0x58] sm:$0xff]
    %v1591 = vld [vmem:[#allocation11 + $0x60] sm:$0xff]
    %v1592 = vld [vmem:[#allocation11 + $0x68] sm:$0xff]
    %v1593 = vld [vmem:[#allocation11 + $0x70] sm:$0xff]
    %v1594 = vld [vmem:[#allocation11 + $0x78] sm:$0xff]
    %v1595 = vld [vmem:[#allocation11 + $0x80] sm:$0xff]
    %v1596 = vld [vmem:[#allocation11 + $0x88] sm:$0xff]
    %v1597 = vld [vmem:[#allocation11 + $0x90] sm:$0xff]
    %v1598 = vld [vmem:[#allocation11 + $0x98] sm:$0xff]
    %v1599 = vld [vmem:[#allocation11 + $0xa0] sm:$0xff]
    %v1600 = vld [vmem:[#allocation11 + $0xa8] sm:$0xff]
    %v1601 = vld [vmem:[#allocation11 + $0xb0] sm:$0xff]
    %v1602 = vld [vmem:[#allocation11 + $0xb8] sm:$0xff]
    %v1603 = vld [vmem:[#allocation11 + $0xc0] sm:$0xff]
    %v1604 = vld [vmem:[#allocation11 + $0xc8] sm:$0xff]
    %v1605 = vld [vmem:[#allocation11 + $0xd0] sm:$0xff]
    %v1606 = vld [vmem:[#allocation11 + $0xd8] sm:$0xff]
    %v1607 = vld [vmem:[#allocation11 + $0xe0] sm:$0xff]
    %v1608 = vld [vmem:[#allocation11 + $0xe8] sm:$0xff]
    %v1609 = vld [vmem:[#allocation11 + $0xf0] sm:$0xff]
    %v1610 = vld [vmem:[#allocation11 + $0xf8] sm:$0xff]
    %v1611 = vld [vmem:[#allocation11 + $0x100] sm:$0xff]
    %v1612 = vld [vmem:[#allocation11 + $0x108] sm:$0xff]
    %v1613 = vld [vmem:[#allocation11 + $0x110] sm:$0xff]
    %v1614 = vld [vmem:[#allocation11 + $0x118] sm:$0xff]
    %v1615 = vld [vmem:[#allocation11 + $0x120] sm:$0xff]
    %v1616 = vld [vmem:[#allocation11 + $0x128] sm:$0xff]
    %v1617 = vld [vmem:[#allocation11 + $0x130] sm:$0xff]
    %v1618 = vld [vmem:[#allocation11 + $0x138] sm:$0xff]
    %v1619 = vld [vmem:[#allocation11 + $0x140] sm:$0xff]
    %v1620 = vld [vmem:[#allocation11 + $0x148] sm:$0xff]
    %v1621 = vld [vmem:[#allocation11 + $0x150] sm:$0xff]
    %v1622 = vld [vmem:[#allocation11 + $0x158] sm:$0xff]
    %v1623 = vld [vmem:[#allocation11 + $0x160] sm:$0xff]
    %v1624 = vld [vmem:[#allocation11 + $0x168] sm:$0xff]
    %v1625 = vld [vmem:[#allocation11 + $0x170] sm:$0xff]
    %v1626 = vld [vmem:[#allocation11 + $0x178] sm:$0xff]
    %v1627 = vld [vmem:[#allocation11 + $0x180] sm:$0xff]
    %v1628 = vld [vmem:[#allocation11 + $0x188] sm:$0xff]
    %v1629 = vld [vmem:[#allocation11 + $0x190] sm:$0xff]
    %v1630 = vld [vmem:[#allocation11 + $0x198] sm:$0xff]
    %v1631 = vld [vmem:[#allocation11 + $0x1a0] sm:$0xff]
    %v1632 = vld [vmem:[#allocation11 + $0x1a8] sm:$0xff]
    %v1633 = vld [vmem:[#allocation11 + $0x1b0] sm:$0xff]
    %v1634 = vld [vmem:[#allocation11 + $0x1b8] sm:$0xff]
    %v1635 = vld [vmem:[#allocation11 + $0x1c0] sm:$0xff]
    %v1636 = vld [vmem:[#allocation11 + $0x1c8] sm:$0xff]
    %v1637 = vld [vmem:[#allocation11 + $0x1d0] sm:$0xff]
    %v1638 = vld [vmem:[#allocation11 + $0x1d8] sm:$0xff]
    %v1639 = vld [vmem:[#allocation11 + $0x1e0] sm:$0xff]
    %v1640 = vld [vmem:[#allocation11 + $0x1e8] sm:$0xff]
    %v1641 = vld [vmem:[#allocation11 + $0x1f0] sm:$0xff]
    %v1642 = vld [vmem:[#allocation11 + $0x1f8] sm:$0xff]
    %v1643 = vld [vmem:[#allocation11 + $0x200] sm:$0xff]
    %v1644 = vld [vmem:[#allocation11 + $0x208] sm:$0xff]
    %v1645 = vld [vmem:[#allocation11 + $0x210] sm:$0xff]
    %v1646 = vld [vmem:[#allocation11 + $0x218] sm:$0xff]
    %v1647 = vld [vmem:[#allocation11 + $0x220] sm:$0xff]
    %v1648 = vld [vmem:[#allocation11 + $0x228] sm:$0xff]
    %v1649 = vld [vmem:[#allocation11 + $0x230] sm:$0xff]
    %v1650 = vld [vmem:[#allocation11 + $0x238] sm:$0xff]
    %v1651 = vld [vmem:[#allocation11 + $0x240] sm:$0xff]
    %v1652 = vld [vmem:[#allocation11 + $0x248] sm:$0xff]
    %v1653 = vld [vmem:[#allocation11 + $0x250] sm:$0xff]
    %v1654 = vld [vmem:[#allocation11 + $0x258] sm:$0xff]
    %v1655 = vld [vmem:[#allocation11 + $0x260] sm:$0xff]
    %v1656 = vld [vmem:[#allocation11 + $0x268] sm:$0xff]
    %v1657 = vld [vmem:[#allocation11 + $0x270] sm:$0xff]
    %v1658 = vld [vmem:[#allocation11 + $0x278] sm:$0xff]
    %v1659 = vld [vmem:[#allocation11 + $0x280] sm:$0xff]
    %v1660 = vld [vmem:[#allocation11 + $0x288] sm:$0xff]
    %v1661 = vld [vmem:[#allocation11 + $0x290] sm:$0xff]
    %v1662 = vld [vmem:[#allocation11 + $0x298] sm:$0xff]
    %v1663 = vld [vmem:[#allocation11 + $0x2a0] sm:$0xff]
    %v1664 = vld [vmem:[#allocation11 + $0x2a8] sm:$0xff]
    %v1665 = vld [vmem:[#allocation11 + $0x2b0] sm:$0xff]
    %v1666 = vld [vmem:[#allocation11 + $0x2b8] sm:$0xff]
    %v1667 = vld [vmem:[#allocation11 + $0x2c0] sm:$0xff]
    %v1668 = vld [vmem:[#allocation11 + $0x2c8] sm:$0xff]
    %v1669 = vld [vmem:[#allocation11 + $0x2d0] sm:$0xff]
    %v1670 = vld [vmem:[#allocation11 + $0x2d8] sm:$0xff]
    %v1671 = vld [vmem:[#allocation11 + $0x2e0] sm:$0xff]
    %v1672 = vld [vmem:[#allocation11 + $0x2e8] sm:$0xff]
    %v1673 = vld [vmem:[#allocation11 + $0x2f0] sm:$0xff]
    %v1674 = vld [vmem:[#allocation11 + $0x2f8] sm:$0xff]
    %v1675 = vld [vmem:[#allocation11 + $0x300] sm:$0xff]
    %v1676 = vld [vmem:[#allocation11 + $0x308] sm:$0xff]
    %v1677 = vld [vmem:[#allocation11 + $0x310] sm:$0xff]
    %v1678 = vld [vmem:[#allocation11 + $0x318] sm:$0xff]
    %v1679 = vld [vmem:[#allocation11 + $0x320] sm:$0xff]
    %v1680 = vld [vmem:[#allocation11 + $0x328] sm:$0xff]
    %v1681 = vld [vmem:[#allocation11 + $0x330] sm:$0xff]
    %v1682 = vld [vmem:[#allocation11 + $0x338] sm:$0xff]
    %v1683 = vld [vmem:[#allocation11 + $0x340] sm:$0xff]
    %v1684 = vld [vmem:[#allocation11 + $0x348] sm:$0xff]
    %v1685 = vld [vmem:[#allocation11 + $0x350] sm:$0xff]
    %v1686 = vld [vmem:[#allocation11 + $0x358] sm:$0xff]
    %v1687 = vld [vmem:[#allocation11 + $0x360] sm:$0xff]
    %v1688 = vld [vmem:[#allocation11 + $0x368] sm:$0xff]
    %v1689 = vld [vmem:[#allocation11 + $0x370] sm:$0xff]
    %v1690 = vld [vmem:[#allocation11 + $0x378] sm:$0xff]
    %v1691 = vld [vmem:[#allocation11 + $0x380] sm:$0xff]
    %v1692 = vld [vmem:[#allocation11 + $0x388] sm:$0xff]
    %v1693 = vld [vmem:[#allocation11 + $0x390] sm:$0xff]
    %v1694 = vld [vmem:[#allocation11 + $0x398] sm:$0xff]
    %v1695 = vld [vmem:[#allocation11 + $0x3a0] sm:$0xff]
    %v1696 = vld [vmem:[#allocation11 + $0x3a8] sm:$0xff]
    %v1697 = vld [vmem:[#allocation11 + $0x3b0] sm:$0xff]
    %v1698 = vld [vmem:[#allocation11 + $0x3b8] sm:$0xff]
    %v1699 = vld [vmem:[#allocation11 + $0x3c0] sm:$0xff]
    %v1700 = vld [vmem:[#allocation11 + $0x3c8] sm:$0xff]
    %v1701 = vld [vmem:[#allocation11 + $0x3d0] sm:$0xff]
    %v1702 = vld [vmem:[#allocation11 + $0x3d8] sm:$0xff]
    %v1703 = vld [vmem:[#allocation11 + $0x3e0] sm:$0xff]
    %v1704 = vld [vmem:[#allocation11 + $0x3e8] sm:$0xff]
    %v1705 = vld [vmem:[#allocation11 + $0x3f0] sm:$0xff]
    %v1706 = vld [vmem:[#allocation11 + $0x3f8] sm:$0xff]
    %v1708 = vrot.slane %v1574, 4
    %v1709 = vrot.slane %v1578, 4
    %1712 = vmatprep.subr.mxu0 %v1640
    %1713 = vmatpush1.msra.mxu0 %v1639
    %1714 = vmatprep.subr.mxu0 %v1636
    %1715 = vmatpush1.msra.mxu0 %v1635
    %1716 = vmatprep.subr.mxu0 %v1632
    %1717 = vmatpush1.msra.mxu0 %v1631
    %1718 = vmatprep.subr.mxu0 %v1628
    %1719 = vmatpush1.msra.mxu0 %v1627
    %1720 = vmatprep.subr.mxu0 %v1624
    %1721 = vmatpush1.msra.mxu0 %v1623
    %1722 = vmatprep.subr.mxu0 %v1620
    %1723 = vmatpush1.msra.mxu0 %v1619
    %1724 = vmatprep.subr.mxu0 %v1616
    %1725 = vmatpush1.msra.mxu0 %v1615
    %1726 = vmatprep.subr.mxu0 %v1612
    %1727 = vmatpush1.msra.mxu0 %v1611
    %1728 = vmatprep.subr.mxu0 %v1608
    %1729 = vmatpush1.msra.mxu0 %v1607
    %1730 = vmatprep.subr.mxu0 %v1604
    %1731 = vmatpush1.msra.mxu0 %v1603
    %1732 = vmatprep.subr.mxu0 %v1600
    %1733 = vmatpush1.msra.mxu0 %v1599
    %1734 = vmatprep.subr.mxu0 %v1596
    %1735 = vmatpush1.msra.mxu0 %v1595
    %1736 = vmatprep.subr.mxu0 %v1592
    %1737 = vmatpush1.msra.mxu0 %v1591
    %1738 = vmatprep.subr.mxu0 %v1588
    %1739 = vmatpush1.msra.mxu0 %v1587
    %1740 = vmatprep.subr.mxu0 %v1584
    %1741 = vmatpush1.msra.mxu0 %v1583
    %1742 = vmatprep.subr.mxu0 %v1580
    %1743 = vmatpush1.msra.mxu0 %v1579
    %1744 = vmatprep.subr.mxu0 %v1704
    %1745 = vmatpush2.msra.mxu0 %v1703
    %1746 = vmatprep.subr.mxu0 %v1700
    %1747 = vmatpush2.msra.mxu0 %v1699
    %1748 = vmatprep.subr.mxu0 %v1696
    %1749 = vmatpush2.msra.mxu0 %v1695
    %1750 = vmatprep.subr.mxu0 %v1692
    %1751 = vmatpush2.msra.mxu0 %v1691
    %1752 = vmatprep.subr.mxu0 %v1688
    %1753 = vmatpush2.msra.mxu0 %v1687
    %1754 = vmatprep.subr.mxu0 %v1684
    %1755 = vmatpush2.msra.mxu0 %v1683
    %1756 = vmatprep.subr.mxu0 %v1680
    %1757 = vmatpush2.msra.mxu0 %v1679
    %1758 = vmatprep.subr.mxu0 %v1676
    %1759 = vmatpush2.msra.mxu0 %v1675
    %1760 = vmatprep.subr.mxu0 %v1672
    %1761 = vmatpush2.msra.mxu0 %v1671
    %1762 = vmatprep.subr.mxu0 %v1668
    %1763 = vmatpush2.msra.mxu0 %v1667
    %1764 = vmatprep.subr.mxu0 %v1664
    %1765 = vmatpush2.msra.mxu0 %v1663
    %1766 = vmatprep.subr.mxu0 %v1660
    %1767 = vmatpush2.msra.mxu0 %v1659
    %1768 = vmatprep.subr.mxu0 %v1656
    %1769 = vmatpush2.msra.mxu0 %v1655
    %1770 = vmatprep.subr.mxu0 %v1652
    %1771 = vmatpush2.msra.mxu0 %v1651
    %1772 = vmatprep.subr.mxu0 %v1648
    %1773 = vmatpush2.msra.mxu0 %v1647
    %1774 = vmatprep.subr.mxu0 %v1644
    %1775 = vmatpush2.msra.mxu0 %v1643
    %1776 = vmatprep.mubr.f32.mxu0 %v1709
    %1777 = vmatmul.mubr.f32.gmra.mxu0 %v1708
    %v1778 = vpop.f32.mrf.mxu0
    %v1779 = vadd.f32 %v125, %v1778
    %v1780 = vpop.f32.mrf.mxu0
    %v1781 = vadd.f32 %v129, %v1780
    %1782 = vdwg.mxu0
    %1783 = vmatprep.subr.mxu0 %v1642
    %1784 = vmatpush1.msra.mxu0 %v1641
    %1785 = vmatprep.subr.mxu0 %v1638
    %1786 = vmatpush1.msra.mxu0 %v1637
    %1787 = vmatprep.subr.mxu0 %v1634
    %1788 = vmatpush1.msra.mxu0 %v1633
    %1789 = vmatprep.subr.mxu0 %v1630
    %1790 = vmatpush1.msra.mxu0 %v1629
    %1791 = vmatprep.subr.mxu0 %v1626
    %1792 = vmatpush1.msra.mxu0 %v1625
    %1793 = vmatprep.subr.mxu0 %v1622
    %1794 = vmatpush1.msra.mxu0 %v1621
    %1795 = vmatprep.subr.mxu0 %v1618
    %1796 = vmatpush1.msra.mxu0 %v1617
    %1797 = vmatprep.subr.mxu0 %v1614
    %1798 = vmatpush1.msra.mxu0 %v1613
    %1799 = vmatprep.subr.mxu0 %v1610
    %1800 = vmatpush1.msra.mxu0 %v1609
    %1801 = vmatprep.subr.mxu0 %v1606
    %1802 = vmatpush1.msra.mxu0 %v1605
    %1803 = vmatprep.subr.mxu0 %v1602
    %1804 = vmatpush1.msra.mxu0 %v1601
    %1805 = vmatprep.subr.mxu0 %v1598
    %1806 = vmatpush1.msra.mxu0 %v1597
    %1807 = vmatprep.subr.mxu0 %v1594
    %1808 = vmatpush1.msra.mxu0 %v1593
    %1809 = vmatprep.subr.mxu0 %v1590
    %1810 = vmatpush1.msra.mxu0 %v1589
    %1811 = vmatprep.subr.mxu0 %v1586
    %1812 = vmatpush1.msra.mxu0 %v1585
    %1813 = vmatprep.subr.mxu0 %v1582
    %1814 = vmatpush1.msra.mxu0 %v1581
    %1815 = vmatprep.subr.mxu0 %v1706
    %1816 = vmatpush2.msra.mxu0 %v1705
    %1817 = vmatprep.subr.mxu0 %v1702
    %1818 = vmatpush2.msra.mxu0 %v1701
    %1819 = vmatprep.subr.mxu0 %v1698
    %1820 = vmatpush2.msra.mxu0 %v1697
    %1821 = vmatprep.subr.mxu0 %v1694
    %1822 = vmatpush2.msra.mxu0 %v1693
    %1823 = vmatprep.subr.mxu0 %v1690
    %1824 = vmatpush2.msra.mxu0 %v1689
    %1825 = vmatprep.subr.mxu0 %v1686
    %1826 = vmatpush2.msra.mxu0 %v1685
    %1827 = vmatprep.subr.mxu0 %v1682
    %1828 = vmatpush2.msra.mxu0 %v1681
    %1829 = vmatprep.subr.mxu0 %v1678
    %1830 = vmatpush2.msra.mxu0 %v1677
    %1831 = vmatprep.subr.mxu0 %v1674
    %1832 = vmatpush2.msra.mxu0 %v1673
    %1833 = vmatprep.subr.mxu0 %v1670
    %1834 = vmatpush2.msra.mxu0 %v1669
    %1835 = vmatprep.subr.mxu0 %v1666
    %1836 = vmatpush2.msra.mxu0 %v1665
    %1837 = vmatprep.subr.mxu0 %v1662
    %1838 = vmatpush2.msra.mxu0 %v1661
    %1839 = vmatprep.subr.mxu0 %v1658
    %1840 = vmatpush2.msra.mxu0 %v1657
    %1841 = vmatprep.subr.mxu0 %v1654
    %1842 = vmatpush2.msra.mxu0 %v1653
    %1843 = vmatprep.subr.mxu0 %v1650
    %1844 = vmatpush2.msra.mxu0 %v1649
    %1845 = vmatprep.subr.mxu0 %v1646
    %1846 = vmatpush2.msra.mxu0 %v1645
    %1847 = vmatprep.mubr.f32.mxu0 %v1709
    %1848 = vmatmul.mubr.f32.gmra.mxu0 %v1708
    %v1849 = vpop.f32.mrf.mxu0
    %v1850 = vadd.f32 %v133, %v1849
    %v1851 = vpop.f32.mrf.mxu0
    %v1852 = vadd.f32 %v137, %v1851
    %1853 = vdwg.mxu0
    %v1854 = vxor.u32 %v1779, 2147483648
    %v1855 = vxor.u32 %v1781, 2147483648
    %v1856 = vmul.f32 %v1854, 1.442695
    %v1857 = vpow.pop %v1856
    %v1858 = vmul.f32 %v1855, 1.442695
    %v1859 = vpow.pop %v1858
    %v1860 = vadd.f32 %v1857, 1.0
    %v1861 = vadd.f32 %v1859, 1.0
    %v1862 = vrcp.pop %v1860
    %v1863 = vmul.f32 1.0, %v1862
    %v1864 = vrcp.pop %v1861
    %v1865 = vmul.f32 1.0, %v1864
    %v1866 = vmul.f32 %v1863, %v1852
    %v1867 = vadd.f32 %v1850, %v1866
    %v1868 = vtanh.pop %v1867
    %v1869 = vsub.f32 %v1576, %v1868
    %v1870 = vmul.f32 %v1865, %v1869
    %v1871 = vadd.f32 %v1868, %v1870
    %1872 = vst [vmem:[%s536] sm:$0x3] %v1871
    %v1873 = vld [vmem:[#allocation2] sm:$0x3]
    %v1874 = vld [vmem:[#allocation8] sm:$0xff]
    %v1875 = vld [vmem:[#allocation8 + $0x8] sm:$0xff]
    %v1876 = vld [vmem:[#allocation8 + $0x10] sm:$0xff]
    %v1877 = vld [vmem:[#allocation8 + $0x18] sm:$0xff]
    %v1878 = vld [vmem:[#allocation8 + $0x20] sm:$0xff]
    %v1879 = vld [vmem:[#allocation8 + $0x28] sm:$0xff]
    %v1880 = vld [vmem:[#allocation8 + $0x30] sm:$0xff]
    %v1881 = vld [vmem:[#allocation8 + $0x38] sm:$0xff]
    %v1882 = vld [vmem:[#allocation8 + $0x40] sm:$0xff]
    %v1883 = vld [vmem:[#allocation8 + $0x48] sm:$0xff]
    %v1884 = vld [vmem:[#allocation8 + $0x50] sm:$0xff]
    %v1885 = vld [vmem:[#allocation8 + $0x58] sm:$0xff]
    %v1886 = vld [vmem:[#allocation8 + $0x60] sm:$0xff]
    %v1887 = vld [vmem:[#allocation8 + $0x68] sm:$0xff]
    %v1888 = vld [vmem:[#allocation8 + $0x70] sm:$0xff]
    %v1889 = vld [vmem:[#allocation8 + $0x78] sm:$0xff]
    %v1890 = vld [vmem:[#allocation8 + $0x80] sm:$0xff]
    %v1891 = vld [vmem:[#allocation8 + $0x88] sm:$0xff]
    %v1892 = vld [vmem:[#allocation8 + $0x90] sm:$0xff]
    %v1893 = vld [vmem:[#allocation8 + $0x98] sm:$0xff]
    %v1894 = vld [vmem:[#allocation8 + $0xa0] sm:$0xff]
    %v1895 = vld [vmem:[#allocation8 + $0xa8] sm:$0xff]
    %v1896 = vld [vmem:[#allocation8 + $0xb0] sm:$0xff]
    %v1897 = vld [vmem:[#allocation8 + $0xb8] sm:$0xff]
    %v1898 = vld [vmem:[#allocation8 + $0xc0] sm:$0xff]
    %v1899 = vld [vmem:[#allocation8 + $0xc8] sm:$0xff]
    %v1900 = vld [vmem:[#allocation8 + $0xd0] sm:$0xff]
    %v1901 = vld [vmem:[#allocation8 + $0xd8] sm:$0xff]
    %v1902 = vld [vmem:[#allocation8 + $0xe0] sm:$0xff]
    %v1903 = vld [vmem:[#allocation8 + $0xe8] sm:$0xff]
    %v1904 = vld [vmem:[#allocation8 + $0xf0] sm:$0xff]
    %v1905 = vld [vmem:[#allocation8 + $0xf8] sm:$0xff]
    %v1906 = vld [vmem:[#allocation8 + $0x100] sm:$0xff]
    %v1907 = vld [vmem:[#allocation8 + $0x108] sm:$0xff]
    %v1908 = vld [vmem:[#allocation8 + $0x110] sm:$0xff]
    %v1909 = vld [vmem:[#allocation8 + $0x118] sm:$0xff]
    %v1910 = vld [vmem:[#allocation8 + $0x120] sm:$0xff]
    %v1911 = vld [vmem:[#allocation8 + $0x128] sm:$0xff]
    %v1912 = vld [vmem:[#allocation8 + $0x130] sm:$0xff]
    %v1913 = vld [vmem:[#allocation8 + $0x138] sm:$0xff]
    %v1914 = vld [vmem:[#allocation8 + $0x140] sm:$0xff]
    %v1915 = vld [vmem:[#allocation8 + $0x148] sm:$0xff]
    %v1916 = vld [vmem:[#allocation8 + $0x150] sm:$0xff]
    %v1917 = vld [vmem:[#allocation8 + $0x158] sm:$0xff]
    %v1918 = vld [vmem:[#allocation8 + $0x160] sm:$0xff]
    %v1919 = vld [vmem:[#allocation8 + $0x168] sm:$0xff]
    %v1920 = vld [vmem:[#allocation8 + $0x170] sm:$0xff]
    %v1921 = vld [vmem:[#allocation8 + $0x178] sm:$0xff]
    %1922 = vmatprep.subr.mxu0 %v1920
    %1923 = vmatpush1.msra.mxu0 %v1919
    %1924 = vmatprep.subr.mxu0 %v1917
    %1925 = vmatpush1.msra.mxu0 %v1916
    %1926 = vmatprep.subr.mxu0 %v1914
    %1927 = vmatpush1.msra.mxu0 %v1913
    %1928 = vmatprep.subr.mxu0 %v1911
    %1929 = vmatpush1.msra.mxu0 %v1910
    %1930 = vmatprep.subr.mxu0 %v1908
    %1931 = vmatpush1.msra.mxu0 %v1907
    %1932 = vmatprep.subr.mxu0 %v1905
    %1933 = vmatpush1.msra.mxu0 %v1904
    %1934 = vmatprep.subr.mxu0 %v1902
    %1935 = vmatpush1.msra.mxu0 %v1901
    %1936 = vmatprep.subr.mxu0 %v1899
    %1937 = vmatpush1.msra.mxu0 %v1898
    %1938 = vmatprep.subr.mxu0 %v1896
    %1939 = vmatpush1.msra.mxu0 %v1895
    %1940 = vmatprep.subr.mxu0 %v1893
    %1941 = vmatpush1.msra.mxu0 %v1892
    %1942 = vmatprep.subr.mxu0 %v1890
    %1943 = vmatpush1.msra.mxu0 %v1889
    %1944 = vmatprep.subr.mxu0 %v1887
    %1945 = vmatpush1.msra.mxu0 %v1886
    %1946 = vmatprep.subr.mxu0 %v1884
    %1947 = vmatpush1.msra.mxu0 %v1883
    %1948 = vmatprep.subr.mxu0 %v1881
    %1949 = vmatpush1.msra.mxu0 %v1880
    %1950 = vmatprep.subr.mxu0 %v1878
    %1951 = vmatpush1.msra.mxu0 %v1877
    %1952 = vmatprep.subr.mxu0 %v1875
    %1953 = vmatpush1.msra.mxu0 %v1874
    %1954 = vmatprep.subr.mxu0 0.0
    %1955 = vmatpush2.msra.mxu0 0.0
    %1956 = vmatprep.subr.mxu0 0.0
    %1957 = vmatpush2.msra.mxu0 0.0
    %1958 = vmatprep.subr.mxu0 0.0
    %1959 = vmatpush2.msra.mxu0 0.0
    %1960 = vmatprep.subr.mxu0 0.0
    %1961 = vmatpush2.msra.mxu0 0.0
    %1962 = vmatprep.subr.mxu0 0.0
    %1963 = vmatpush2.msra.mxu0 0.0
    %1964 = vmatprep.subr.mxu0 0.0
    %1965 = vmatpush2.msra.mxu0 0.0
    %1966 = vmatprep.subr.mxu0 0.0
    %1967 = vmatpush2.msra.mxu0 0.0
    %1968 = vmatprep.subr.mxu0 0.0
    %1969 = vmatpush2.msra.mxu0 0.0
    %1970 = vmatprep.subr.mxu0 0.0
    %1971 = vmatpush2.msra.mxu0 0.0
    %1972 = vmatprep.subr.mxu0 0.0
    %1973 = vmatpush2.msra.mxu0 0.0
    %1974 = vmatprep.subr.mxu0 0.0
    %1975 = vmatpush2.msra.mxu0 0.0
    %1976 = vmatprep.subr.mxu0 0.0
    %1977 = vmatpush2.msra.mxu0 0.0
    %1978 = vmatprep.subr.mxu0 0.0
    %1979 = vmatpush2.msra.mxu0 0.0
    %1980 = vmatprep.subr.mxu0 0.0
    %1981 = vmatpush2.msra.mxu0 0.0
    %1982 = vmatprep.subr.mxu0 0.0
    %1983 = vmatpush2.msra.mxu0 0.0
    %1984 = vmatprep.subr.mxu0 0.0
    %1985 = vmatpush2.msra.mxu0 0.0
    %1986 = vmatprep.mubr.f32.mxu0 0.0
    %1987 = vmatmul.mubr.f32.gmra.mxu0 %v1873
    %v1988 = vpop.f32.mrf.mxu0
    %v1989 = vadd.f32 %v108, %v1988
    %v1990 = vpop.f32.mrf.mxu0
    %v1991 = vadd.f32 %v112, %v1990
    %1992 = vdwg.mxu0
    %1993 = vmatprep.subr.mxu0 0.0
    %1994 = vmatpush1.msra.mxu0 %v1921
    %1995 = vmatprep.subr.mxu0 0.0
    %1996 = vmatpush1.msra.mxu0 %v1918
    %1997 = vmatprep.subr.mxu0 0.0
    %1998 = vmatpush1.msra.mxu0 %v1915
    %1999 = vmatprep.subr.mxu0 0.0
    %2000 = vmatpush1.msra.mxu0 %v1912
    %2001 = vmatprep.subr.mxu0 0.0
    %2002 = vmatpush1.msra.mxu0 %v1909
    %2003 = vmatprep.subr.mxu0 0.0
    %2004 = vmatpush1.msra.mxu0 %v1906
    %2005 = vmatprep.subr.mxu0 0.0
    %2006 = vmatpush1.msra.mxu0 %v1903
    %2007 = vmatprep.subr.mxu0 0.0
    %2008 = vmatpush1.msra.mxu0 %v1900
    %2009 = vmatprep.subr.mxu0 0.0
    %2010 = vmatpush1.msra.mxu0 %v1897
    %2011 = vmatprep.subr.mxu0 0.0
    %2012 = vmatpush1.msra.mxu0 %v1894
    %2013 = vmatprep.subr.mxu0 0.0
    %2014 = vmatpush1.msra.mxu0 %v1891
    %2015 = vmatprep.subr.mxu0 0.0
    %2016 = vmatpush1.msra.mxu0 %v1888
    %2017 = vmatprep.subr.mxu0 0.0
    %2018 = vmatpush1.msra.mxu0 %v1885
    %2019 = vmatprep.subr.mxu0 0.0
    %2020 = vmatpush1.msra.mxu0 %v1882
    %2021 = vmatprep.subr.mxu0 0.0
    %2022 = vmatpush1.msra.mxu0 %v1879
    %2023 = vmatprep.subr.mxu0 0.0
    %2024 = vmatpush1.msra.mxu0 %v1876
    %2025 = vmatprep.subr.mxu0 0.0
    %2026 = vmatpush2.msra.mxu0 0.0
    %2027 = vmatprep.subr.mxu0 0.0
    %2028 = vmatpush2.msra.mxu0 0.0
    %2029 = vmatprep.subr.mxu0 0.0
    %2030 = vmatpush2.msra.mxu0 0.0
    %2031 = vmatprep.subr.mxu0 0.0
    %2032 = vmatpush2.msra.mxu0 0.0
    %2033 = vmatprep.subr.mxu0 0.0
    %2034 = vmatpush2.msra.mxu0 0.0
    %2035 = vmatprep.subr.mxu0 0.0
    %2036 = vmatpush2.msra.mxu0 0.0
    %2037 = vmatprep.subr.mxu0 0.0
    %2038 = vmatpush2.msra.mxu0 0.0
    %2039 = vmatprep.subr.mxu0 0.0
    %2040 = vmatpush2.msra.mxu0 0.0
    %2041 = vmatprep.subr.mxu0 0.0
    %2042 = vmatpush2.msra.mxu0 0.0
    %2043 = vmatprep.subr.mxu0 0.0
    %2044 = vmatpush2.msra.mxu0 0.0
    %2045 = vmatprep.subr.mxu0 0.0
    %2046 = vmatpush2.msra.mxu0 0.0
    %2047 = vmatprep.subr.mxu0 0.0
    %2048 = vmatpush2.msra.mxu0 0.0
    %2049 = vmatprep.subr.mxu0 0.0
    %2050 = vmatpush2.msra.mxu0 0.0
    %2051 = vmatprep.subr.mxu0 0.0
    %2052 = vmatpush2.msra.mxu0 0.0
    %2053 = vmatprep.subr.mxu0 0.0
    %2054 = vmatpush2.msra.mxu0 0.0
    %2055 = vmatprep.subr.mxu0 0.0
    %2056 = vmatpush2.msra.mxu0 0.0
    %2057 = vmatprep.mubr.f32.mxu0 0.0
    %2058 = vmatmul.mubr.f32.gmra.mxu0 %v1873
    %v2059 = vpop.f32.mrf.mxu0
    %v2060 = vadd.f32 %v116, %v2059
    %v2061 = vpop.f32.mrf.mxu0
    %2062 = vdwg.mxu0
    %v2065 = vrot.slane %v1989, 2
    %v2066 = vrot.slane %v1991, 2
    %v2069 = vadd.f32 %v240, %v2065
    %v2070 = vadd.f32 %v242, %v2066
    %v2071 = vxor.u32 %v2069, 2147483648
    %v2072 = vxor.u32 %v2070, 2147483648
    %v2073 = vmul.f32 %v2071, 1.442695
    %v2074 = vpow.pop %v2073
    %v2075 = vmul.f32 %v2072, 1.442695
    %v2076 = vpow.pop %v2075
    %v2077 = vadd.f32 %v2074, 1.0
    %v2078 = vadd.f32 %v2076, 1.0
    %v2079 = vrcp.pop %v2077
    %v2080 = vmul.f32 1.0, %v2079
    %v2081 = vrcp.pop %v2078
    %v2082 = vmul.f32 1.0, %v2081
    %v2084 = vrot.slane %v2060, 2
    %v2086 = vmul.f32 %v2080, %v2084
    %v2087 = vadd.f32 %v317, %v2086
    %v2088 = vtanh.pop %v2087
    %v2090 = vrot.slane %v2088, 6
    %v2092 = vsub.f32 %v1873, %v2090
    %v2094 = vrot.slane %v2092, 2
    %v2096 = vmul.f32 %v2082, %v2094
    %v2097 = vadd.f32 %v2088, %v2096
    %2098 = vst [vmem:[#allocation2 - $0x6] sm:$0xc0] %v2097
    %v2099 = vld [vmem:[%s536] sm:$0x3]
    %v2101 = vrot.slane %v2099, 2
    %v2102 = vld [vmem:[#allocation11] sm:$0xff]
    %v2103 = vld [vmem:[#allocation11 + $0x8] sm:$0xff]
    %v2104 = vld [vmem:[#allocation11 + $0x10] sm:$0xff]
    %v2105 = vld [vmem:[#allocation11 + $0x18] sm:$0xff]
    %v2106 = vld [vmem:[#allocation11 + $0x20] sm:$0xff]
    %v2107 = vld [vmem:[#allocation11 + $0x28] sm:$0xff]
    %v2108 = vld [vmem:[#allocation11 + $0x30] sm:$0xff]
    %v2109 = vld [vmem:[#allocation11 + $0x38] sm:$0xff]
    %v2110 = vld [vmem:[#allocation11 + $0x40] sm:$0xff]
    %v2111 = vld [vmem:[#allocation11 + $0x48] sm:$0xff]
    %v2112 = vld [vmem:[#allocation11 + $0x50] sm:$0xff]
    %v2113 = vld [vmem:[#allocation11 + $0x58] sm:$0xff]
    %v2114 = vld [vmem:[#allocation11 + $0x60] sm:$0xff]
    %v2115 = vld [vmem:[#allocation11 + $0x68] sm:$0xff]
    %v2116 = vld [vmem:[#allocation11 + $0x70] sm:$0xff]
    %v2117 = vld [vmem:[#allocation11 + $0x78] sm:$0xff]
    %v2118 = vld [vmem:[#allocation11 + $0x80] sm:$0xff]
    %v2119 = vld [vmem:[#allocation11 + $0x88] sm:$0xff]
    %v2120 = vld [vmem:[#allocation11 + $0x90] sm:$0xff]
    %v2121 = vld [vmem:[#allocation11 + $0x98] sm:$0xff]
    %v2122 = vld [vmem:[#allocation11 + $0xa0] sm:$0xff]
    %v2123 = vld [vmem:[#allocation11 + $0xa8] sm:$0xff]
    %v2124 = vld [vmem:[#allocation11 + $0xb0] sm:$0xff]
    %v2125 = vld [vmem:[#allocation11 + $0xb8] sm:$0xff]
    %v2126 = vld [vmem:[#allocation11 + $0xc0] sm:$0xff]
    %v2127 = vld [vmem:[#allocation11 + $0xc8] sm:$0xff]
    %v2128 = vld [vmem:[#allocation11 + $0xd0] sm:$0xff]
    %v2129 = vld [vmem:[#allocation11 + $0xd8] sm:$0xff]
    %v2130 = vld [vmem:[#allocation11 + $0xe0] sm:$0xff]
    %v2131 = vld [vmem:[#allocation11 + $0xe8] sm:$0xff]
    %v2132 = vld [vmem:[#allocation11 + $0xf0] sm:$0xff]
    %v2133 = vld [vmem:[#allocation11 + $0xf8] sm:$0xff]
    %v2134 = vld [vmem:[#allocation11 + $0x100] sm:$0xff]
    %v2135 = vld [vmem:[#allocation11 + $0x108] sm:$0xff]
    %v2136 = vld [vmem:[#allocation11 + $0x110] sm:$0xff]
    %v2137 = vld [vmem:[#allocation11 + $0x118] sm:$0xff]
    %v2138 = vld [vmem:[#allocation11 + $0x120] sm:$0xff]
    %v2139 = vld [vmem:[#allocation11 + $0x128] sm:$0xff]
    %v2140 = vld [vmem:[#allocation11 + $0x130] sm:$0xff]
    %v2141 = vld [vmem:[#allocation11 + $0x138] sm:$0xff]
    %v2142 = vld [vmem:[#allocation11 + $0x140] sm:$0xff]
    %v2143 = vld [vmem:[#allocation11 + $0x148] sm:$0xff]
    %v2144 = vld [vmem:[#allocation11 + $0x150] sm:$0xff]
    %v2145 = vld [vmem:[#allocation11 + $0x158] sm:$0xff]
    %v2146 = vld [vmem:[#allocation11 + $0x160] sm:$0xff]
    %v2147 = vld [vmem:[#allocation11 + $0x168] sm:$0xff]
    %v2148 = vld [vmem:[#allocation11 + $0x170] sm:$0xff]
    %v2149 = vld [vmem:[#allocation11 + $0x178] sm:$0xff]
    %v2150 = vld [vmem:[#allocation11 + $0x180] sm:$0xff]
    %v2151 = vld [vmem:[#allocation11 + $0x188] sm:$0xff]
    %v2152 = vld [vmem:[#allocation11 + $0x190] sm:$0xff]
    %v2153 = vld [vmem:[#allocation11 + $0x198] sm:$0xff]
    %v2154 = vld [vmem:[#allocation11 + $0x1a0] sm:$0xff]
    %v2155 = vld [vmem:[#allocation11 + $0x1a8] sm:$0xff]
    %v2156 = vld [vmem:[#allocation11 + $0x1b0] sm:$0xff]
    %v2157 = vld [vmem:[#allocation11 + $0x1b8] sm:$0xff]
    %v2158 = vld [vmem:[#allocation11 + $0x1c0] sm:$0xff]
    %v2159 = vld [vmem:[#allocation11 + $0x1c8] sm:$0xff]
    %v2160 = vld [vmem:[#allocation11 + $0x1d0] sm:$0xff]
    %v2161 = vld [vmem:[#allocation11 + $0x1d8] sm:$0xff]
    %v2162 = vld [vmem:[#allocation11 + $0x1e0] sm:$0xff]
    %v2163 = vld [vmem:[#allocation11 + $0x1e8] sm:$0xff]
    %v2164 = vld [vmem:[#allocation11 + $0x1f0] sm:$0xff]
    %v2165 = vld [vmem:[#allocation11 + $0x1f8] sm:$0xff]
    %v2166 = vld [vmem:[#allocation11 + $0x200] sm:$0xff]
    %v2167 = vld [vmem:[#allocation11 + $0x208] sm:$0xff]
    %v2168 = vld [vmem:[#allocation11 + $0x210] sm:$0xff]
    %v2169 = vld [vmem:[#allocation11 + $0x218] sm:$0xff]
    %v2170 = vld [vmem:[#allocation11 + $0x220] sm:$0xff]
    %v2171 = vld [vmem:[#allocation11 + $0x228] sm:$0xff]
    %v2172 = vld [vmem:[#allocation11 + $0x230] sm:$0xff]
    %v2173 = vld [vmem:[#allocation11 + $0x238] sm:$0xff]
    %v2174 = vld [vmem:[#allocation11 + $0x240] sm:$0xff]
    %v2175 = vld [vmem:[#allocation11 + $0x248] sm:$0xff]
    %v2176 = vld [vmem:[#allocation11 + $0x250] sm:$0xff]
    %v2177 = vld [vmem:[#allocation11 + $0x258] sm:$0xff]
    %v2178 = vld [vmem:[#allocation11 + $0x260] sm:$0xff]
    %v2179 = vld [vmem:[#allocation11 + $0x268] sm:$0xff]
    %v2180 = vld [vmem:[#allocation11 + $0x270] sm:$0xff]
    %v2181 = vld [vmem:[#allocation11 + $0x278] sm:$0xff]
    %v2182 = vld [vmem:[#allocation11 + $0x280] sm:$0xff]
    %v2183 = vld [vmem:[#allocation11 + $0x288] sm:$0xff]
    %v2184 = vld [vmem:[#allocation11 + $0x290] sm:$0xff]
    %v2185 = vld [vmem:[#allocation11 + $0x298] sm:$0xff]
    %v2186 = vld [vmem:[#allocation11 + $0x2a0] sm:$0xff]
    %v2187 = vld [vmem:[#allocation11 + $0x2a8] sm:$0xff]
    %v2188 = vld [vmem:[#allocation11 + $0x2b0] sm:$0xff]
    %v2189 = vld [vmem:[#allocation11 + $0x2b8] sm:$0xff]
    %v2190 = vld [vmem:[#allocation11 + $0x2c0] sm:$0xff]
    %v2191 = vld [vmem:[#allocation11 + $0x2c8] sm:$0xff]
    %v2192 = vld [vmem:[#allocation11 + $0x2d0] sm:$0xff]
    %v2193 = vld [vmem:[#allocation11 + $0x2d8] sm:$0xff]
    %v2194 = vld [vmem:[#allocation11 + $0x2e0] sm:$0xff]
    %v2195 = vld [vmem:[#allocation11 + $0x2e8] sm:$0xff]
    %v2196 = vld [vmem:[#allocation11 + $0x2f0] sm:$0xff]
    %v2197 = vld [vmem:[#allocation11 + $0x2f8] sm:$0xff]
    %v2198 = vld [vmem:[#allocation11 + $0x300] sm:$0xff]
    %v2199 = vld [vmem:[#allocation11 + $0x308] sm:$0xff]
    %v2200 = vld [vmem:[#allocation11 + $0x310] sm:$0xff]
    %v2201 = vld [vmem:[#allocation11 + $0x318] sm:$0xff]
    %v2202 = vld [vmem:[#allocation11 + $0x320] sm:$0xff]
    %v2203 = vld [vmem:[#allocation11 + $0x328] sm:$0xff]
    %v2204 = vld [vmem:[#allocation11 + $0x330] sm:$0xff]
    %v2205 = vld [vmem:[#allocation11 + $0x338] sm:$0xff]
    %v2206 = vld [vmem:[#allocation11 + $0x340] sm:$0xff]
    %v2207 = vld [vmem:[#allocation11 + $0x348] sm:$0xff]
    %v2208 = vld [vmem:[#allocation11 + $0x350] sm:$0xff]
    %v2209 = vld [vmem:[#allocation11 + $0x358] sm:$0xff]
    %v2210 = vld [vmem:[#allocation11 + $0x360] sm:$0xff]
    %v2211 = vld [vmem:[#allocation11 + $0x368] sm:$0xff]
    %v2212 = vld [vmem:[#allocation11 + $0x370] sm:$0xff]
    %v2213 = vld [vmem:[#allocation11 + $0x378] sm:$0xff]
    %v2214 = vld [vmem:[#allocation11 + $0x380] sm:$0xff]
    %v2215 = vld [vmem:[#allocation11 + $0x388] sm:$0xff]
    %v2216 = vld [vmem:[#allocation11 + $0x390] sm:$0xff]
    %v2217 = vld [vmem:[#allocation11 + $0x398] sm:$0xff]
    %v2218 = vld [vmem:[#allocation11 + $0x3a0] sm:$0xff]
    %v2219 = vld [vmem:[#allocation11 + $0x3a8] sm:$0xff]
    %v2220 = vld [vmem:[#allocation11 + $0x3b0] sm:$0xff]
    %v2221 = vld [vmem:[#allocation11 + $0x3b8] sm:$0xff]
    %v2222 = vld [vmem:[#allocation11 + $0x3c0] sm:$0xff]
    %v2223 = vld [vmem:[#allocation11 + $0x3c8] sm:$0xff]
    %v2224 = vld [vmem:[#allocation11 + $0x3d0] sm:$0xff]
    %v2225 = vld [vmem:[#allocation11 + $0x3d8] sm:$0xff]
    %v2226 = vld [vmem:[#allocation11 + $0x3e0] sm:$0xff]
    %v2227 = vld [vmem:[#allocation11 + $0x3e8] sm:$0xff]
    %v2228 = vld [vmem:[#allocation11 + $0x3f0] sm:$0xff]
    %v2229 = vld [vmem:[#allocation11 + $0x3f8] sm:$0xff]
    %v2231 = vrot.slane %v2097, 6
    %v2232 = vrot.slane %v2101, 6
    %2235 = vmatprep.subr.mxu0 %v2163
    %2236 = vmatpush1.msra.mxu0 %v2162
    %2237 = vmatprep.subr.mxu0 %v2159
    %2238 = vmatpush1.msra.mxu0 %v2158
    %2239 = vmatprep.subr.mxu0 %v2155
    %2240 = vmatpush1.msra.mxu0 %v2154
    %2241 = vmatprep.subr.mxu0 %v2151
    %2242 = vmatpush1.msra.mxu0 %v2150
    %2243 = vmatprep.subr.mxu0 %v2147
    %2244 = vmatpush1.msra.mxu0 %v2146
    %2245 = vmatprep.subr.mxu0 %v2143
    %2246 = vmatpush1.msra.mxu0 %v2142
    %2247 = vmatprep.subr.mxu0 %v2139
    %2248 = vmatpush1.msra.mxu0 %v2138
    %2249 = vmatprep.subr.mxu0 %v2135
    %2250 = vmatpush1.msra.mxu0 %v2134
    %2251 = vmatprep.subr.mxu0 %v2131
    %2252 = vmatpush1.msra.mxu0 %v2130
    %2253 = vmatprep.subr.mxu0 %v2127
    %2254 = vmatpush1.msra.mxu0 %v2126
    %2255 = vmatprep.subr.mxu0 %v2123
    %2256 = vmatpush1.msra.mxu0 %v2122
    %2257 = vmatprep.subr.mxu0 %v2119
    %2258 = vmatpush1.msra.mxu0 %v2118
    %2259 = vmatprep.subr.mxu0 %v2115
    %2260 = vmatpush1.msra.mxu0 %v2114
    %2261 = vmatprep.subr.mxu0 %v2111
    %2262 = vmatpush1.msra.mxu0 %v2110
    %2263 = vmatprep.subr.mxu0 %v2107
    %2264 = vmatpush1.msra.mxu0 %v2106
    %2265 = vmatprep.subr.mxu0 %v2103
    %2266 = vmatpush1.msra.mxu0 %v2102
    %2267 = vmatprep.subr.mxu0 %v2227
    %2268 = vmatpush2.msra.mxu0 %v2226
    %2269 = vmatprep.subr.mxu0 %v2223
    %2270 = vmatpush2.msra.mxu0 %v2222
    %2271 = vmatprep.subr.mxu0 %v2219
    %2272 = vmatpush2.msra.mxu0 %v2218
    %2273 = vmatprep.subr.mxu0 %v2215
    %2274 = vmatpush2.msra.mxu0 %v2214
    %2275 = vmatprep.subr.mxu0 %v2211
    %2276 = vmatpush2.msra.mxu0 %v2210
    %2277 = vmatprep.subr.mxu0 %v2207
    %2278 = vmatpush2.msra.mxu0 %v2206
    %2279 = vmatprep.subr.mxu0 %v2203
    %2280 = vmatpush2.msra.mxu0 %v2202
    %2281 = vmatprep.subr.mxu0 %v2199
    %2282 = vmatpush2.msra.mxu0 %v2198
    %2283 = vmatprep.subr.mxu0 %v2195
    %2284 = vmatpush2.msra.mxu0 %v2194
    %2285 = vmatprep.subr.mxu0 %v2191
    %2286 = vmatpush2.msra.mxu0 %v2190
    %2287 = vmatprep.subr.mxu0 %v2187
    %2288 = vmatpush2.msra.mxu0 %v2186
    %2289 = vmatprep.subr.mxu0 %v2183
    %2290 = vmatpush2.msra.mxu0 %v2182
    %2291 = vmatprep.subr.mxu0 %v2179
    %2292 = vmatpush2.msra.mxu0 %v2178
    %2293 = vmatprep.subr.mxu0 %v2175
    %2294 = vmatpush2.msra.mxu0 %v2174
    %2295 = vmatprep.subr.mxu0 %v2171
    %2296 = vmatpush2.msra.mxu0 %v2170
    %2297 = vmatprep.subr.mxu0 %v2167
    %2298 = vmatpush2.msra.mxu0 %v2166
    %2299 = vmatprep.mubr.f32.mxu0 %v2232
    %2300 = vmatmul.mubr.f32.gmra.mxu0 %v2231
    %v2301 = vpop.f32.mrf.mxu0
    %v2302 = vadd.f32 %v125, %v2301
    %v2303 = vpop.f32.mrf.mxu0
    %v2304 = vadd.f32 %v129, %v2303
    %2305 = vdwg.mxu0
    %2306 = vmatprep.subr.mxu0 %v2165
    %2307 = vmatpush1.msra.mxu0 %v2164
    %2308 = vmatprep.subr.mxu0 %v2161
    %2309 = vmatpush1.msra.mxu0 %v2160
    %2310 = vmatprep.subr.mxu0 %v2157
    %2311 = vmatpush1.msra.mxu0 %v2156
    %2312 = vmatprep.subr.mxu0 %v2153
    %2313 = vmatpush1.msra.mxu0 %v2152
    %2314 = vmatprep.subr.mxu0 %v2149
    %2315 = vmatpush1.msra.mxu0 %v2148
    %2316 = vmatprep.subr.mxu0 %v2145
    %2317 = vmatpush1.msra.mxu0 %v2144
    %2318 = vmatprep.subr.mxu0 %v2141
    %2319 = vmatpush1.msra.mxu0 %v2140
    %2320 = vmatprep.subr.mxu0 %v2137
    %2321 = vmatpush1.msra.mxu0 %v2136
    %2322 = vmatprep.subr.mxu0 %v2133
    %2323 = vmatpush1.msra.mxu0 %v2132
    %2324 = vmatprep.subr.mxu0 %v2129
    %2325 = vmatpush1.msra.mxu0 %v2128
    %2326 = vmatprep.subr.mxu0 %v2125
    %2327 = vmatpush1.msra.mxu0 %v2124
    %2328 = vmatprep.subr.mxu0 %v2121
    %2329 = vmatpush1.msra.mxu0 %v2120
    %2330 = vmatprep.subr.mxu0 %v2117
    %2331 = vmatpush1.msra.mxu0 %v2116
    %2332 = vmatprep.subr.mxu0 %v2113
    %2333 = vmatpush1.msra.mxu0 %v2112
    %2334 = vmatprep.subr.mxu0 %v2109
    %2335 = vmatpush1.msra.mxu0 %v2108
    %2336 = vmatprep.subr.mxu0 %v2105
    %2337 = vmatpush1.msra.mxu0 %v2104
    %2338 = vmatprep.subr.mxu0 %v2229
    %2339 = vmatpush2.msra.mxu0 %v2228
    %2340 = vmatprep.subr.mxu0 %v2225
    %2341 = vmatpush2.msra.mxu0 %v2224
    %2342 = vmatprep.subr.mxu0 %v2221
    %2343 = vmatpush2.msra.mxu0 %v2220
    %2344 = vmatprep.subr.mxu0 %v2217
    %2345 = vmatpush2.msra.mxu0 %v2216
    %2346 = vmatprep.subr.mxu0 %v2213
    %2347 = vmatpush2.msra.mxu0 %v2212
    %2348 = vmatprep.subr.mxu0 %v2209
    %2349 = vmatpush2.msra.mxu0 %v2208
    %2350 = vmatprep.subr.mxu0 %v2205
    %2351 = vmatpush2.msra.mxu0 %v2204
    %2352 = vmatprep.subr.mxu0 %v2201
    %2353 = vmatpush2.msra.mxu0 %v2200
    %2354 = vmatprep.subr.mxu0 %v2197
    %2355 = vmatpush2.msra.mxu0 %v2196
    %2356 = vmatprep.subr.mxu0 %v2193
    %2357 = vmatpush2.msra.mxu0 %v2192
    %2358 = vmatprep.subr.mxu0 %v2189
    %2359 = vmatpush2.msra.mxu0 %v2188
    %2360 = vmatprep.subr.mxu0 %v2185
    %2361 = vmatpush2.msra.mxu0 %v2184
    %2362 = vmatprep.subr.mxu0 %v2181
    %2363 = vmatpush2.msra.mxu0 %v2180
    %2364 = vmatprep.subr.mxu0 %v2177
    %2365 = vmatpush2.msra.mxu0 %v2176
    %2366 = vmatprep.subr.mxu0 %v2173
    %2367 = vmatpush2.msra.mxu0 %v2172
    %2368 = vmatprep.subr.mxu0 %v2169
    %2369 = vmatpush2.msra.mxu0 %v2168
    %2370 = vmatprep.mubr.f32.mxu0 %v2232
    %2371 = vmatmul.mubr.f32.gmra.mxu0 %v2231
    %v2372 = vpop.f32.mrf.mxu0
    %v2373 = vadd.f32 %v133, %v2372
    %v2374 = vpop.f32.mrf.mxu0
    %v2375 = vadd.f32 %v137, %v2374
    %2376 = vdwg.mxu0
    %v2377 = vxor.u32 %v2302, 2147483648
    %v2378 = vxor.u32 %v2304, 2147483648
    %v2379 = vmul.f32 %v2377, 1.442695
    %v2380 = vpow.pop %v2379
    %v2381 = vmul.f32 %v2378, 1.442695
    %v2382 = vpow.pop %v2381
    %v2383 = vadd.f32 %v2380, 1.0
    %v2384 = vadd.f32 %v2382, 1.0
    %v2385 = vrcp.pop %v2383
    %v2386 = vmul.f32 1.0, %v2385
    %v2387 = vrcp.pop %v2384
    %v2388 = vmul.f32 1.0, %v2387
    %v2389 = vmul.f32 %v2386, %v2375
    %v2390 = vadd.f32 %v2373, %v2389
    %v2391 = vtanh.pop %v2390
    %v2392 = vsub.f32 %v2099, %v2391
    %v2393 = vmul.f32 %v2388, %v2392
    %v2394 = vadd.f32 %v2391, %v2393
    %2395 = vst [vmem:[%s536] sm:$0x3] %v2394
    %v2396 = vld [vmem:[#allocation2] sm:$0x3]
    %v2397 = vld [vmem:[#allocation8] sm:$0xff]
    %v2398 = vld [vmem:[#allocation8 + $0x8] sm:$0xff]
    %v2399 = vld [vmem:[#allocation8 + $0x10] sm:$0xff]
    %v2400 = vld [vmem:[#allocation8 + $0x18] sm:$0xff]
    %v2401 = vld [vmem:[#allocation8 + $0x20] sm:$0xff]
    %v2402 = vld [vmem:[#allocation8 + $0x28] sm:$0xff]
    %v2403 = vld [vmem:[#allocation8 + $0x30] sm:$0xff]
    %v2404 = vld [vmem:[#allocation8 + $0x38] sm:$0xff]
    %v2405 = vld [vmem:[#allocation8 + $0x40] sm:$0xff]
    %v2406 = vld [vmem:[#allocation8 + $0x48] sm:$0xff]
    %v2407 = vld [vmem:[#allocation8 + $0x50] sm:$0xff]
    %v2408 = vld [vmem:[#allocation8 + $0x58] sm:$0xff]
    %v2409 = vld [vmem:[#allocation8 + $0x60] sm:$0xff]
    %v2410 = vld [vmem:[#allocation8 + $0x68] sm:$0xff]
    %v2411 = vld [vmem:[#allocation8 + $0x70] sm:$0xff]
    %v2412 = vld [vmem:[#allocation8 + $0x78] sm:$0xff]
    %v2413 = vld [vmem:[#allocation8 + $0x80] sm:$0xff]
    %v2414 = vld [vmem:[#allocation8 + $0x88] sm:$0xff]
    %v2415 = vld [vmem:[#allocation8 + $0x90] sm:$0xff]
    %v2416 = vld [vmem:[#allocation8 + $0x98] sm:$0xff]
    %v2417 = vld [vmem:[#allocation8 + $0xa0] sm:$0xff]
    %v2418 = vld [vmem:[#allocation8 + $0xa8] sm:$0xff]
    %v2419 = vld [vmem:[#allocation8 + $0xb0] sm:$0xff]
    %v2420 = vld [vmem:[#allocation8 + $0xb8] sm:$0xff]
    %v2421 = vld [vmem:[#allocation8 + $0xc0] sm:$0xff]
    %v2422 = vld [vmem:[#allocation8 + $0xc8] sm:$0xff]
    %v2423 = vld [vmem:[#allocation8 + $0xd0] sm:$0xff]
    %v2424 = vld [vmem:[#allocation8 + $0xd8] sm:$0xff]
    %v2425 = vld [vmem:[#allocation8 + $0xe0] sm:$0xff]
    %v2426 = vld [vmem:[#allocation8 + $0xe8] sm:$0xff]
    %v2427 = vld [vmem:[#allocation8 + $0xf0] sm:$0xff]
    %v2428 = vld [vmem:[#allocation8 + $0xf8] sm:$0xff]
    %v2429 = vld [vmem:[#allocation8 + $0x100] sm:$0xff]
    %v2430 = vld [vmem:[#allocation8 + $0x108] sm:$0xff]
    %v2431 = vld [vmem:[#allocation8 + $0x110] sm:$0xff]
    %v2432 = vld [vmem:[#allocation8 + $0x118] sm:$0xff]
    %v2433 = vld [vmem:[#allocation8 + $0x120] sm:$0xff]
    %v2434 = vld [vmem:[#allocation8 + $0x128] sm:$0xff]
    %v2435 = vld [vmem:[#allocation8 + $0x130] sm:$0xff]
    %v2436 = vld [vmem:[#allocation8 + $0x138] sm:$0xff]
    %v2437 = vld [vmem:[#allocation8 + $0x140] sm:$0xff]
    %v2438 = vld [vmem:[#allocation8 + $0x148] sm:$0xff]
    %v2439 = vld [vmem:[#allocation8 + $0x150] sm:$0xff]
    %v2440 = vld [vmem:[#allocation8 + $0x158] sm:$0xff]
    %v2441 = vld [vmem:[#allocation8 + $0x160] sm:$0xff]
    %v2442 = vld [vmem:[#allocation8 + $0x168] sm:$0xff]
    %v2443 = vld [vmem:[#allocation8 + $0x170] sm:$0xff]
    %v2444 = vld [vmem:[#allocation8 + $0x178] sm:$0xff]
    %2445 = vmatprep.subr.mxu0 %v2443
    %2446 = vmatpush1.msra.mxu0 %v2442
    %2447 = vmatprep.subr.mxu0 %v2440
    %2448 = vmatpush1.msra.mxu0 %v2439
    %2449 = vmatprep.subr.mxu0 %v2437
    %2450 = vmatpush1.msra.mxu0 %v2436
    %2451 = vmatprep.subr.mxu0 %v2434
    %2452 = vmatpush1.msra.mxu0 %v2433
    %2453 = vmatprep.subr.mxu0 %v2431
    %2454 = vmatpush1.msra.mxu0 %v2430
    %2455 = vmatprep.subr.mxu0 %v2428
    %2456 = vmatpush1.msra.mxu0 %v2427
    %2457 = vmatprep.subr.mxu0 %v2425
    %2458 = vmatpush1.msra.mxu0 %v2424
    %2459 = vmatprep.subr.mxu0 %v2422
    %2460 = vmatpush1.msra.mxu0 %v2421
    %2461 = vmatprep.subr.mxu0 %v2419
    %2462 = vmatpush1.msra.mxu0 %v2418
    %2463 = vmatprep.subr.mxu0 %v2416
    %2464 = vmatpush1.msra.mxu0 %v2415
    %2465 = vmatprep.subr.mxu0 %v2413
    %2466 = vmatpush1.msra.mxu0 %v2412
    %2467 = vmatprep.subr.mxu0 %v2410
    %2468 = vmatpush1.msra.mxu0 %v2409
    %2469 = vmatprep.subr.mxu0 %v2407
    %2470 = vmatpush1.msra.mxu0 %v2406
    %2471 = vmatprep.subr.mxu0 %v2404
    %2472 = vmatpush1.msra.mxu0 %v2403
    %2473 = vmatprep.subr.mxu0 %v2401
    %2474 = vmatpush1.msra.mxu0 %v2400
    %2475 = vmatprep.subr.mxu0 %v2398
    %2476 = vmatpush1.msra.mxu0 %v2397
    %2477 = vmatprep.subr.mxu0 0.0
    %2478 = vmatpush2.msra.mxu0 0.0
    %2479 = vmatprep.subr.mxu0 0.0
    %2480 = vmatpush2.msra.mxu0 0.0
    %2481 = vmatprep.subr.mxu0 0.0
    %2482 = vmatpush2.msra.mxu0 0.0
    %2483 = vmatprep.subr.mxu0 0.0
    %2484 = vmatpush2.msra.mxu0 0.0
    %2485 = vmatprep.subr.mxu0 0.0
    %2486 = vmatpush2.msra.mxu0 0.0
    %2487 = vmatprep.subr.mxu0 0.0
    %2488 = vmatpush2.msra.mxu0 0.0
    %2489 = vmatprep.subr.mxu0 0.0
    %2490 = vmatpush2.msra.mxu0 0.0
    %2491 = vmatprep.subr.mxu0 0.0
    %2492 = vmatpush2.msra.mxu0 0.0
    %2493 = vmatprep.subr.mxu0 0.0
    %2494 = vmatpush2.msra.mxu0 0.0
    %2495 = vmatprep.subr.mxu0 0.0
    %2496 = vmatpush2.msra.mxu0 0.0
    %2497 = vmatprep.subr.mxu0 0.0
    %2498 = vmatpush2.msra.mxu0 0.0
    %2499 = vmatprep.subr.mxu0 0.0
    %2500 = vmatpush2.msra.mxu0 0.0
    %2501 = vmatprep.subr.mxu0 0.0
    %2502 = vmatpush2.msra.mxu0 0.0
    %2503 = vmatprep.subr.mxu0 0.0
    %2504 = vmatpush2.msra.mxu0 0.0
    %2505 = vmatprep.subr.mxu0 0.0
    %2506 = vmatpush2.msra.mxu0 0.0
    %2507 = vmatprep.subr.mxu0 0.0
    %2508 = vmatpush2.msra.mxu0 0.0
    %2509 = vmatprep.mubr.f32.mxu0 0.0
    %2510 = vmatmul.mubr.f32.gmra.mxu0 %v2396
    %v2511 = vpop.f32.mrf.mxu0
    %v2512 = vadd.f32 %v108, %v2511
    %v2513 = vpop.f32.mrf.mxu0
    %v2514 = vadd.f32 %v112, %v2513
    %2515 = vdwg.mxu0
    %2516 = vmatprep.subr.mxu0 0.0
    %2517 = vmatpush1.msra.mxu0 %v2444
    %2518 = vmatprep.subr.mxu0 0.0
    %2519 = vmatpush1.msra.mxu0 %v2441
    %2520 = vmatprep.subr.mxu0 0.0
    %2521 = vmatpush1.msra.mxu0 %v2438
    %2522 = vmatprep.subr.mxu0 0.0
    %2523 = vmatpush1.msra.mxu0 %v2435
    %2524 = vmatprep.subr.mxu0 0.0
    %2525 = vmatpush1.msra.mxu0 %v2432
    %2526 = vmatprep.subr.mxu0 0.0
    %2527 = vmatpush1.msra.mxu0 %v2429
    %2528 = vmatprep.subr.mxu0 0.0
    %2529 = vmatpush1.msra.mxu0 %v2426
    %2530 = vmatprep.subr.mxu0 0.0
    %2531 = vmatpush1.msra.mxu0 %v2423
    %2532 = vmatprep.subr.mxu0 0.0
    %2533 = vmatpush1.msra.mxu0 %v2420
    %2534 = vmatprep.subr.mxu0 0.0
    %2535 = vmatpush1.msra.mxu0 %v2417
    %2536 = vmatprep.subr.mxu0 0.0
    %2537 = vmatpush1.msra.mxu0 %v2414
    %2538 = vmatprep.subr.mxu0 0.0
    %2539 = vmatpush1.msra.mxu0 %v2411
    %2540 = vmatprep.subr.mxu0 0.0
    %2541 = vmatpush1.msra.mxu0 %v2408
    %2542 = vmatprep.subr.mxu0 0.0
    %2543 = vmatpush1.msra.mxu0 %v2405
    %2544 = vmatprep.subr.mxu0 0.0
    %2545 = vmatpush1.msra.mxu0 %v2402
    %2546 = vmatprep.subr.mxu0 0.0
    %2547 = vmatpush1.msra.mxu0 %v2399
    %2548 = vmatprep.subr.mxu0 0.0
    %2549 = vmatpush2.msra.mxu0 0.0
    %2550 = vmatprep.subr.mxu0 0.0
    %2551 = vmatpush2.msra.mxu0 0.0
    %2552 = vmatprep.subr.mxu0 0.0
    %2553 = vmatpush2.msra.mxu0 0.0
    %2554 = vmatprep.subr.mxu0 0.0
    %2555 = vmatpush2.msra.mxu0 0.0
    %2556 = vmatprep.subr.mxu0 0.0
    %2557 = vmatpush2.msra.mxu0 0.0
    %2558 = vmatprep.subr.mxu0 0.0
    %2559 = vmatpush2.msra.mxu0 0.0
    %2560 = vmatprep.subr.mxu0 0.0
    %2561 = vmatpush2.msra.mxu0 0.0
    %2562 = vmatprep.subr.mxu0 0.0
    %2563 = vmatpush2.msra.mxu0 0.0
    %2564 = vmatprep.subr.mxu0 0.0
    %2565 = vmatpush2.msra.mxu0 0.0
    %2566 = vmatprep.subr.mxu0 0.0
    %2567 = vmatpush2.msra.mxu0 0.0
    %2568 = vmatprep.subr.mxu0 0.0
    %2569 = vmatpush2.msra.mxu0 0.0
    %2570 = vmatprep.subr.mxu0 0.0
    %2571 = vmatpush2.msra.mxu0 0.0
    %2572 = vmatprep.subr.mxu0 0.0
    %2573 = vmatpush2.msra.mxu0 0.0
    %2574 = vmatprep.subr.mxu0 0.0
    %2575 = vmatpush2.msra.mxu0 0.0
    %2576 = vmatprep.subr.mxu0 0.0
    %2577 = vmatpush2.msra.mxu0 0.0
    %2578 = vmatprep.subr.mxu0 0.0
    %2579 = vmatpush2.msra.mxu0 0.0
    %2580 = vmatprep.mubr.f32.mxu0 0.0
    %2581 = vmatmul.mubr.f32.gmra.mxu0 %v2396
    %v2582 = vpop.f32.mrf.mxu0
    %v2583 = vadd.f32 %v116, %v2582
    %v2584 = vpop.f32.mrf.mxu0
    %2585 = vdwg.mxu0
    %v2586 = vadd.f32 %v246, %v2512
    %v2587 = vadd.f32 %v248, %v2514
    %v2588 = vxor.u32 %v2586, 2147483648
    %v2589 = vxor.u32 %v2587, 2147483648
    %v2590 = vmul.f32 %v2588, 1.442695
    %v2591 = vpow.pop %v2590
    %v2592 = vmul.f32 %v2589, 1.442695
    %v2593 = vpow.pop %v2592
    %v2594 = vadd.f32 %v2591, 1.0
    %v2595 = vadd.f32 %v2593, 1.0
    %v2596 = vrcp.pop %v2594
    %v2597 = vmul.f32 1.0, %v2596
    %v2598 = vrcp.pop %v2595
    %v2599 = vmul.f32 1.0, %v2598
    %v2600 = vmul.f32 %v2597, %v2583
    %v2601 = vadd.f32 %v322, %v2600
    %v2602 = vtanh.pop %v2601
    %v2603 = vsub.f32 %v2396, %v2602
    %v2604 = vmul.f32 %v2599, %v2603
    %v2605 = vadd.f32 %v2602, %v2604
    %2606 = vst [vmem:[#allocation2] sm:$0x3] %v2605
    %v2607 = vld [vmem:[%s536] sm:$0x3]
    %v2608 = vld [vmem:[#allocation11] sm:$0xff]
    %v2609 = vld [vmem:[#allocation11 + $0x8] sm:$0xff]
    %v2610 = vld [vmem:[#allocation11 + $0x10] sm:$0xff]
    %v2611 = vld [vmem:[#allocation11 + $0x18] sm:$0xff]
    %v2612 = vld [vmem:[#allocation11 + $0x20] sm:$0xff]
    %v2613 = vld [vmem:[#allocation11 + $0x28] sm:$0xff]
    %v2614 = vld [vmem:[#allocation11 + $0x30] sm:$0xff]
    %v2615 = vld [vmem:[#allocation11 + $0x38] sm:$0xff]
    %v2616 = vld [vmem:[#allocation11 + $0x40] sm:$0xff]
    %v2617 = vld [vmem:[#allocation11 + $0x48] sm:$0xff]
    %v2618 = vld [vmem:[#allocation11 + $0x50] sm:$0xff]
    %v2619 = vld [vmem:[#allocation11 + $0x58] sm:$0xff]
    %v2620 = vld [vmem:[#allocation11 + $0x60] sm:$0xff]
    %v2621 = vld [vmem:[#allocation11 + $0x68] sm:$0xff]
    %v2622 = vld [vmem:[#allocation11 + $0x70] sm:$0xff]
    %v2623 = vld [vmem:[#allocation11 + $0x78] sm:$0xff]
    %v2624 = vld [vmem:[#allocation11 + $0x80] sm:$0xff]
    %v2625 = vld [vmem:[#allocation11 + $0x88] sm:$0xff]
    %v2626 = vld [vmem:[#allocation11 + $0x90] sm:$0xff]
    %v2627 = vld [vmem:[#allocation11 + $0x98] sm:$0xff]
    %v2628 = vld [vmem:[#allocation11 + $0xa0] sm:$0xff]
    %v2629 = vld [vmem:[#allocation11 + $0xa8] sm:$0xff]
    %v2630 = vld [vmem:[#allocation11 + $0xb0] sm:$0xff]
    %v2631 = vld [vmem:[#allocation11 + $0xb8] sm:$0xff]
    %v2632 = vld [vmem:[#allocation11 + $0xc0] sm:$0xff]
    %v2633 = vld [vmem:[#allocation11 + $0xc8] sm:$0xff]
    %v2634 = vld [vmem:[#allocation11 + $0xd0] sm:$0xff]
    %v2635 = vld [vmem:[#allocation11 + $0xd8] sm:$0xff]
    %v2636 = vld [vmem:[#allocation11 + $0xe0] sm:$0xff]
    %v2637 = vld [vmem:[#allocation11 + $0xe8] sm:$0xff]
    %v2638 = vld [vmem:[#allocation11 + $0xf0] sm:$0xff]
    %v2639 = vld [vmem:[#allocation11 + $0xf8] sm:$0xff]
    %v2640 = vld [vmem:[#allocation11 + $0x100] sm:$0xff]
    %v2641 = vld [vmem:[#allocation11 + $0x108] sm:$0xff]
    %v2642 = vld [vmem:[#allocation11 + $0x110] sm:$0xff]
    %v2643 = vld [vmem:[#allocation11 + $0x118] sm:$0xff]
    %v2644 = vld [vmem:[#allocation11 + $0x120] sm:$0xff]
    %v2645 = vld [vmem:[#allocation11 + $0x128] sm:$0xff]
    %v2646 = vld [vmem:[#allocation11 + $0x130] sm:$0xff]
    %v2647 = vld [vmem:[#allocation11 + $0x138] sm:$0xff]
    %v2648 = vld [vmem:[#allocation11 + $0x140] sm:$0xff]
    %v2649 = vld [vmem:[#allocation11 + $0x148] sm:$0xff]
    %v2650 = vld [vmem:[#allocation11 + $0x150] sm:$0xff]
    %v2651 = vld [vmem:[#allocation11 + $0x158] sm:$0xff]
    %v2652 = vld [vmem:[#allocation11 + $0x160] sm:$0xff]
    %v2653 = vld [vmem:[#allocation11 + $0x168] sm:$0xff]
    %v2654 = vld [vmem:[#allocation11 + $0x170] sm:$0xff]
    %v2655 = vld [vmem:[#allocation11 + $0x178] sm:$0xff]
    %v2656 = vld [vmem:[#allocation11 + $0x180] sm:$0xff]
    %v2657 = vld [vmem:[#allocation11 + $0x188] sm:$0xff]
    %v2658 = vld [vmem:[#allocation11 + $0x190] sm:$0xff]
    %v2659 = vld [vmem:[#allocation11 + $0x198] sm:$0xff]
    %v2660 = vld [vmem:[#allocation11 + $0x1a0] sm:$0xff]
    %v2661 = vld [vmem:[#allocation11 + $0x1a8] sm:$0xff]
    %v2662 = vld [vmem:[#allocation11 + $0x1b0] sm:$0xff]
    %v2663 = vld [vmem:[#allocation11 + $0x1b8] sm:$0xff]
    %v2664 = vld [vmem:[#allocation11 + $0x1c0] sm:$0xff]
    %v2665 = vld [vmem:[#allocation11 + $0x1c8] sm:$0xff]
    %v2666 = vld [vmem:[#allocation11 + $0x1d0] sm:$0xff]
    %v2667 = vld [vmem:[#allocation11 + $0x1d8] sm:$0xff]
    %v2668 = vld [vmem:[#allocation11 + $0x1e0] sm:$0xff]
    %v2669 = vld [vmem:[#allocation11 + $0x1e8] sm:$0xff]
    %v2670 = vld [vmem:[#allocation11 + $0x1f0] sm:$0xff]
    %v2671 = vld [vmem:[#allocation11 + $0x1f8] sm:$0xff]
    %v2672 = vld [vmem:[#allocation11 + $0x200] sm:$0xff]
    %v2673 = vld [vmem:[#allocation11 + $0x208] sm:$0xff]
    %v2674 = vld [vmem:[#allocation11 + $0x210] sm:$0xff]
    %v2675 = vld [vmem:[#allocation11 + $0x218] sm:$0xff]
    %v2676 = vld [vmem:[#allocation11 + $0x220] sm:$0xff]
    %v2677 = vld [vmem:[#allocation11 + $0x228] sm:$0xff]
    %v2678 = vld [vmem:[#allocation11 + $0x230] sm:$0xff]
    %v2679 = vld [vmem:[#allocation11 + $0x238] sm:$0xff]
    %v2680 = vld [vmem:[#allocation11 + $0x240] sm:$0xff]
    %v2681 = vld [vmem:[#allocation11 + $0x248] sm:$0xff]
    %v2682 = vld [vmem:[#allocation11 + $0x250] sm:$0xff]
    %v2683 = vld [vmem:[#allocation11 + $0x258] sm:$0xff]
    %v2684 = vld [vmem:[#allocation11 + $0x260] sm:$0xff]
    %v2685 = vld [vmem:[#allocation11 + $0x268] sm:$0xff]
    %v2686 = vld [vmem:[#allocation11 + $0x270] sm:$0xff]
    %v2687 = vld [vmem:[#allocation11 + $0x278] sm:$0xff]
    %v2688 = vld [vmem:[#allocation11 + $0x280] sm:$0xff]
    %v2689 = vld [vmem:[#allocation11 + $0x288] sm:$0xff]
    %v2690 = vld [vmem:[#allocation11 + $0x290] sm:$0xff]
    %v2691 = vld [vmem:[#allocation11 + $0x298] sm:$0xff]
    %v2692 = vld [vmem:[#allocation11 + $0x2a0] sm:$0xff]
    %v2693 = vld [vmem:[#allocation11 + $0x2a8] sm:$0xff]
    %v2694 = vld [vmem:[#allocation11 + $0x2b0] sm:$0xff]
    %v2695 = vld [vmem:[#allocation11 + $0x2b8] sm:$0xff]
    %v2696 = vld [vmem:[#allocation11 + $0x2c0] sm:$0xff]
    %v2697 = vld [vmem:[#allocation11 + $0x2c8] sm:$0xff]
    %v2698 = vld [vmem:[#allocation11 + $0x2d0] sm:$0xff]
    %v2699 = vld [vmem:[#allocation11 + $0x2d8] sm:$0xff]
    %v2700 = vld [vmem:[#allocation11 + $0x2e0] sm:$0xff]
    %v2701 = vld [vmem:[#allocation11 + $0x2e8] sm:$0xff]
    %v2702 = vld [vmem:[#allocation11 + $0x2f0] sm:$0xff]
    %v2703 = vld [vmem:[#allocation11 + $0x2f8] sm:$0xff]
    %v2704 = vld [vmem:[#allocation11 + $0x300] sm:$0xff]
    %v2705 = vld [vmem:[#allocation11 + $0x308] sm:$0xff]
    %v2706 = vld [vmem:[#allocation11 + $0x310] sm:$0xff]
    %v2707 = vld [vmem:[#allocation11 + $0x318] sm:$0xff]
    %v2708 = vld [vmem:[#allocation11 + $0x320] sm:$0xff]
    %v2709 = vld [vmem:[#allocation11 + $0x328] sm:$0xff]
    %v2710 = vld [vmem:[#allocation11 + $0x330] sm:$0xff]
    %v2711 = vld [vmem:[#allocation11 + $0x338] sm:$0xff]
    %v2712 = vld [vmem:[#allocation11 + $0x340] sm:$0xff]
    %v2713 = vld [vmem:[#allocation11 + $0x348] sm:$0xff]
    %v2714 = vld [vmem:[#allocation11 + $0x350] sm:$0xff]
    %v2715 = vld [vmem:[#allocation11 + $0x358] sm:$0xff]
    %v2716 = vld [vmem:[#allocation11 + $0x360] sm:$0xff]
    %v2717 = vld [vmem:[#allocation11 + $0x368] sm:$0xff]
    %v2718 = vld [vmem:[#allocation11 + $0x370] sm:$0xff]
    %v2719 = vld [vmem:[#allocation11 + $0x378] sm:$0xff]
    %v2720 = vld [vmem:[#allocation11 + $0x380] sm:$0xff]
    %v2721 = vld [vmem:[#allocation11 + $0x388] sm:$0xff]
    %v2722 = vld [vmem:[#allocation11 + $0x390] sm:$0xff]
    %v2723 = vld [vmem:[#allocation11 + $0x398] sm:$0xff]
    %v2724 = vld [vmem:[#allocation11 + $0x3a0] sm:$0xff]
    %v2725 = vld [vmem:[#allocation11 + $0x3a8] sm:$0xff]
    %v2726 = vld [vmem:[#allocation11 + $0x3b0] sm:$0xff]
    %v2727 = vld [vmem:[#allocation11 + $0x3b8] sm:$0xff]
    %v2728 = vld [vmem:[#allocation11 + $0x3c0] sm:$0xff]
    %v2729 = vld [vmem:[#allocation11 + $0x3c8] sm:$0xff]
    %v2730 = vld [vmem:[#allocation11 + $0x3d0] sm:$0xff]
    %v2731 = vld [vmem:[#allocation11 + $0x3d8] sm:$0xff]
    %v2732 = vld [vmem:[#allocation11 + $0x3e0] sm:$0xff]
    %v2733 = vld [vmem:[#allocation11 + $0x3e8] sm:$0xff]
    %v2734 = vld [vmem:[#allocation11 + $0x3f0] sm:$0xff]
    %v2735 = vld [vmem:[#allocation11 + $0x3f8] sm:$0xff]
    %2736 = vmatprep.subr.mxu0 %v2669
    %2737 = vmatpush1.msra.mxu0 %v2668
    %2738 = vmatprep.subr.mxu0 %v2665
    %2739 = vmatpush1.msra.mxu0 %v2664
    %2740 = vmatprep.subr.mxu0 %v2661
    %2741 = vmatpush1.msra.mxu0 %v2660
    %2742 = vmatprep.subr.mxu0 %v2657
    %2743 = vmatpush1.msra.mxu0 %v2656
    %2744 = vmatprep.subr.mxu0 %v2653
    %2745 = vmatpush1.msra.mxu0 %v2652
    %2746 = vmatprep.subr.mxu0 %v2649
    %2747 = vmatpush1.msra.mxu0 %v2648
    %2748 = vmatprep.subr.mxu0 %v2645
    %2749 = vmatpush1.msra.mxu0 %v2644
    %2750 = vmatprep.subr.mxu0 %v2641
    %2751 = vmatpush1.msra.mxu0 %v2640
    %2752 = vmatprep.subr.mxu0 %v2637
    %2753 = vmatpush1.msra.mxu0 %v2636
    %2754 = vmatprep.subr.mxu0 %v2633
    %2755 = vmatpush1.msra.mxu0 %v2632
    %2756 = vmatprep.subr.mxu0 %v2629
    %2757 = vmatpush1.msra.mxu0 %v2628
    %2758 = vmatprep.subr.mxu0 %v2625
    %2759 = vmatpush1.msra.mxu0 %v2624
    %2760 = vmatprep.subr.mxu0 %v2621
    %2761 = vmatpush1.msra.mxu0 %v2620
    %2762 = vmatprep.subr.mxu0 %v2617
    %2763 = vmatpush1.msra.mxu0 %v2616
    %2764 = vmatprep.subr.mxu0 %v2613
    %2765 = vmatpush1.msra.mxu0 %v2612
    %2766 = vmatprep.subr.mxu0 %v2609
    %2767 = vmatpush1.msra.mxu0 %v2608
    %2768 = vmatprep.subr.mxu0 %v2733
    %2769 = vmatpush2.msra.mxu0 %v2732
    %2770 = vmatprep.subr.mxu0 %v2729
    %2771 = vmatpush2.msra.mxu0 %v2728
    %2772 = vmatprep.subr.mxu0 %v2725
    %2773 = vmatpush2.msra.mxu0 %v2724
    %2774 = vmatprep.subr.mxu0 %v2721
    %2775 = vmatpush2.msra.mxu0 %v2720
    %2776 = vmatprep.subr.mxu0 %v2717
    %2777 = vmatpush2.msra.mxu0 %v2716
    %2778 = vmatprep.subr.mxu0 %v2713
    %2779 = vmatpush2.msra.mxu0 %v2712
    %2780 = vmatprep.subr.mxu0 %v2709
    %2781 = vmatpush2.msra.mxu0 %v2708
    %2782 = vmatprep.subr.mxu0 %v2705
    %2783 = vmatpush2.msra.mxu0 %v2704
    %2784 = vmatprep.subr.mxu0 %v2701
    %2785 = vmatpush2.msra.mxu0 %v2700
    %2786 = vmatprep.subr.mxu0 %v2697
    %2787 = vmatpush2.msra.mxu0 %v2696
    %2788 = vmatprep.subr.mxu0 %v2693
    %2789 = vmatpush2.msra.mxu0 %v2692
    %2790 = vmatprep.subr.mxu0 %v2689
    %2791 = vmatpush2.msra.mxu0 %v2688
    %2792 = vmatprep.subr.mxu0 %v2685
    %2793 = vmatpush2.msra.mxu0 %v2684
    %2794 = vmatprep.subr.mxu0 %v2681
    %2795 = vmatpush2.msra.mxu0 %v2680
    %2796 = vmatprep.subr.mxu0 %v2677
    %2797 = vmatpush2.msra.mxu0 %v2676
    %2798 = vmatprep.subr.mxu0 %v2673
    %2799 = vmatpush2.msra.mxu0 %v2672
    %2800 = vmatprep.mubr.f32.mxu0 %v2607
    %2801 = vmatmul.mubr.f32.gmra.mxu0 %v2605
    %v2802 = vpop.f32.mrf.mxu0
    %v2803 = vadd.f32 %v125, %v2802
    %v2804 = vpop.f32.mrf.mxu0
    %v2805 = vadd.f32 %v129, %v2804
    %2806 = vdwg.mxu0
    %2807 = vmatprep.subr.mxu0 %v2671
    %2808 = vmatpush1.msra.mxu0 %v2670
    %2809 = vmatprep.subr.mxu0 %v2667
    %2810 = vmatpush1.msra.mxu0 %v2666
    %2811 = vmatprep.subr.mxu0 %v2663
    %2812 = vmatpush1.msra.mxu0 %v2662
    %2813 = vmatprep.subr.mxu0 %v2659
    %2814 = vmatpush1.msra.mxu0 %v2658
    %2815 = vmatprep.subr.mxu0 %v2655
    %2816 = vmatpush1.msra.mxu0 %v2654
    %2817 = vmatprep.subr.mxu0 %v2651
    %2818 = vmatpush1.msra.mxu0 %v2650
    %2819 = vmatprep.subr.mxu0 %v2647
    %2820 = vmatpush1.msra.mxu0 %v2646
    %2821 = vmatprep.subr.mxu0 %v2643
    %2822 = vmatpush1.msra.mxu0 %v2642
    %2823 = vmatprep.subr.mxu0 %v2639
    %2824 = vmatpush1.msra.mxu0 %v2638
    %2825 = vmatprep.subr.mxu0 %v2635
    %2826 = vmatpush1.msra.mxu0 %v2634
    %2827 = vmatprep.subr.mxu0 %v2631
    %2828 = vmatpush1.msra.mxu0 %v2630
    %2829 = vmatprep.subr.mxu0 %v2627
    %2830 = vmatpush1.msra.mxu0 %v2626
    %2831 = vmatprep.subr.mxu0 %v2623
    %2832 = vmatpush1.msra.mxu0 %v2622
    %2833 = vmatprep.subr.mxu0 %v2619
    %2834 = vmatpush1.msra.mxu0 %v2618
    %2835 = vmatprep.subr.mxu0 %v2615
    %2836 = vmatpush1.msra.mxu0 %v2614
    %2837 = vmatprep.subr.mxu0 %v2611
    %2838 = vmatpush1.msra.mxu0 %v2610
    %2839 = vmatprep.subr.mxu0 %v2735
    %2840 = vmatpush2.msra.mxu0 %v2734
    %2841 = vmatprep.subr.mxu0 %v2731
    %2842 = vmatpush2.msra.mxu0 %v2730
    %2843 = vmatprep.subr.mxu0 %v2727
    %2844 = vmatpush2.msra.mxu0 %v2726
    %2845 = vmatprep.subr.mxu0 %v2723
    %2846 = vmatpush2.msra.mxu0 %v2722
    %2847 = vmatprep.subr.mxu0 %v2719
    %2848 = vmatpush2.msra.mxu0 %v2718
    %2849 = vmatprep.subr.mxu0 %v2715
    %2850 = vmatpush2.msra.mxu0 %v2714
    %2851 = vmatprep.subr.mxu0 %v2711
    %2852 = vmatpush2.msra.mxu0 %v2710
    %2853 = vmatprep.subr.mxu0 %v2707
    %2854 = vmatpush2.msra.mxu0 %v2706
    %2855 = vmatprep.subr.mxu0 %v2703
    %2856 = vmatpush2.msra.mxu0 %v2702
    %2857 = vmatprep.subr.mxu0 %v2699
    %2858 = vmatpush2.msra.mxu0 %v2698
    %2859 = vmatprep.subr.mxu0 %v2695
    %2860 = vmatpush2.msra.mxu0 %v2694
    %2861 = vmatprep.subr.mxu0 %v2691
    %2862 = vmatpush2.msra.mxu0 %v2690
    %2863 = vmatprep.subr.mxu0 %v2687
    %2864 = vmatpush2.msra.mxu0 %v2686
    %2865 = vmatprep.subr.mxu0 %v2683
    %2866 = vmatpush2.msra.mxu0 %v2682
    %2867 = vmatprep.subr.mxu0 %v2679
    %2868 = vmatpush2.msra.mxu0 %v2678
    %2869 = vmatprep.subr.mxu0 %v2675
    %2870 = vmatpush2.msra.mxu0 %v2674
    %2871 = vmatprep.mubr.f32.mxu0 %v2607
    %2872 = vmatmul.mubr.f32.gmra.mxu0 %v2605
    %v2873 = vpop.f32.mrf.mxu0
    %v2874 = vadd.f32 %v133, %v2873
    %v2875 = vpop.f32.mrf.mxu0
    %v2876 = vadd.f32 %v137, %v2875
    %2877 = vdwg.mxu0
    %v2878 = vxor.u32 %v2803, 2147483648
    %v2879 = vxor.u32 %v2805, 2147483648
    %v2880 = vmul.f32 %v2878, 1.442695
    %v2881 = vpow.pop %v2880
    %v2882 = vmul.f32 %v2879, 1.442695
    %v2883 = vpow.pop %v2882
    %v2884 = vadd.f32 %v2881, 1.0
    %v2885 = vadd.f32 %v2883, 1.0
    %v2886 = vrcp.pop %v2884
    %v2887 = vmul.f32 1.0, %v2886
    %v2888 = vrcp.pop %v2885
    %v2889 = vmul.f32 1.0, %v2888
    %v2890 = vmul.f32 %v2887, %v2876
    %v2891 = vadd.f32 %v2874, %v2890
    %v2892 = vtanh.pop %v2891
    %v2893 = vsub.f32 %v2607, %v2892
    %v2894 = vmul.f32 %v2889, %v2893
    %v2895 = vadd.f32 %v2892, %v2894
    %2896 = vst [vmem:[%s536] sm:$0x3] %v2895
    %v2897 = vld [vmem:[#allocation2] sm:$0x3]
    %v2898 = vld [vmem:[#allocation8] sm:$0xff]
    %v2899 = vld [vmem:[#allocation8 + $0x8] sm:$0xff]
    %v2900 = vld [vmem:[#allocation8 + $0x10] sm:$0xff]
    %v2901 = vld [vmem:[#allocation8 + $0x18] sm:$0xff]
    %v2902 = vld [vmem:[#allocation8 + $0x20] sm:$0xff]
    %v2903 = vld [vmem:[#allocation8 + $0x28] sm:$0xff]
    %v2904 = vld [vmem:[#allocation8 + $0x30] sm:$0xff]
    %v2905 = vld [vmem:[#allocation8 + $0x38] sm:$0xff]
    %v2906 = vld [vmem:[#allocation8 + $0x40] sm:$0xff]
    %v2907 = vld [vmem:[#allocation8 + $0x48] sm:$0xff]
    %v2908 = vld [vmem:[#allocation8 + $0x50] sm:$0xff]
    %v2909 = vld [vmem:[#allocation8 + $0x58] sm:$0xff]
    %v2910 = vld [vmem:[#allocation8 + $0x60] sm:$0xff]
    %v2911 = vld [vmem:[#allocation8 + $0x68] sm:$0xff]
    %v2912 = vld [vmem:[#allocation8 + $0x70] sm:$0xff]
    %v2913 = vld [vmem:[#allocation8 + $0x78] sm:$0xff]
    %v2914 = vld [vmem:[#allocation8 + $0x80] sm:$0xff]
    %v2915 = vld [vmem:[#allocation8 + $0x88] sm:$0xff]
    %v2916 = vld [vmem:[#allocation8 + $0x90] sm:$0xff]
    %v2917 = vld [vmem:[#allocation8 + $0x98] sm:$0xff]
    %v2918 = vld [vmem:[#allocation8 + $0xa0] sm:$0xff]
    %v2919 = vld [vmem:[#allocation8 + $0xa8] sm:$0xff]
    %v2920 = vld [vmem:[#allocation8 + $0xb0] sm:$0xff]
    %v2921 = vld [vmem:[#allocation8 + $0xb8] sm:$0xff]
    %v2922 = vld [vmem:[#allocation8 + $0xc0] sm:$0xff]
    %v2923 = vld [vmem:[#allocation8 + $0xc8] sm:$0xff]
    %v2924 = vld [vmem:[#allocation8 + $0xd0] sm:$0xff]
    %v2925 = vld [vmem:[#allocation8 + $0xd8] sm:$0xff]
    %v2926 = vld [vmem:[#allocation8 + $0xe0] sm:$0xff]
    %v2927 = vld [vmem:[#allocation8 + $0xe8] sm:$0xff]
    %v2928 = vld [vmem:[#allocation8 + $0xf0] sm:$0xff]
    %v2929 = vld [vmem:[#allocation8 + $0xf8] sm:$0xff]
    %v2930 = vld [vmem:[#allocation8 + $0x100] sm:$0xff]
    %v2931 = vld [vmem:[#allocation8 + $0x108] sm:$0xff]
    %v2932 = vld [vmem:[#allocation8 + $0x110] sm:$0xff]
    %v2933 = vld [vmem:[#allocation8 + $0x118] sm:$0xff]
    %v2934 = vld [vmem:[#allocation8 + $0x120] sm:$0xff]
    %v2935 = vld [vmem:[#allocation8 + $0x128] sm:$0xff]
    %v2936 = vld [vmem:[#allocation8 + $0x130] sm:$0xff]
    %v2937 = vld [vmem:[#allocation8 + $0x138] sm:$0xff]
    %v2938 = vld [vmem:[#allocation8 + $0x140] sm:$0xff]
    %v2939 = vld [vmem:[#allocation8 + $0x148] sm:$0xff]
    %v2940 = vld [vmem:[#allocation8 + $0x150] sm:$0xff]
    %v2941 = vld [vmem:[#allocation8 + $0x158] sm:$0xff]
    %v2942 = vld [vmem:[#allocation8 + $0x160] sm:$0xff]
    %v2943 = vld [vmem:[#allocation8 + $0x168] sm:$0xff]
    %v2944 = vld [vmem:[#allocation8 + $0x170] sm:$0xff]
    %v2945 = vld [vmem:[#allocation8 + $0x178] sm:$0xff]
    %2946 = vmatprep.subr.mxu0 %v2944
    %2947 = vmatpush1.msra.mxu0 %v2943
    %2948 = vmatprep.subr.mxu0 %v2941
    %2949 = vmatpush1.msra.mxu0 %v2940
    %2950 = vmatprep.subr.mxu0 %v2938
    %2951 = vmatpush1.msra.mxu0 %v2937
    %2952 = vmatprep.subr.mxu0 %v2935
    %2953 = vmatpush1.msra.mxu0 %v2934
    %2954 = vmatprep.subr.mxu0 %v2932
    %2955 = vmatpush1.msra.mxu0 %v2931
    %2956 = vmatprep.subr.mxu0 %v2929
    %2957 = vmatpush1.msra.mxu0 %v2928
    %2958 = vmatprep.subr.mxu0 %v2926
    %2959 = vmatpush1.msra.mxu0 %v2925
    %2960 = vmatprep.subr.mxu0 %v2923
    %2961 = vmatpush1.msra.mxu0 %v2922
    %2962 = vmatprep.subr.mxu0 %v2920
    %2963 = vmatpush1.msra.mxu0 %v2919
    %2964 = vmatprep.subr.mxu0 %v2917
    %2965 = vmatpush1.msra.mxu0 %v2916
    %2966 = vmatprep.subr.mxu0 %v2914
    %2967 = vmatpush1.msra.mxu0 %v2913
    %2968 = vmatprep.subr.mxu0 %v2911
    %2969 = vmatpush1.msra.mxu0 %v2910
    %2970 = vmatprep.subr.mxu0 %v2908
    %2971 = vmatpush1.msra.mxu0 %v2907
    %2972 = vmatprep.subr.mxu0 %v2905
    %2973 = vmatpush1.msra.mxu0 %v2904
    %2974 = vmatprep.subr.mxu0 %v2902
    %2975 = vmatpush1.msra.mxu0 %v2901
    %2976 = vmatprep.subr.mxu0 %v2899
    %2977 = vmatpush1.msra.mxu0 %v2898
    %2978 = vmatprep.subr.mxu0 0.0
    %2979 = vmatpush2.msra.mxu0 0.0
    %2980 = vmatprep.subr.mxu0 0.0
    %2981 = vmatpush2.msra.mxu0 0.0
    %2982 = vmatprep.subr.mxu0 0.0
    %2983 = vmatpush2.msra.mxu0 0.0
    %2984 = vmatprep.subr.mxu0 0.0
    %2985 = vmatpush2.msra.mxu0 0.0
    %2986 = vmatprep.subr.mxu0 0.0
    %2987 = vmatpush2.msra.mxu0 0.0
    %2988 = vmatprep.subr.mxu0 0.0
    %2989 = vmatpush2.msra.mxu0 0.0
    %2990 = vmatprep.subr.mxu0 0.0
    %2991 = vmatpush2.msra.mxu0 0.0
    %2992 = vmatprep.subr.mxu0 0.0
    %2993 = vmatpush2.msra.mxu0 0.0
    %2994 = vmatprep.subr.mxu0 0.0
    %2995 = vmatpush2.msra.mxu0 0.0
    %2996 = vmatprep.subr.mxu0 0.0
    %2997 = vmatpush2.msra.mxu0 0.0
    %2998 = vmatprep.subr.mxu0 0.0
    %2999 = vmatpush2.msra.mxu0 0.0
    %3000 = vmatprep.subr.mxu0 0.0
    %3001 = vmatpush2.msra.mxu0 0.0
    %3002 = vmatprep.subr.mxu0 0.0
    %3003 = vmatpush2.msra.mxu0 0.0
    %3004 = vmatprep.subr.mxu0 0.0
    %3005 = vmatpush2.msra.mxu0 0.0
    %3006 = vmatprep.subr.mxu0 0.0
    %3007 = vmatpush2.msra.mxu0 0.0
    %3008 = vmatprep.subr.mxu0 0.0
    %3009 = vmatpush2.msra.mxu0 0.0
    %3010 = vmatprep.mubr.f32.mxu0 0.0
    %3011 = vmatmul.mubr.f32.gmra.mxu0 %v2897
    %v3012 = vpop.f32.mrf.mxu0
    %v3013 = vadd.f32 %v108, %v3012
    %v3014 = vpop.f32.mrf.mxu0
    %v3015 = vadd.f32 %v112, %v3014
    %3016 = vdwg.mxu0
    %3017 = vmatprep.subr.mxu0 0.0
    %3018 = vmatpush1.msra.mxu0 %v2945
    %3019 = vmatprep.subr.mxu0 0.0
    %3020 = vmatpush1.msra.mxu0 %v2942
    %3021 = vmatprep.subr.mxu0 0.0
    %3022 = vmatpush1.msra.mxu0 %v2939
    %3023 = vmatprep.subr.mxu0 0.0
    %3024 = vmatpush1.msra.mxu0 %v2936
    %3025 = vmatprep.subr.mxu0 0.0
    %3026 = vmatpush1.msra.mxu0 %v2933
    %3027 = vmatprep.subr.mxu0 0.0
    %3028 = vmatpush1.msra.mxu0 %v2930
    %3029 = vmatprep.subr.mxu0 0.0
    %3030 = vmatpush1.msra.mxu0 %v2927
    %3031 = vmatprep.subr.mxu0 0.0
    %3032 = vmatpush1.msra.mxu0 %v2924
    %3033 = vmatprep.subr.mxu0 0.0
    %3034 = vmatpush1.msra.mxu0 %v2921
    %3035 = vmatprep.subr.mxu0 0.0
    %3036 = vmatpush1.msra.mxu0 %v2918
    %3037 = vmatprep.subr.mxu0 0.0
    %3038 = vmatpush1.msra.mxu0 %v2915
    %3039 = vmatprep.subr.mxu0 0.0
    %3040 = vmatpush1.msra.mxu0 %v2912
    %3041 = vmatprep.subr.mxu0 0.0
    %3042 = vmatpush1.msra.mxu0 %v2909
    %3043 = vmatprep.subr.mxu0 0.0
    %3044 = vmatpush1.msra.mxu0 %v2906
    %3045 = vmatprep.subr.mxu0 0.0
    %3046 = vmatpush1.msra.mxu0 %v2903
    %3047 = vmatprep.subr.mxu0 0.0
    %3048 = vmatpush1.msra.mxu0 %v2900
    %3049 = vmatprep.subr.mxu0 0.0
    %3050 = vmatpush2.msra.mxu0 0.0
    %3051 = vmatprep.subr.mxu0 0.0
    %3052 = vmatpush2.msra.mxu0 0.0
    %3053 = vmatprep.subr.mxu0 0.0
    %3054 = vmatpush2.msra.mxu0 0.0
    %3055 = vmatprep.subr.mxu0 0.0
    %3056 = vmatpush2.msra.mxu0 0.0
    %3057 = vmatprep.subr.mxu0 0.0
    %3058 = vmatpush2.msra.mxu0 0.0
    %3059 = vmatprep.subr.mxu0 0.0
    %3060 = vmatpush2.msra.mxu0 0.0
    %3061 = vmatprep.subr.mxu0 0.0
    %3062 = vmatpush2.msra.mxu0 0.0
    %3063 = vmatprep.subr.mxu0 0.0
    %3064 = vmatpush2.msra.mxu0 0.0
    %3065 = vmatprep.subr.mxu0 0.0
    %3066 = vmatpush2.msra.mxu0 0.0
    %3067 = vmatprep.subr.mxu0 0.0
    %3068 = vmatpush2.msra.mxu0 0.0
    %3069 = vmatprep.subr.mxu0 0.0
    %3070 = vmatpush2.msra.mxu0 0.0
    %3071 = vmatprep.subr.mxu0 0.0
    %3072 = vmatpush2.msra.mxu0 0.0
    %3073 = vmatprep.subr.mxu0 0.0
    %3074 = vmatpush2.msra.mxu0 0.0
    %3075 = vmatprep.subr.mxu0 0.0
    %3076 = vmatpush2.msra.mxu0 0.0
    %3077 = vmatprep.subr.mxu0 0.0
    %3078 = vmatpush2.msra.mxu0 0.0
    %3079 = vmatprep.subr.mxu0 0.0
    %3080 = vmatpush2.msra.mxu0 0.0
    %3081 = vmatprep.mubr.f32.mxu0 0.0
    %3082 = vmatmul.mubr.f32.gmra.mxu0 %v2897
    %v3083 = vpop.f32.mrf.mxu0
    %v3084 = vadd.f32 %v116, %v3083
    %v3085 = vpop.f32.mrf.mxu0
    %3086 = vdwg.mxu0
    %v3089 = vrot.slane %v3013, 6
    %v3090 = vrot.slane %v3015, 6
    %v3093 = vadd.f32 %v246, %v3089
    %v3094 = vadd.f32 %v248, %v3090
    %v3095 = vxor.u32 %v3093, 2147483648
    %v3096 = vxor.u32 %v3094, 2147483648
    %v3097 = vmul.f32 %v3095, 1.442695
    %v3098 = vpow.pop %v3097
    %v3099 = vmul.f32 %v3096, 1.442695
    %v3100 = vpow.pop %v3099
    %v3101 = vadd.f32 %v3098, 1.0
    %v3102 = vadd.f32 %v3100, 1.0
    %v3103 = vrcp.pop %v3101
    %v3104 = vmul.f32 1.0, %v3103
    %v3105 = vrcp.pop %v3102
    %v3106 = vmul.f32 1.0, %v3105
    %v3108 = vrot.slane %v3084, 6
    %v3110 = vmul.f32 %v3104, %v3108
    %v3111 = vadd.f32 %v322, %v3110
    %v3112 = vtanh.pop %v3111
    %v3114 = vrot.slane %v3112, 2
    %v3116 = vsub.f32 %v2897, %v3114
    %v3118 = vrot.slane %v3116, 6
    %v3120 = vmul.f32 %v3106, %v3118
    %v3121 = vadd.f32 %v3112, %v3120
    %3122 = vst [vmem:[#allocation2 - $0x2] sm:$0xc] %v3121
    %v3123 = vld [vmem:[%s536] sm:$0x3]
    %v3125 = vrot.slane %v3123, 6
    %v3126 = vld [vmem:[#allocation11] sm:$0xff]
    %v3127 = vld [vmem:[#allocation11 + $0x8] sm:$0xff]
    %v3128 = vld [vmem:[#allocation11 + $0x10] sm:$0xff]
    %v3129 = vld [vmem:[#allocation11 + $0x18] sm:$0xff]
    %v3130 = vld [vmem:[#allocation11 + $0x20] sm:$0xff]
    %v3131 = vld [vmem:[#allocation11 + $0x28] sm:$0xff]
    %v3132 = vld [vmem:[#allocation11 + $0x30] sm:$0xff]
    %v3133 = vld [vmem:[#allocation11 + $0x38] sm:$0xff]
    %v3134 = vld [vmem:[#allocation11 + $0x40] sm:$0xff]
    %v3135 = vld [vmem:[#allocation11 + $0x48] sm:$0xff]
    %v3136 = vld [vmem:[#allocation11 + $0x50] sm:$0xff]
    %v3137 = vld [vmem:[#allocation11 + $0x58] sm:$0xff]
    %v3138 = vld [vmem:[#allocation11 + $0x60] sm:$0xff]
    %v3139 = vld [vmem:[#allocation11 + $0x68] sm:$0xff]
    %v3140 = vld [vmem:[#allocation11 + $0x70] sm:$0xff]
    %v3141 = vld [vmem:[#allocation11 + $0x78] sm:$0xff]
    %v3142 = vld [vmem:[#allocation11 + $0x80] sm:$0xff]
    %v3143 = vld [vmem:[#allocation11 + $0x88] sm:$0xff]
    %v3144 = vld [vmem:[#allocation11 + $0x90] sm:$0xff]
    %v3145 = vld [vmem:[#allocation11 + $0x98] sm:$0xff]
    %v3146 = vld [vmem:[#allocation11 + $0xa0] sm:$0xff]
    %v3147 = vld [vmem:[#allocation11 + $0xa8] sm:$0xff]
    %v3148 = vld [vmem:[#allocation11 + $0xb0] sm:$0xff]
    %v3149 = vld [vmem:[#allocation11 + $0xb8] sm:$0xff]
    %v3150 = vld [vmem:[#allocation11 + $0xc0] sm:$0xff]
    %v3151 = vld [vmem:[#allocation11 + $0xc8] sm:$0xff]
    %v3152 = vld [vmem:[#allocation11 + $0xd0] sm:$0xff]
    %v3153 = vld [vmem:[#allocation11 + $0xd8] sm:$0xff]
    %v3154 = vld [vmem:[#allocation11 + $0xe0] sm:$0xff]
    %v3155 = vld [vmem:[#allocation11 + $0xe8] sm:$0xff]
    %v3156 = vld [vmem:[#allocation11 + $0xf0] sm:$0xff]
    %v3157 = vld [vmem:[#allocation11 + $0xf8] sm:$0xff]
    %v3158 = vld [vmem:[#allocation11 + $0x100] sm:$0xff]
    %v3159 = vld [vmem:[#allocation11 + $0x108] sm:$0xff]
    %v3160 = vld [vmem:[#allocation11 + $0x110] sm:$0xff]
    %v3161 = vld [vmem:[#allocation11 + $0x118] sm:$0xff]
    %v3162 = vld [vmem:[#allocation11 + $0x120] sm:$0xff]
    %v3163 = vld [vmem:[#allocation11 + $0x128] sm:$0xff]
    %v3164 = vld [vmem:[#allocation11 + $0x130] sm:$0xff]
    %v3165 = vld [vmem:[#allocation11 + $0x138] sm:$0xff]
    %v3166 = vld [vmem:[#allocation11 + $0x140] sm:$0xff]
    %v3167 = vld [vmem:[#allocation11 + $0x148] sm:$0xff]
    %v3168 = vld [vmem:[#allocation11 + $0x150] sm:$0xff]
    %v3169 = vld [vmem:[#allocation11 + $0x158] sm:$0xff]
    %v3170 = vld [vmem:[#allocation11 + $0x160] sm:$0xff]
    %v3171 = vld [vmem:[#allocation11 + $0x168] sm:$0xff]
    %v3172 = vld [vmem:[#allocation11 + $0x170] sm:$0xff]
    %v3173 = vld [vmem:[#allocation11 + $0x178] sm:$0xff]
    %v3174 = vld [vmem:[#allocation11 + $0x180] sm:$0xff]
    %v3175 = vld [vmem:[#allocation11 + $0x188] sm:$0xff]
    %v3176 = vld [vmem:[#allocation11 + $0x190] sm:$0xff]
    %v3177 = vld [vmem:[#allocation11 + $0x198] sm:$0xff]
    %v3178 = vld [vmem:[#allocation11 + $0x1a0] sm:$0xff]
    %v3179 = vld [vmem:[#allocation11 + $0x1a8] sm:$0xff]
    %v3180 = vld [vmem:[#allocation11 + $0x1b0] sm:$0xff]
    %v3181 = vld [vmem:[#allocation11 + $0x1b8] sm:$0xff]
    %v3182 = vld [vmem:[#allocation11 + $0x1c0] sm:$0xff]
    %v3183 = vld [vmem:[#allocation11 + $0x1c8] sm:$0xff]
    %v3184 = vld [vmem:[#allocation11 + $0x1d0] sm:$0xff]
    %v3185 = vld [vmem:[#allocation11 + $0x1d8] sm:$0xff]
    %v3186 = vld [vmem:[#allocation11 + $0x1e0] sm:$0xff]
    %v3187 = vld [vmem:[#allocation11 + $0x1e8] sm:$0xff]
    %v3188 = vld [vmem:[#allocation11 + $0x1f0] sm:$0xff]
    %v3189 = vld [vmem:[#allocation11 + $0x1f8] sm:$0xff]
    %v3190 = vld [vmem:[#allocation11 + $0x200] sm:$0xff]
    %v3191 = vld [vmem:[#allocation11 + $0x208] sm:$0xff]
    %v3192 = vld [vmem:[#allocation11 + $0x210] sm:$0xff]
    %v3193 = vld [vmem:[#allocation11 + $0x218] sm:$0xff]
    %v3194 = vld [vmem:[#allocation11 + $0x220] sm:$0xff]
    %v3195 = vld [vmem:[#allocation11 + $0x228] sm:$0xff]
    %v3196 = vld [vmem:[#allocation11 + $0x230] sm:$0xff]
    %v3197 = vld [vmem:[#allocation11 + $0x238] sm:$0xff]
    %v3198 = vld [vmem:[#allocation11 + $0x240] sm:$0xff]
    %v3199 = vld [vmem:[#allocation11 + $0x248] sm:$0xff]
    %v3200 = vld [vmem:[#allocation11 + $0x250] sm:$0xff]
    %v3201 = vld [vmem:[#allocation11 + $0x258] sm:$0xff]
    %v3202 = vld [vmem:[#allocation11 + $0x260] sm:$0xff]
    %v3203 = vld [vmem:[#allocation11 + $0x268] sm:$0xff]
    %v3204 = vld [vmem:[#allocation11 + $0x270] sm:$0xff]
    %v3205 = vld [vmem:[#allocation11 + $0x278] sm:$0xff]
    %v3206 = vld [vmem:[#allocation11 + $0x280] sm:$0xff]
    %v3207 = vld [vmem:[#allocation11 + $0x288] sm:$0xff]
    %v3208 = vld [vmem:[#allocation11 + $0x290] sm:$0xff]
    %v3209 = vld [vmem:[#allocation11 + $0x298] sm:$0xff]
    %v3210 = vld [vmem:[#allocation11 + $0x2a0] sm:$0xff]
    %v3211 = vld [vmem:[#allocation11 + $0x2a8] sm:$0xff]
    %v3212 = vld [vmem:[#allocation11 + $0x2b0] sm:$0xff]
    %v3213 = vld [vmem:[#allocation11 + $0x2b8] sm:$0xff]
    %v3214 = vld [vmem:[#allocation11 + $0x2c0] sm:$0xff]
    %v3215 = vld [vmem:[#allocation11 + $0x2c8] sm:$0xff]
    %v3216 = vld [vmem:[#allocation11 + $0x2d0] sm:$0xff]
    %v3217 = vld [vmem:[#allocation11 + $0x2d8] sm:$0xff]
    %v3218 = vld [vmem:[#allocation11 + $0x2e0] sm:$0xff]
    %v3219 = vld [vmem:[#allocation11 + $0x2e8] sm:$0xff]
    %v3220 = vld [vmem:[#allocation11 + $0x2f0] sm:$0xff]
    %v3221 = vld [vmem:[#allocation11 + $0x2f8] sm:$0xff]
    %v3222 = vld [vmem:[#allocation11 + $0x300] sm:$0xff]
    %v3223 = vld [vmem:[#allocation11 + $0x308] sm:$0xff]
    %v3224 = vld [vmem:[#allocation11 + $0x310] sm:$0xff]
    %v3225 = vld [vmem:[#allocation11 + $0x318] sm:$0xff]
    %v3226 = vld [vmem:[#allocation11 + $0x320] sm:$0xff]
    %v3227 = vld [vmem:[#allocation11 + $0x328] sm:$0xff]
    %v3228 = vld [vmem:[#allocation11 + $0x330] sm:$0xff]
    %v3229 = vld [vmem:[#allocation11 + $0x338] sm:$0xff]
    %v3230 = vld [vmem:[#allocation11 + $0x340] sm:$0xff]
    %v3231 = vld [vmem:[#allocation11 + $0x348] sm:$0xff]
    %v3232 = vld [vmem:[#allocation11 + $0x350] sm:$0xff]
    %v3233 = vld [vmem:[#allocation11 + $0x358] sm:$0xff]
    %v3234 = vld [vmem:[#allocation11 + $0x360] sm:$0xff]
    %v3235 = vld [vmem:[#allocation11 + $0x368] sm:$0xff]
    %v3236 = vld [vmem:[#allocation11 + $0x370] sm:$0xff]
    %v3237 = vld [vmem:[#allocation11 + $0x378] sm:$0xff]
    %v3238 = vld [vmem:[#allocation11 + $0x380] sm:$0xff]
    %v3239 = vld [vmem:[#allocation11 + $0x388] sm:$0xff]
    %v3240 = vld [vmem:[#allocation11 + $0x390] sm:$0xff]
    %v3241 = vld [vmem:[#allocation11 + $0x398] sm:$0xff]
    %v3242 = vld [vmem:[#allocation11 + $0x3a0] sm:$0xff]
    %v3243 = vld [vmem:[#allocation11 + $0x3a8] sm:$0xff]
    %v3244 = vld [vmem:[#allocation11 + $0x3b0] sm:$0xff]
    %v3245 = vld [vmem:[#allocation11 + $0x3b8] sm:$0xff]
    %v3246 = vld [vmem:[#allocation11 + $0x3c0] sm:$0xff]
    %v3247 = vld [vmem:[#allocation11 + $0x3c8] sm:$0xff]
    %v3248 = vld [vmem:[#allocation11 + $0x3d0] sm:$0xff]
    %v3249 = vld [vmem:[#allocation11 + $0x3d8] sm:$0xff]
    %v3250 = vld [vmem:[#allocation11 + $0x3e0] sm:$0xff]
    %v3251 = vld [vmem:[#allocation11 + $0x3e8] sm:$0xff]
    %v3252 = vld [vmem:[#allocation11 + $0x3f0] sm:$0xff]
    %v3253 = vld [vmem:[#allocation11 + $0x3f8] sm:$0xff]
    %v3255 = vrot.slane %v3121, 2
    %v3256 = vrot.slane %v3125, 2
    %3259 = vmatprep.subr.mxu0 %v3187
    %3260 = vmatpush1.msra.mxu0 %v3186
    %3261 = vmatprep.subr.mxu0 %v3183
    %3262 = vmatpush1.msra.mxu0 %v3182
    %3263 = vmatprep.subr.mxu0 %v3179
    %3264 = vmatpush1.msra.mxu0 %v3178
    %3265 = vmatprep.subr.mxu0 %v3175
    %3266 = vmatpush1.msra.mxu0 %v3174
    %3267 = vmatprep.subr.mxu0 %v3171
    %3268 = vmatpush1.msra.mxu0 %v3170
    %3269 = vmatprep.subr.mxu0 %v3167
    %3270 = vmatpush1.msra.mxu0 %v3166
    %3271 = vmatprep.subr.mxu0 %v3163
    %3272 = vmatpush1.msra.mxu0 %v3162
    %3273 = vmatprep.subr.mxu0 %v3159
    %3274 = vmatpush1.msra.mxu0 %v3158
    %3275 = vmatprep.subr.mxu0 %v3155
    %3276 = vmatpush1.msra.mxu0 %v3154
    %3277 = vmatprep.subr.mxu0 %v3151
    %3278 = vmatpush1.msra.mxu0 %v3150
    %3279 = vmatprep.subr.mxu0 %v3147
    %3280 = vmatpush1.msra.mxu0 %v3146
    %3281 = vmatprep.subr.mxu0 %v3143
    %3282 = vmatpush1.msra.mxu0 %v3142
    %3283 = vmatprep.subr.mxu0 %v3139
    %3284 = vmatpush1.msra.mxu0 %v3138
    %3285 = vmatprep.subr.mxu0 %v3135
    %3286 = vmatpush1.msra.mxu0 %v3134
    %3287 = vmatprep.subr.mxu0 %v3131
    %3288 = vmatpush1.msra.mxu0 %v3130
    %3289 = vmatprep.subr.mxu0 %v3127
    %3290 = vmatpush1.msra.mxu0 %v3126
    %3291 = vmatprep.subr.mxu0 %v3251
    %3292 = vmatpush2.msra.mxu0 %v3250
    %3293 = vmatprep.subr.mxu0 %v3247
    %3294 = vmatpush2.msra.mxu0 %v3246
    %3295 = vmatprep.subr.mxu0 %v3243
    %3296 = vmatpush2.msra.mxu0 %v3242
    %3297 = vmatprep.subr.mxu0 %v3239
    %3298 = vmatpush2.msra.mxu0 %v3238
    %3299 = vmatprep.subr.mxu0 %v3235
    %3300 = vmatpush2.msra.mxu0 %v3234
    %3301 = vmatprep.subr.mxu0 %v3231
    %3302 = vmatpush2.msra.mxu0 %v3230
    %3303 = vmatprep.subr.mxu0 %v3227
    %3304 = vmatpush2.msra.mxu0 %v3226
    %3305 = vmatprep.subr.mxu0 %v3223
    %3306 = vmatpush2.msra.mxu0 %v3222
    %3307 = vmatprep.subr.mxu0 %v3219
    %3308 = vmatpush2.msra.mxu0 %v3218
    %3309 = vmatprep.subr.mxu0 %v3215
    %3310 = vmatpush2.msra.mxu0 %v3214
    %3311 = vmatprep.subr.mxu0 %v3211
    %3312 = vmatpush2.msra.mxu0 %v3210
    %3313 = vmatprep.subr.mxu0 %v3207
    %3314 = vmatpush2.msra.mxu0 %v3206
    %3315 = vmatprep.subr.mxu0 %v3203
    %3316 = vmatpush2.msra.mxu0 %v3202
    %3317 = vmatprep.subr.mxu0 %v3199
    %3318 = vmatpush2.msra.mxu0 %v3198
    %3319 = vmatprep.subr.mxu0 %v3195
    %3320 = vmatpush2.msra.mxu0 %v3194
    %3321 = vmatprep.subr.mxu0 %v3191
    %3322 = vmatpush2.msra.mxu0 %v3190
    %3323 = vmatprep.mubr.f32.mxu0 %v3256
    %3324 = vmatmul.mubr.f32.gmra.mxu0 %v3255
    %v3325 = vpop.f32.mrf.mxu0
    %v3326 = vadd.f32 %v125, %v3325
    %v3327 = vpop.f32.mrf.mxu0
    %v3328 = vadd.f32 %v129, %v3327
    %3329 = vdwg.mxu0
    %3330 = vmatprep.subr.mxu0 %v3189
    %3331 = vmatpush1.msra.mxu0 %v3188
    %3332 = vmatprep.subr.mxu0 %v3185
    %3333 = vmatpush1.msra.mxu0 %v3184
    %3334 = vmatprep.subr.mxu0 %v3181
    %3335 = vmatpush1.msra.mxu0 %v3180
    %3336 = vmatprep.subr.mxu0 %v3177
    %3337 = vmatpush1.msra.mxu0 %v3176
    %3338 = vmatprep.subr.mxu0 %v3173
    %3339 = vmatpush1.msra.mxu0 %v3172
    %3340 = vmatprep.subr.mxu0 %v3169
    %3341 = vmatpush1.msra.mxu0 %v3168
    %3342 = vmatprep.subr.mxu0 %v3165
    %3343 = vmatpush1.msra.mxu0 %v3164
    %3344 = vmatprep.subr.mxu0 %v3161
    %3345 = vmatpush1.msra.mxu0 %v3160
    %3346 = vmatprep.subr.mxu0 %v3157
    %3347 = vmatpush1.msra.mxu0 %v3156
    %3348 = vmatprep.subr.mxu0 %v3153
    %3349 = vmatpush1.msra.mxu0 %v3152
    %3350 = vmatprep.subr.mxu0 %v3149
    %3351 = vmatpush1.msra.mxu0 %v3148
    %3352 = vmatprep.subr.mxu0 %v3145
    %3353 = vmatpush1.msra.mxu0 %v3144
    %3354 = vmatprep.subr.mxu0 %v3141
    %3355 = vmatpush1.msra.mxu0 %v3140
    %3356 = vmatprep.subr.mxu0 %v3137
    %3357 = vmatpush1.msra.mxu0 %v3136
    %3358 = vmatprep.subr.mxu0 %v3133
    %3359 = vmatpush1.msra.mxu0 %v3132
    %3360 = vmatprep.subr.mxu0 %v3129
    %3361 = vmatpush1.msra.mxu0 %v3128
    %3362 = vmatprep.subr.mxu0 %v3253
    %3363 = vmatpush2.msra.mxu0 %v3252
    %3364 = vmatprep.subr.mxu0 %v3249
    %3365 = vmatpush2.msra.mxu0 %v3248
    %3366 = vmatprep.subr.mxu0 %v3245
    %3367 = vmatpush2.msra.mxu0 %v3244
    %3368 = vmatprep.subr.mxu0 %v3241
    %3369 = vmatpush2.msra.mxu0 %v3240
    %3370 = vmatprep.subr.mxu0 %v3237
    %3371 = vmatpush2.msra.mxu0 %v3236
    %3372 = vmatprep.subr.mxu0 %v3233
    %3373 = vmatpush2.msra.mxu0 %v3232
    %3374 = vmatprep.subr.mxu0 %v3229
    %3375 = vmatpush2.msra.mxu0 %v3228
    %3376 = vmatprep.subr.mxu0 %v3225
    %3377 = vmatpush2.msra.mxu0 %v3224
    %3378 = vmatprep.subr.mxu0 %v3221
    %3379 = vmatpush2.msra.mxu0 %v3220
    %3380 = vmatprep.subr.mxu0 %v3217
    %3381 = vmatpush2.msra.mxu0 %v3216
    %3382 = vmatprep.subr.mxu0 %v3213
    %3383 = vmatpush2.msra.mxu0 %v3212
    %3384 = vmatprep.subr.mxu0 %v3209
    %3385 = vmatpush2.msra.mxu0 %v3208
    %3386 = vmatprep.subr.mxu0 %v3205
    %3387 = vmatpush2.msra.mxu0 %v3204
    %3388 = vmatprep.subr.mxu0 %v3201
    %3389 = vmatpush2.msra.mxu0 %v3200
    %3390 = vmatprep.subr.mxu0 %v3197
    %3391 = vmatpush2.msra.mxu0 %v3196
    %3392 = vmatprep.subr.mxu0 %v3193
    %3393 = vmatpush2.msra.mxu0 %v3192
    %3394 = vmatprep.mubr.f32.mxu0 %v3256
    %3395 = vmatmul.mubr.f32.gmra.mxu0 %v3255
    %v3396 = vpop.f32.mrf.mxu0
    %v3397 = vadd.f32 %v133, %v3396
    %v3398 = vpop.f32.mrf.mxu0
    %v3399 = vadd.f32 %v137, %v3398
    %3400 = vdwg.mxu0
    %v3401 = vxor.u32 %v3326, 2147483648
    %v3402 = vxor.u32 %v3328, 2147483648
    %v3403 = vmul.f32 %v3401, 1.442695
    %v3404 = vpow.pop %v3403
    %v3405 = vmul.f32 %v3402, 1.442695
    %v3406 = vpow.pop %v3405
    %v3407 = vadd.f32 %v3404, 1.0
    %v3408 = vadd.f32 %v3406, 1.0
    %v3409 = vrcp.pop %v3407
    %v3410 = vmul.f32 1.0, %v3409
    %v3411 = vrcp.pop %v3408
    %v3412 = vmul.f32 1.0, %v3411
    %v3413 = vmul.f32 %v3410, %v3399
    %v3414 = vadd.f32 %v3397, %v3413
    %v3415 = vtanh.pop %v3414
    %v3416 = vsub.f32 %v3123, %v3415
    %v3417 = vmul.f32 %v3412, %v3416
    %v3418 = vadd.f32 %v3415, %v3417
    %3419 = vst [vmem:[%s536] sm:$0x3] %v3418
    %v3420 = vld [vmem:[#allocation2] sm:$0x3]
    %v3421 = vld [vmem:[#allocation8] sm:$0xff]
    %v3422 = vld [vmem:[#allocation8 + $0x8] sm:$0xff]
    %v3423 = vld [vmem:[#allocation8 + $0x10] sm:$0xff]
    %v3424 = vld [vmem:[#allocation8 + $0x18] sm:$0xff]
    %v3425 = vld [vmem:[#allocation8 + $0x20] sm:$0xff]
    %v3426 = vld [vmem:[#allocation8 + $0x28] sm:$0xff]
    %v3427 = vld [vmem:[#allocation8 + $0x30] sm:$0xff]
    %v3428 = vld [vmem:[#allocation8 + $0x38] sm:$0xff]
    %v3429 = vld [vmem:[#allocation8 + $0x40] sm:$0xff]
    %v3430 = vld [vmem:[#allocation8 + $0x48] sm:$0xff]
    %v3431 = vld [vmem:[#allocation8 + $0x50] sm:$0xff]
    %v3432 = vld [vmem:[#allocation8 + $0x58] sm:$0xff]
    %v3433 = vld [vmem:[#allocation8 + $0x60] sm:$0xff]
    %v3434 = vld [vmem:[#allocation8 + $0x68] sm:$0xff]
    %v3435 = vld [vmem:[#allocation8 + $0x70] sm:$0xff]
    %v3436 = vld [vmem:[#allocation8 + $0x78] sm:$0xff]
    %v3437 = vld [vmem:[#allocation8 + $0x80] sm:$0xff]
    %v3438 = vld [vmem:[#allocation8 + $0x88] sm:$0xff]
    %v3439 = vld [vmem:[#allocation8 + $0x90] sm:$0xff]
    %v3440 = vld [vmem:[#allocation8 + $0x98] sm:$0xff]
    %v3441 = vld [vmem:[#allocation8 + $0xa0] sm:$0xff]
    %v3442 = vld [vmem:[#allocation8 + $0xa8] sm:$0xff]
    %v3443 = vld [vmem:[#allocation8 + $0xb0] sm:$0xff]
    %v3444 = vld [vmem:[#allocation8 + $0xb8] sm:$0xff]
    %v3445 = vld [vmem:[#allocation8 + $0xc0] sm:$0xff]
    %v3446 = vld [vmem:[#allocation8 + $0xc8] sm:$0xff]
    %v3447 = vld [vmem:[#allocation8 + $0xd0] sm:$0xff]
    %v3448 = vld [vmem:[#allocation8 + $0xd8] sm:$0xff]
    %v3449 = vld [vmem:[#allocation8 + $0xe0] sm:$0xff]
    %v3450 = vld [vmem:[#allocation8 + $0xe8] sm:$0xff]
    %v3451 = vld [vmem:[#allocation8 + $0xf0] sm:$0xff]
    %v3452 = vld [vmem:[#allocation8 + $0xf8] sm:$0xff]
    %v3453 = vld [vmem:[#allocation8 + $0x100] sm:$0xff]
    %v3454 = vld [vmem:[#allocation8 + $0x108] sm:$0xff]
    %v3455 = vld [vmem:[#allocation8 + $0x110] sm:$0xff]
    %v3456 = vld [vmem:[#allocation8 + $0x118] sm:$0xff]
    %v3457 = vld [vmem:[#allocation8 + $0x120] sm:$0xff]
    %v3458 = vld [vmem:[#allocation8 + $0x128] sm:$0xff]
    %v3459 = vld [vmem:[#allocation8 + $0x130] sm:$0xff]
    %v3460 = vld [vmem:[#allocation8 + $0x138] sm:$0xff]
    %v3461 = vld [vmem:[#allocation8 + $0x140] sm:$0xff]
    %v3462 = vld [vmem:[#allocation8 + $0x148] sm:$0xff]
    %v3463 = vld [vmem:[#allocation8 + $0x150] sm:$0xff]
    %v3464 = vld [vmem:[#allocation8 + $0x158] sm:$0xff]
    %v3465 = vld [vmem:[#allocation8 + $0x160] sm:$0xff]
    %v3466 = vld [vmem:[#allocation8 + $0x168] sm:$0xff]
    %v3467 = vld [vmem:[#allocation8 + $0x170] sm:$0xff]
    %v3468 = vld [vmem:[#allocation8 + $0x178] sm:$0xff]
    %3469 = vmatprep.subr.mxu0 %v3467
    %3470 = vmatpush1.msra.mxu0 %v3466
    %3471 = vmatprep.subr.mxu0 %v3464
    %3472 = vmatpush1.msra.mxu0 %v3463
    %3473 = vmatprep.subr.mxu0 %v3461
    %3474 = vmatpush1.msra.mxu0 %v3460
    %3475 = vmatprep.subr.mxu0 %v3458
    %3476 = vmatpush1.msra.mxu0 %v3457
    %3477 = vmatprep.subr.mxu0 %v3455
    %3478 = vmatpush1.msra.mxu0 %v3454
    %3479 = vmatprep.subr.mxu0 %v3452
    %3480 = vmatpush1.msra.mxu0 %v3451
    %3481 = vmatprep.subr.mxu0 %v3449
    %3482 = vmatpush1.msra.mxu0 %v3448
    %3483 = vmatprep.subr.mxu0 %v3446
    %3484 = vmatpush1.msra.mxu0 %v3445
    %3485 = vmatprep.subr.mxu0 %v3443
    %3486 = vmatpush1.msra.mxu0 %v3442
    %3487 = vmatprep.subr.mxu0 %v3440
    %3488 = vmatpush1.msra.mxu0 %v3439
    %3489 = vmatprep.subr.mxu0 %v3437
    %3490 = vmatpush1.msra.mxu0 %v3436
    %3491 = vmatprep.subr.mxu0 %v3434
    %3492 = vmatpush1.msra.mxu0 %v3433
    %3493 = vmatprep.subr.mxu0 %v3431
    %3494 = vmatpush1.msra.mxu0 %v3430
    %3495 = vmatprep.subr.mxu0 %v3428
    %3496 = vmatpush1.msra.mxu0 %v3427
    %3497 = vmatprep.subr.mxu0 %v3425
    %3498 = vmatpush1.msra.mxu0 %v3424
    %3499 = vmatprep.subr.mxu0 %v3422
    %3500 = vmatpush1.msra.mxu0 %v3421
    %3501 = vmatprep.subr.mxu0 0.0
    %3502 = vmatpush2.msra.mxu0 0.0
    %3503 = vmatprep.subr.mxu0 0.0
    %3504 = vmatpush2.msra.mxu0 0.0
    %3505 = vmatprep.subr.mxu0 0.0
    %3506 = vmatpush2.msra.mxu0 0.0
    %3507 = vmatprep.subr.mxu0 0.0
    %3508 = vmatpush2.msra.mxu0 0.0
    %3509 = vmatprep.subr.mxu0 0.0
    %3510 = vmatpush2.msra.mxu0 0.0
    %3511 = vmatprep.subr.mxu0 0.0
    %3512 = vmatpush2.msra.mxu0 0.0
    %3513 = vmatprep.subr.mxu0 0.0
    %3514 = vmatpush2.msra.mxu0 0.0
    %3515 = vmatprep.subr.mxu0 0.0
    %3516 = vmatpush2.msra.mxu0 0.0
    %3517 = vmatprep.subr.mxu0 0.0
    %3518 = vmatpush2.msra.mxu0 0.0
    %3519 = vmatprep.subr.mxu0 0.0
    %3520 = vmatpush2.msra.mxu0 0.0
    %3521 = vmatprep.subr.mxu0 0.0
    %3522 = vmatpush2.msra.mxu0 0.0
    %3523 = vmatprep.subr.mxu0 0.0
    %3524 = vmatpush2.msra.mxu0 0.0
    %3525 = vmatprep.subr.mxu0 0.0
    %3526 = vmatpush2.msra.mxu0 0.0
    %3527 = vmatprep.subr.mxu0 0.0
    %3528 = vmatpush2.msra.mxu0 0.0
    %3529 = vmatprep.subr.mxu0 0.0
    %3530 = vmatpush2.msra.mxu0 0.0
    %3531 = vmatprep.subr.mxu0 0.0
    %3532 = vmatpush2.msra.mxu0 0.0
    %3533 = vmatprep.mubr.f32.mxu0 0.0
    %3534 = vmatmul.mubr.f32.gmra.mxu0 %v3420
    %v3535 = vpop.f32.mrf.mxu0
    %v3536 = vadd.f32 %v108, %v3535
    %v3537 = vpop.f32.mrf.mxu0
    %v3538 = vadd.f32 %v112, %v3537
    %3539 = vdwg.mxu0
    %3540 = vmatprep.subr.mxu0 0.0
    %3541 = vmatpush1.msra.mxu0 %v3468
    %3542 = vmatprep.subr.mxu0 0.0
    %3543 = vmatpush1.msra.mxu0 %v3465
    %3544 = vmatprep.subr.mxu0 0.0
    %3545 = vmatpush1.msra.mxu0 %v3462
    %3546 = vmatprep.subr.mxu0 0.0
    %3547 = vmatpush1.msra.mxu0 %v3459
    %3548 = vmatprep.subr.mxu0 0.0
    %3549 = vmatpush1.msra.mxu0 %v3456
    %3550 = vmatprep.subr.mxu0 0.0
    %3551 = vmatpush1.msra.mxu0 %v3453
    %3552 = vmatprep.subr.mxu0 0.0
    %3553 = vmatpush1.msra.mxu0 %v3450
    %3554 = vmatprep.subr.mxu0 0.0
    %3555 = vmatpush1.msra.mxu0 %v3447
    %3556 = vmatprep.subr.mxu0 0.0
    %3557 = vmatpush1.msra.mxu0 %v3444
    %3558 = vmatprep.subr.mxu0 0.0
    %3559 = vmatpush1.msra.mxu0 %v3441
    %3560 = vmatprep.subr.mxu0 0.0
    %3561 = vmatpush1.msra.mxu0 %v3438
    %3562 = vmatprep.subr.mxu0 0.0
    %3563 = vmatpush1.msra.mxu0 %v3435
    %3564 = vmatprep.subr.mxu0 0.0
    %3565 = vmatpush1.msra.mxu0 %v3432
    %3566 = vmatprep.subr.mxu0 0.0
    %3567 = vmatpush1.msra.mxu0 %v3429
    %3568 = vmatprep.subr.mxu0 0.0
    %3569 = vmatpush1.msra.mxu0 %v3426
    %3570 = vmatprep.subr.mxu0 0.0
    %3571 = vmatpush1.msra.mxu0 %v3423
    %3572 = vmatprep.subr.mxu0 0.0
    %3573 = vmatpush2.msra.mxu0 0.0
    %3574 = vmatprep.subr.mxu0 0.0
    %3575 = vmatpush2.msra.mxu0 0.0
    %3576 = vmatprep.subr.mxu0 0.0
    %3577 = vmatpush2.msra.mxu0 0.0
    %3578 = vmatprep.subr.mxu0 0.0
    %3579 = vmatpush2.msra.mxu0 0.0
    %3580 = vmatprep.subr.mxu0 0.0
    %3581 = vmatpush2.msra.mxu0 0.0
    %3582 = vmatprep.subr.mxu0 0.0
    %3583 = vmatpush2.msra.mxu0 0.0
    %3584 = vmatprep.subr.mxu0 0.0
    %3585 = vmatpush2.msra.mxu0 0.0
    %3586 = vmatprep.subr.mxu0 0.0
    %3587 = vmatpush2.msra.mxu0 0.0
    %3588 = vmatprep.subr.mxu0 0.0
    %3589 = vmatpush2.msra.mxu0 0.0
    %3590 = vmatprep.subr.mxu0 0.0
    %3591 = vmatpush2.msra.mxu0 0.0
    %3592 = vmatprep.subr.mxu0 0.0
    %3593 = vmatpush2.msra.mxu0 0.0
    %3594 = vmatprep.subr.mxu0 0.0
    %3595 = vmatpush2.msra.mxu0 0.0
    %3596 = vmatprep.subr.mxu0 0.0
    %3597 = vmatpush2.msra.mxu0 0.0
    %3598 = vmatprep.subr.mxu0 0.0
    %3599 = vmatpush2.msra.mxu0 0.0
    %3600 = vmatprep.subr.mxu0 0.0
    %3601 = vmatpush2.msra.mxu0 0.0
    %3602 = vmatprep.subr.mxu0 0.0
    %3603 = vmatpush2.msra.mxu0 0.0
    %3604 = vmatprep.mubr.f32.mxu0 0.0
    %3605 = vmatmul.mubr.f32.gmra.mxu0 %v3420
    %v3606 = vpop.f32.mrf.mxu0
    %v3607 = vadd.f32 %v116, %v3606
    %v3608 = vpop.f32.mrf.mxu0
    %3609 = vdwg.mxu0
    %v3612 = vrot.slane %v3536, 4
    %v3613 = vrot.slane %v3538, 4
    %v3616 = vadd.f32 %v246, %v3612
    %v3617 = vadd.f32 %v248, %v3613
    %v3618 = vxor.u32 %v3616, 2147483648
    %v3619 = vxor.u32 %v3617, 2147483648
    %v3620 = vmul.f32 %v3618, 1.442695
    %v3621 = vpow.pop %v3620
    %v3622 = vmul.f32 %v3619, 1.442695
    %v3623 = vpow.pop %v3622
    %v3624 = vadd.f32 %v3621, 1.0
    %v3625 = vadd.f32 %v3623, 1.0
    %v3626 = vrcp.pop %v3624
    %v3627 = vmul.f32 1.0, %v3626
    %v3628 = vrcp.pop %v3625
    %v3629 = vmul.f32 1.0, %v3628
    %v3631 = vrot.slane %v3607, 4
    %v3633 = vmul.f32 %v3627, %v3631
    %v3634 = vadd.f32 %v322, %v3633
    %v3635 = vtanh.pop %v3634
    %v3637 = vrot.slane %v3635, 4
    %v3639 = vsub.f32 %v3420, %v3637
    %v3641 = vrot.slane %v3639, 4
    %v3643 = vmul.f32 %v3629, %v3641
    %v3644 = vadd.f32 %v3635, %v3643
    %3645 = vst [vmem:[#allocation2 - $0x4] sm:$0x30] %v3644
    %v3646 = vld [vmem:[%s536] sm:$0x3]
    %v3648 = vrot.slane %v3646, 4
    %v3649 = vld [vmem:[#allocation11] sm:$0xff]
    %v3650 = vld [vmem:[#allocation11 + $0x8] sm:$0xff]
    %v3651 = vld [vmem:[#allocation11 + $0x10] sm:$0xff]
    %v3652 = vld [vmem:[#allocation11 + $0x18] sm:$0xff]
    %v3653 = vld [vmem:[#allocation11 + $0x20] sm:$0xff]
    %v3654 = vld [vmem:[#allocation11 + $0x28] sm:$0xff]
    %v3655 = vld [vmem:[#allocation11 + $0x30] sm:$0xff]
    %v3656 = vld [vmem:[#allocation11 + $0x38] sm:$0xff]
    %v3657 = vld [vmem:[#allocation11 + $0x40] sm:$0xff]
    %v3658 = vld [vmem:[#allocation11 + $0x48] sm:$0xff]
    %v3659 = vld [vmem:[#allocation11 + $0x50] sm:$0xff]
    %v3660 = vld [vmem:[#allocation11 + $0x58] sm:$0xff]
    %v3661 = vld [vmem:[#allocation11 + $0x60] sm:$0xff]
    %v3662 = vld [vmem:[#allocation11 + $0x68] sm:$0xff]
    %v3663 = vld [vmem:[#allocation11 + $0x70] sm:$0xff]
    %v3664 = vld [vmem:[#allocation11 + $0x78] sm:$0xff]
    %v3665 = vld [vmem:[#allocation11 + $0x80] sm:$0xff]
    %v3666 = vld [vmem:[#allocation11 + $0x88] sm:$0xff]
    %v3667 = vld [vmem:[#allocation11 + $0x90] sm:$0xff]
    %v3668 = vld [vmem:[#allocation11 + $0x98] sm:$0xff]
    %v3669 = vld [vmem:[#allocation11 + $0xa0] sm:$0xff]
    %v3670 = vld [vmem:[#allocation11 + $0xa8] sm:$0xff]
    %v3671 = vld [vmem:[#allocation11 + $0xb0] sm:$0xff]
    %v3672 = vld [vmem:[#allocation11 + $0xb8] sm:$0xff]
    %v3673 = vld [vmem:[#allocation11 + $0xc0] sm:$0xff]
    %v3674 = vld [vmem:[#allocation11 + $0xc8] sm:$0xff]
    %v3675 = vld [vmem:[#allocation11 + $0xd0] sm:$0xff]
    %v3676 = vld [vmem:[#allocation11 + $0xd8] sm:$0xff]
    %v3677 = vld [vmem:[#allocation11 + $0xe0] sm:$0xff]
    %v3678 = vld [vmem:[#allocation11 + $0xe8] sm:$0xff]
    %v3679 = vld [vmem:[#allocation11 + $0xf0] sm:$0xff]
    %v3680 = vld [vmem:[#allocation11 + $0xf8] sm:$0xff]
    %v3681 = vld [vmem:[#allocation11 + $0x100] sm:$0xff]
    %v3682 = vld [vmem:[#allocation11 + $0x108] sm:$0xff]
    %v3683 = vld [vmem:[#allocation11 + $0x110] sm:$0xff]
    %v3684 = vld [vmem:[#allocation11 + $0x118] sm:$0xff]
    %v3685 = vld [vmem:[#allocation11 + $0x120] sm:$0xff]
    %v3686 = vld [vmem:[#allocation11 + $0x128] sm:$0xff]
    %v3687 = vld [vmem:[#allocation11 + $0x130] sm:$0xff]
    %v3688 = vld [vmem:[#allocation11 + $0x138] sm:$0xff]
    %v3689 = vld [vmem:[#allocation11 + $0x140] sm:$0xff]
    %v3690 = vld [vmem:[#allocation11 + $0x148] sm:$0xff]
    %v3691 = vld [vmem:[#allocation11 + $0x150] sm:$0xff]
    %v3692 = vld [vmem:[#allocation11 + $0x158] sm:$0xff]
    %v3693 = vld [vmem:[#allocation11 + $0x160] sm:$0xff]
    %v3694 = vld [vmem:[#allocation11 + $0x168] sm:$0xff]
    %v3695 = vld [vmem:[#allocation11 + $0x170] sm:$0xff]
    %v3696 = vld [vmem:[#allocation11 + $0x178] sm:$0xff]
    %v3697 = vld [vmem:[#allocation11 + $0x180] sm:$0xff]
    %v3698 = vld [vmem:[#allocation11 + $0x188] sm:$0xff]
    %v3699 = vld [vmem:[#allocation11 + $0x190] sm:$0xff]
    %v3700 = vld [vmem:[#allocation11 + $0x198] sm:$0xff]
    %v3701 = vld [vmem:[#allocation11 + $0x1a0] sm:$0xff]
    %v3702 = vld [vmem:[#allocation11 + $0x1a8] sm:$0xff]
    %v3703 = vld [vmem:[#allocation11 + $0x1b0] sm:$0xff]
    %v3704 = vld [vmem:[#allocation11 + $0x1b8] sm:$0xff]
    %v3705 = vld [vmem:[#allocation11 + $0x1c0] sm:$0xff]
    %v3706 = vld [vmem:[#allocation11 + $0x1c8] sm:$0xff]
    %v3707 = vld [vmem:[#allocation11 + $0x1d0] sm:$0xff]
    %v3708 = vld [vmem:[#allocation11 + $0x1d8] sm:$0xff]
    %v3709 = vld [vmem:[#allocation11 + $0x1e0] sm:$0xff]
    %v3710 = vld [vmem:[#allocation11 + $0x1e8] sm:$0xff]
    %v3711 = vld [vmem:[#allocation11 + $0x1f0] sm:$0xff]
    %v3712 = vld [vmem:[#allocation11 + $0x1f8] sm:$0xff]
    %v3713 = vld [vmem:[#allocation11 + $0x200] sm:$0xff]
    %v3714 = vld [vmem:[#allocation11 + $0x208] sm:$0xff]
    %v3715 = vld [vmem:[#allocation11 + $0x210] sm:$0xff]
    %v3716 = vld [vmem:[#allocation11 + $0x218] sm:$0xff]
    %v3717 = vld [vmem:[#allocation11 + $0x220] sm:$0xff]
    %v3718 = vld [vmem:[#allocation11 + $0x228] sm:$0xff]
    %v3719 = vld [vmem:[#allocation11 + $0x230] sm:$0xff]
    %v3720 = vld [vmem:[#allocation11 + $0x238] sm:$0xff]
    %v3721 = vld [vmem:[#allocation11 + $0x240] sm:$0xff]
    %v3722 = vld [vmem:[#allocation11 + $0x248] sm:$0xff]
    %v3723 = vld [vmem:[#allocation11 + $0x250] sm:$0xff]
    %v3724 = vld [vmem:[#allocation11 + $0x258] sm:$0xff]
    %v3725 = vld [vmem:[#allocation11 + $0x260] sm:$0xff]
    %v3726 = vld [vmem:[#allocation11 + $0x268] sm:$0xff]
    %v3727 = vld [vmem:[#allocation11 + $0x270] sm:$0xff]
    %v3728 = vld [vmem:[#allocation11 + $0x278] sm:$0xff]
    %v3729 = vld [vmem:[#allocation11 + $0x280] sm:$0xff]
    %v3730 = vld [vmem:[#allocation11 + $0x288] sm:$0xff]
    %v3731 = vld [vmem:[#allocation11 + $0x290] sm:$0xff]
    %v3732 = vld [vmem:[#allocation11 + $0x298] sm:$0xff]
    %v3733 = vld [vmem:[#allocation11 + $0x2a0] sm:$0xff]
    %v3734 = vld [vmem:[#allocation11 + $0x2a8] sm:$0xff]
    %v3735 = vld [vmem:[#allocation11 + $0x2b0] sm:$0xff]
    %v3736 = vld [vmem:[#allocation11 + $0x2b8] sm:$0xff]
    %v3737 = vld [vmem:[#allocation11 + $0x2c0] sm:$0xff]
    %v3738 = vld [vmem:[#allocation11 + $0x2c8] sm:$0xff]
    %v3739 = vld [vmem:[#allocation11 + $0x2d0] sm:$0xff]
    %v3740 = vld [vmem:[#allocation11 + $0x2d8] sm:$0xff]
    %v3741 = vld [vmem:[#allocation11 + $0x2e0] sm:$0xff]
    %v3742 = vld [vmem:[#allocation11 + $0x2e8] sm:$0xff]
    %v3743 = vld [vmem:[#allocation11 + $0x2f0] sm:$0xff]
    %v3744 = vld [vmem:[#allocation11 + $0x2f8] sm:$0xff]
    %v3745 = vld [vmem:[#allocation11 + $0x300] sm:$0xff]
    %v3746 = vld [vmem:[#allocation11 + $0x308] sm:$0xff]
    %v3747 = vld [vmem:[#allocation11 + $0x310] sm:$0xff]
    %v3748 = vld [vmem:[#allocation11 + $0x318] sm:$0xff]
    %v3749 = vld [vmem:[#allocation11 + $0x320] sm:$0xff]
    %v3750 = vld [vmem:[#allocation11 + $0x328] sm:$0xff]
    %v3751 = vld [vmem:[#allocation11 + $0x330] sm:$0xff]
    %v3752 = vld [vmem:[#allocation11 + $0x338] sm:$0xff]
    %v3753 = vld [vmem:[#allocation11 + $0x340] sm:$0xff]
    %v3754 = vld [vmem:[#allocation11 + $0x348] sm:$0xff]
    %v3755 = vld [vmem:[#allocation11 + $0x350] sm:$0xff]
    %v3756 = vld [vmem:[#allocation11 + $0x358] sm:$0xff]
    %v3757 = vld [vmem:[#allocation11 + $0x360] sm:$0xff]
    %v3758 = vld [vmem:[#allocation11 + $0x368] sm:$0xff]
    %v3759 = vld [vmem:[#allocation11 + $0x370] sm:$0xff]
    %v3760 = vld [vmem:[#allocation11 + $0x378] sm:$0xff]
    %v3761 = vld [vmem:[#allocation11 + $0x380] sm:$0xff]
    %v3762 = vld [vmem:[#allocation11 + $0x388] sm:$0xff]
    %v3763 = vld [vmem:[#allocation11 + $0x390] sm:$0xff]
    %v3764 = vld [vmem:[#allocation11 + $0x398] sm:$0xff]
    %v3765 = vld [vmem:[#allocation11 + $0x3a0] sm:$0xff]
    %v3766 = vld [vmem:[#allocation11 + $0x3a8] sm:$0xff]
    %v3767 = vld [vmem:[#allocation11 + $0x3b0] sm:$0xff]
    %v3768 = vld [vmem:[#allocation11 + $0x3b8] sm:$0xff]
    %v3769 = vld [vmem:[#allocation11 + $0x3c0] sm:$0xff]
    %v3770 = vld [vmem:[#allocation11 + $0x3c8] sm:$0xff]
    %v3771 = vld [vmem:[#allocation11 + $0x3d0] sm:$0xff]
    %v3772 = vld [vmem:[#allocation11 + $0x3d8] sm:$0xff]
    %v3773 = vld [vmem:[#allocation11 + $0x3e0] sm:$0xff]
    %v3774 = vld [vmem:[#allocation11 + $0x3e8] sm:$0xff]
    %v3775 = vld [vmem:[#allocation11 + $0x3f0] sm:$0xff]
    %v3776 = vld [vmem:[#allocation11 + $0x3f8] sm:$0xff]
    %v3778 = vrot.slane %v3644, 4
    %v3779 = vrot.slane %v3648, 4
    %3782 = vmatprep.subr.mxu0 %v3710
    %3783 = vmatpush1.msra.mxu0 %v3709
    %3784 = vmatprep.subr.mxu0 %v3706
    %3785 = vmatpush1.msra.mxu0 %v3705
    %3786 = vmatprep.subr.mxu0 %v3702
    %3787 = vmatpush1.msra.mxu0 %v3701
    %3788 = vmatprep.subr.mxu0 %v3698
    %3789 = vmatpush1.msra.mxu0 %v3697
    %3790 = vmatprep.subr.mxu0 %v3694
    %3791 = vmatpush1.msra.mxu0 %v3693
    %3792 = vmatprep.subr.mxu0 %v3690
    %3793 = vmatpush1.msra.mxu0 %v3689
    %3794 = vmatprep.subr.mxu0 %v3686
    %3795 = vmatpush1.msra.mxu0 %v3685
    %3796 = vmatprep.subr.mxu0 %v3682
    %3797 = vmatpush1.msra.mxu0 %v3681
    %3798 = vmatprep.subr.mxu0 %v3678
    %3799 = vmatpush1.msra.mxu0 %v3677
    %3800 = vmatprep.subr.mxu0 %v3674
    %3801 = vmatpush1.msra.mxu0 %v3673
    %3802 = vmatprep.subr.mxu0 %v3670
    %3803 = vmatpush1.msra.mxu0 %v3669
    %3804 = vmatprep.subr.mxu0 %v3666
    %3805 = vmatpush1.msra.mxu0 %v3665
    %3806 = vmatprep.subr.mxu0 %v3662
    %3807 = vmatpush1.msra.mxu0 %v3661
    %3808 = vmatprep.subr.mxu0 %v3658
    %3809 = vmatpush1.msra.mxu0 %v3657
    %3810 = vmatprep.subr.mxu0 %v3654
    %3811 = vmatpush1.msra.mxu0 %v3653
    %3812 = vmatprep.subr.mxu0 %v3650
    %3813 = vmatpush1.msra.mxu0 %v3649
    %3814 = vmatprep.subr.mxu0 %v3774
    %3815 = vmatpush2.msra.mxu0 %v3773
    %3816 = vmatprep.subr.mxu0 %v3770
    %3817 = vmatpush2.msra.mxu0 %v3769
    %3818 = vmatprep.subr.mxu0 %v3766
    %3819 = vmatpush2.msra.mxu0 %v3765
    %3820 = vmatprep.subr.mxu0 %v3762
    %3821 = vmatpush2.msra.mxu0 %v3761
    %3822 = vmatprep.subr.mxu0 %v3758
    %3823 = vmatpush2.msra.mxu0 %v3757
    %3824 = vmatprep.subr.mxu0 %v3754
    %3825 = vmatpush2.msra.mxu0 %v3753
    %3826 = vmatprep.subr.mxu0 %v3750
    %3827 = vmatpush2.msra.mxu0 %v3749
    %3828 = vmatprep.subr.mxu0 %v3746
    %3829 = vmatpush2.msra.mxu0 %v3745
    %3830 = vmatprep.subr.mxu0 %v3742
    %3831 = vmatpush2.msra.mxu0 %v3741
    %3832 = vmatprep.subr.mxu0 %v3738
    %3833 = vmatpush2.msra.mxu0 %v3737
    %3834 = vmatprep.subr.mxu0 %v3734
    %3835 = vmatpush2.msra.mxu0 %v3733
    %3836 = vmatprep.subr.mxu0 %v3730
    %3837 = vmatpush2.msra.mxu0 %v3729
    %3838 = vmatprep.subr.mxu0 %v3726
    %3839 = vmatpush2.msra.mxu0 %v3725
    %3840 = vmatprep.subr.mxu0 %v3722
    %3841 = vmatpush2.msra.mxu0 %v3721
    %3842 = vmatprep.subr.mxu0 %v3718
    %3843 = vmatpush2.msra.mxu0 %v3717
    %3844 = vmatprep.subr.mxu0 %v3714
    %3845 = vmatpush2.msra.mxu0 %v3713
    %3846 = vmatprep.mubr.f32.mxu0 %v3779
    %3847 = vmatmul.mubr.f32.gmra.mxu0 %v3778
    %v3848 = vpop.f32.mrf.mxu0
    %v3849 = vadd.f32 %v125, %v3848
    %v3850 = vpop.f32.mrf.mxu0
    %v3851 = vadd.f32 %v129, %v3850
    %3852 = vdwg.mxu0
    %3853 = vmatprep.subr.mxu0 %v3712
    %3854 = vmatpush1.msra.mxu0 %v3711
    %3855 = vmatprep.subr.mxu0 %v3708
    %3856 = vmatpush1.msra.mxu0 %v3707
    %3857 = vmatprep.subr.mxu0 %v3704
    %3858 = vmatpush1.msra.mxu0 %v3703
    %3859 = vmatprep.subr.mxu0 %v3700
    %3860 = vmatpush1.msra.mxu0 %v3699
    %3861 = vmatprep.subr.mxu0 %v3696
    %3862 = vmatpush1.msra.mxu0 %v3695
    %3863 = vmatprep.subr.mxu0 %v3692
    %3864 = vmatpush1.msra.mxu0 %v3691
    %3865 = vmatprep.subr.mxu0 %v3688
    %3866 = vmatpush1.msra.mxu0 %v3687
    %3867 = vmatprep.subr.mxu0 %v3684
    %3868 = vmatpush1.msra.mxu0 %v3683
    %3869 = vmatprep.subr.mxu0 %v3680
    %3870 = vmatpush1.msra.mxu0 %v3679
    %3871 = vmatprep.subr.mxu0 %v3676
    %3872 = vmatpush1.msra.mxu0 %v3675
    %3873 = vmatprep.subr.mxu0 %v3672
    %3874 = vmatpush1.msra.mxu0 %v3671
    %3875 = vmatprep.subr.mxu0 %v3668
    %3876 = vmatpush1.msra.mxu0 %v3667
    %3877 = vmatprep.subr.mxu0 %v3664
    %3878 = vmatpush1.msra.mxu0 %v3663
    %3879 = vmatprep.subr.mxu0 %v3660
    %3880 = vmatpush1.msra.mxu0 %v3659
    %3881 = vmatprep.subr.mxu0 %v3656
    %3882 = vmatpush1.msra.mxu0 %v3655
    %3883 = vmatprep.subr.mxu0 %v3652
    %3884 = vmatpush1.msra.mxu0 %v3651
    %3885 = vmatprep.subr.mxu0 %v3776
    %3886 = vmatpush2.msra.mxu0 %v3775
    %3887 = vmatprep.subr.mxu0 %v3772
    %3888 = vmatpush2.msra.mxu0 %v3771
    %3889 = vmatprep.subr.mxu0 %v3768
    %3890 = vmatpush2.msra.mxu0 %v3767
    %3891 = vmatprep.subr.mxu0 %v3764
    %3892 = vmatpush2.msra.mxu0 %v3763
    %3893 = vmatprep.subr.mxu0 %v3760
    %3894 = vmatpush2.msra.mxu0 %v3759
    %3895 = vmatprep.subr.mxu0 %v3756
    %3896 = vmatpush2.msra.mxu0 %v3755
    %3897 = vmatprep.subr.mxu0 %v3752
    %3898 = vmatpush2.msra.mxu0 %v3751
    %3899 = vmatprep.subr.mxu0 %v3748
    %3900 = vmatpush2.msra.mxu0 %v3747
    %3901 = vmatprep.subr.mxu0 %v3744
    %3902 = vmatpush2.msra.mxu0 %v3743
    %3903 = vmatprep.subr.mxu0 %v3740
    %3904 = vmatpush2.msra.mxu0 %v3739
    %3905 = vmatprep.subr.mxu0 %v3736
    %3906 = vmatpush2.msra.mxu0 %v3735
    %3907 = vmatprep.subr.mxu0 %v3732
    %3908 = vmatpush2.msra.mxu0 %v3731
    %3909 = vmatprep.subr.mxu0 %v3728
    %3910 = vmatpush2.msra.mxu0 %v3727
    %3911 = vmatprep.subr.mxu0 %v3724
    %3912 = vmatpush2.msra.mxu0 %v3723
    %3913 = vmatprep.subr.mxu0 %v3720
    %3914 = vmatpush2.msra.mxu0 %v3719
    %3915 = vmatprep.subr.mxu0 %v3716
    %3916 = vmatpush2.msra.mxu0 %v3715
    %3917 = vmatprep.mubr.f32.mxu0 %v3779
    %3918 = vmatmul.mubr.f32.gmra.mxu0 %v3778
    %v3919 = vpop.f32.mrf.mxu0
    %v3920 = vadd.f32 %v133, %v3919
    %v3921 = vpop.f32.mrf.mxu0
    %v3922 = vadd.f32 %v137, %v3921
    %3923 = vdwg.mxu0
    %v3924 = vxor.u32 %v3849, 2147483648
    %v3925 = vxor.u32 %v3851, 2147483648
    %v3926 = vmul.f32 %v3924, 1.442695
    %v3927 = vpow.pop %v3926
    %v3928 = vmul.f32 %v3925, 1.442695
    %v3929 = vpow.pop %v3928
    %v3930 = vadd.f32 %v3927, 1.0
    %v3931 = vadd.f32 %v3929, 1.0
    %v3932 = vrcp.pop %v3930
    %v3933 = vmul.f32 1.0, %v3932
    %v3934 = vrcp.pop %v3931
    %v3935 = vmul.f32 1.0, %v3934
    %v3936 = vmul.f32 %v3933, %v3922
    %v3937 = vadd.f32 %v3920, %v3936
    %v3938 = vtanh.pop %v3937
    %v3939 = vsub.f32 %v3646, %v3938
    %v3940 = vmul.f32 %v3935, %v3939
    %v3941 = vadd.f32 %v3938, %v3940
    %3942 = vst [vmem:[%s536] sm:$0x3] %v3941
    %v3943 = vld [vmem:[#allocation2] sm:$0x3]
    %v3944 = vld [vmem:[#allocation8] sm:$0xff]
    %v3945 = vld [vmem:[#allocation8 + $0x8] sm:$0xff]
    %v3946 = vld [vmem:[#allocation8 + $0x10] sm:$0xff]
    %v3947 = vld [vmem:[#allocation8 + $0x18] sm:$0xff]
    %v3948 = vld [vmem:[#allocation8 + $0x20] sm:$0xff]
    %v3949 = vld [vmem:[#allocation8 + $0x28] sm:$0xff]
    %v3950 = vld [vmem:[#allocation8 + $0x30] sm:$0xff]
    %v3951 = vld [vmem:[#allocation8 + $0x38] sm:$0xff]
    %v3952 = vld [vmem:[#allocation8 + $0x40] sm:$0xff]
    %v3953 = vld [vmem:[#allocation8 + $0x48] sm:$0xff]
    %v3954 = vld [vmem:[#allocation8 + $0x50] sm:$0xff]
    %v3955 = vld [vmem:[#allocation8 + $0x58] sm:$0xff]
    %v3956 = vld [vmem:[#allocation8 + $0x60] sm:$0xff]
    %v3957 = vld [vmem:[#allocation8 + $0x68] sm:$0xff]
    %v3958 = vld [vmem:[#allocation8 + $0x70] sm:$0xff]
    %v3959 = vld [vmem:[#allocation8 + $0x78] sm:$0xff]
    %v3960 = vld [vmem:[#allocation8 + $0x80] sm:$0xff]
    %v3961 = vld [vmem:[#allocation8 + $0x88] sm:$0xff]
    %v3962 = vld [vmem:[#allocation8 + $0x90] sm:$0xff]
    %v3963 = vld [vmem:[#allocation8 + $0x98] sm:$0xff]
    %v3964 = vld [vmem:[#allocation8 + $0xa0] sm:$0xff]
    %v3965 = vld [vmem:[#allocation8 + $0xa8] sm:$0xff]
    %v3966 = vld [vmem:[#allocation8 + $0xb0] sm:$0xff]
    %v3967 = vld [vmem:[#allocation8 + $0xb8] sm:$0xff]
    %v3968 = vld [vmem:[#allocation8 + $0xc0] sm:$0xff]
    %v3969 = vld [vmem:[#allocation8 + $0xc8] sm:$0xff]
    %v3970 = vld [vmem:[#allocation8 + $0xd0] sm:$0xff]
    %v3971 = vld [vmem:[#allocation8 + $0xd8] sm:$0xff]
    %v3972 = vld [vmem:[#allocation8 + $0xe0] sm:$0xff]
    %v3973 = vld [vmem:[#allocation8 + $0xe8] sm:$0xff]
    %v3974 = vld [vmem:[#allocation8 + $0xf0] sm:$0xff]
    %v3975 = vld [vmem:[#allocation8 + $0xf8] sm:$0xff]
    %v3976 = vld [vmem:[#allocation8 + $0x100] sm:$0xff]
    %v3977 = vld [vmem:[#allocation8 + $0x108] sm:$0xff]
    %v3978 = vld [vmem:[#allocation8 + $0x110] sm:$0xff]
    %v3979 = vld [vmem:[#allocation8 + $0x118] sm:$0xff]
    %v3980 = vld [vmem:[#allocation8 + $0x120] sm:$0xff]
    %v3981 = vld [vmem:[#allocation8 + $0x128] sm:$0xff]
    %v3982 = vld [vmem:[#allocation8 + $0x130] sm:$0xff]
    %v3983 = vld [vmem:[#allocation8 + $0x138] sm:$0xff]
    %v3984 = vld [vmem:[#allocation8 + $0x140] sm:$0xff]
    %v3985 = vld [vmem:[#allocation8 + $0x148] sm:$0xff]
    %v3986 = vld [vmem:[#allocation8 + $0x150] sm:$0xff]
    %v3987 = vld [vmem:[#allocation8 + $0x158] sm:$0xff]
    %v3988 = vld [vmem:[#allocation8 + $0x160] sm:$0xff]
    %v3989 = vld [vmem:[#allocation8 + $0x168] sm:$0xff]
    %v3990 = vld [vmem:[#allocation8 + $0x170] sm:$0xff]
    %v3991 = vld [vmem:[#allocation8 + $0x178] sm:$0xff]
    %3992 = vmatprep.subr.mxu0 %v3990
    %3993 = vmatpush1.msra.mxu0 %v3989
    %3994 = vmatprep.subr.mxu0 %v3987
    %3995 = vmatpush1.msra.mxu0 %v3986
    %3996 = vmatprep.subr.mxu0 %v3984
    %3997 = vmatpush1.msra.mxu0 %v3983
    %3998 = vmatprep.subr.mxu0 %v3981
    %3999 = vmatpush1.msra.mxu0 %v3980
    %4000 = vmatprep.subr.mxu0 %v3978
    %4001 = vmatpush1.msra.mxu0 %v3977
    %4002 = vmatprep.subr.mxu0 %v3975
    %4003 = vmatpush1.msra.mxu0 %v3974
    %4004 = vmatprep.subr.mxu0 %v3972
    %4005 = vmatpush1.msra.mxu0 %v3971
    %4006 = vmatprep.subr.mxu0 %v3969
    %4007 = vmatpush1.msra.mxu0 %v3968
    %4008 = vmatprep.subr.mxu0 %v3966
    %4009 = vmatpush1.msra.mxu0 %v3965
    %4010 = vmatprep.subr.mxu0 %v3963
    %4011 = vmatpush1.msra.mxu0 %v3962
    %4012 = vmatprep.subr.mxu0 %v3960
    %4013 = vmatpush1.msra.mxu0 %v3959
    %4014 = vmatprep.subr.mxu0 %v3957
    %4015 = vmatpush1.msra.mxu0 %v3956
    %4016 = vmatprep.subr.mxu0 %v3954
    %4017 = vmatpush1.msra.mxu0 %v3953
    %4018 = vmatprep.subr.mxu0 %v3951
    %4019 = vmatpush1.msra.mxu0 %v3950
    %4020 = vmatprep.subr.mxu0 %v3948
    %4021 = vmatpush1.msra.mxu0 %v3947
    %4022 = vmatprep.subr.mxu0 %v3945
    %4023 = vmatpush1.msra.mxu0 %v3944
    %4024 = vmatprep.subr.mxu0 0.0
    %4025 = vmatpush2.msra.mxu0 0.0
    %4026 = vmatprep.subr.mxu0 0.0
    %4027 = vmatpush2.msra.mxu0 0.0
    %4028 = vmatprep.subr.mxu0 0.0
    %4029 = vmatpush2.msra.mxu0 0.0
    %4030 = vmatprep.subr.mxu0 0.0
    %4031 = vmatpush2.msra.mxu0 0.0
    %4032 = vmatprep.subr.mxu0 0.0
    %4033 = vmatpush2.msra.mxu0 0.0
    %4034 = vmatprep.subr.mxu0 0.0
    %4035 = vmatpush2.msra.mxu0 0.0
    %4036 = vmatprep.subr.mxu0 0.0
    %4037 = vmatpush2.msra.mxu0 0.0
    %4038 = vmatprep.subr.mxu0 0.0
    %4039 = vmatpush2.msra.mxu0 0.0
    %4040 = vmatprep.subr.mxu0 0.0
    %4041 = vmatpush2.msra.mxu0 0.0
    %4042 = vmatprep.subr.mxu0 0.0
    %4043 = vmatpush2.msra.mxu0 0.0
    %4044 = vmatprep.subr.mxu0 0.0
    %4045 = vmatpush2.msra.mxu0 0.0
    %4046 = vmatprep.subr.mxu0 0.0
    %4047 = vmatpush2.msra.mxu0 0.0
    %4048 = vmatprep.subr.mxu0 0.0
    %4049 = vmatpush2.msra.mxu0 0.0
    %4050 = vmatprep.subr.mxu0 0.0
    %4051 = vmatpush2.msra.mxu0 0.0
    %4052 = vmatprep.subr.mxu0 0.0
    %4053 = vmatpush2.msra.mxu0 0.0
    %4054 = vmatprep.subr.mxu0 0.0
    %4055 = vmatpush2.msra.mxu0 0.0
    %4056 = vmatprep.mubr.f32.mxu0 0.0
    %4057 = vmatmul.mubr.f32.gmra.mxu0 %v3943
    %v4058 = vpop.f32.mrf.mxu0
    %v4059 = vadd.f32 %v108, %v4058
    %v4060 = vpop.f32.mrf.mxu0
    %v4061 = vadd.f32 %v112, %v4060
    %4062 = vdwg.mxu0
    %4063 = vmatprep.subr.mxu0 0.0
    %4064 = vmatpush1.msra.mxu0 %v3991
    %4065 = vmatprep.subr.mxu0 0.0
    %4066 = vmatpush1.msra.mxu0 %v3988
    %4067 = vmatprep.subr.mxu0 0.0
    %4068 = vmatpush1.msra.mxu0 %v3985
    %4069 = vmatprep.subr.mxu0 0.0
    %4070 = vmatpush1.msra.mxu0 %v3982
    %4071 = vmatprep.subr.mxu0 0.0
    %4072 = vmatpush1.msra.mxu0 %v3979
    %4073 = vmatprep.subr.mxu0 0.0
    %4074 = vmatpush1.msra.mxu0 %v3976
    %4075 = vmatprep.subr.mxu0 0.0
    %4076 = vmatpush1.msra.mxu0 %v3973
    %4077 = vmatprep.subr.mxu0 0.0
    %4078 = vmatpush1.msra.mxu0 %v3970
    %4079 = vmatprep.subr.mxu0 0.0
    %4080 = vmatpush1.msra.mxu0 %v3967
    %4081 = vmatprep.subr.mxu0 0.0
    %4082 = vmatpush1.msra.mxu0 %v3964
    %4083 = vmatprep.subr.mxu0 0.0
    %4084 = vmatpush1.msra.mxu0 %v3961
    %4085 = vmatprep.subr.mxu0 0.0
    %4086 = vmatpush1.msra.mxu0 %v3958
    %4087 = vmatprep.subr.mxu0 0.0
    %4088 = vmatpush1.msra.mxu0 %v3955
    %4089 = vmatprep.subr.mxu0 0.0
    %4090 = vmatpush1.msra.mxu0 %v3952
    %4091 = vmatprep.subr.mxu0 0.0
    %4092 = vmatpush1.msra.mxu0 %v3949
    %4093 = vmatprep.subr.mxu0 0.0
    %4094 = vmatpush1.msra.mxu0 %v3946
    %4095 = vmatprep.subr.mxu0 0.0
    %4096 = vmatpush2.msra.mxu0 0.0
    %4097 = vmatprep.subr.mxu0 0.0
    %4098 = vmatpush2.msra.mxu0 0.0
    %4099 = vmatprep.subr.mxu0 0.0
    %4100 = vmatpush2.msra.mxu0 0.0
    %4101 = vmatprep.subr.mxu0 0.0
    %4102 = vmatpush2.msra.mxu0 0.0
    %4103 = vmatprep.subr.mxu0 0.0
    %4104 = vmatpush2.msra.mxu0 0.0
    %4105 = vmatprep.subr.mxu0 0.0
    %4106 = vmatpush2.msra.mxu0 0.0
    %4107 = vmatprep.subr.mxu0 0.0
    %4108 = vmatpush2.msra.mxu0 0.0
    %4109 = vmatprep.subr.mxu0 0.0
    %4110 = vmatpush2.msra.mxu0 0.0
    %4111 = vmatprep.subr.mxu0 0.0
    %4112 = vmatpush2.msra.mxu0 0.0
    %4113 = vmatprep.subr.mxu0 0.0
    %4114 = vmatpush2.msra.mxu0 0.0
    %4115 = vmatprep.subr.mxu0 0.0
    %4116 = vmatpush2.msra.mxu0 0.0
    %4117 = vmatprep.subr.mxu0 0.0
    %4118 = vmatpush2.msra.mxu0 0.0
    %4119 = vmatprep.subr.mxu0 0.0
    %4120 = vmatpush2.msra.mxu0 0.0
    %4121 = vmatprep.subr.mxu0 0.0
    %4122 = vmatpush2.msra.mxu0 0.0
    %4123 = vmatprep.subr.mxu0 0.0
    %4124 = vmatpush2.msra.mxu0 0.0
    %4125 = vmatprep.subr.mxu0 0.0
    %4126 = vmatpush2.msra.mxu0 0.0
    %4127 = vmatprep.mubr.f32.mxu0 0.0
    %4128 = vmatmul.mubr.f32.gmra.mxu0 %v3943
    %v4129 = vpop.f32.mrf.mxu0
    %v4130 = vadd.f32 %v116, %v4129
    %v4131 = vpop.f32.mrf.mxu0
    %4132 = vdwg.mxu0
    %v4135 = vrot.slane %v4059, 2
    %v4136 = vrot.slane %v4061, 2
    %v4139 = vadd.f32 %v246, %v4135
    %v4140 = vadd.f32 %v248, %v4136
    %v4141 = vxor.u32 %v4139, 2147483648
    %v4142 = vxor.u32 %v4140, 2147483648
    %v4143 = vmul.f32 %v4141, 1.442695
    %v4144 = vpow.pop %v4143
    %v4145 = vmul.f32 %v4142, 1.442695
    %v4146 = vpow.pop %v4145
    %v4147 = vadd.f32 %v4144, 1.0
    %v4148 = vadd.f32 %v4146, 1.0
    %v4149 = vrcp.pop %v4147
    %v4150 = vmul.f32 1.0, %v4149
    %v4151 = vrcp.pop %v4148
    %v4152 = vmul.f32 1.0, %v4151
    %v4154 = vrot.slane %v4130, 2
    %v4156 = vmul.f32 %v4150, %v4154
    %v4157 = vadd.f32 %v322, %v4156
    %v4158 = vtanh.pop %v4157
    %v4160 = vrot.slane %v4158, 6
    %v4162 = vsub.f32 %v3943, %v4160
    %v4164 = vrot.slane %v4162, 2
    %v4166 = vmul.f32 %v4152, %v4164
    %v4167 = vadd.f32 %v4158, %v4166
    %4168 = vst [vmem:[#allocation2 - $0x6] sm:$0xc0] %v4167
    %v4169 = vld [vmem:[%s536] sm:$0x3]
    %v4171 = vrot.slane %v4169, 2
    %v4172 = vld [vmem:[#allocation11] sm:$0xff]
    %v4173 = vld [vmem:[#allocation11 + $0x8] sm:$0xff]
    %v4174 = vld [vmem:[#allocation11 + $0x10] sm:$0xff]
    %v4175 = vld [vmem:[#allocation11 + $0x18] sm:$0xff]
    %v4176 = vld [vmem:[#allocation11 + $0x20] sm:$0xff]
    %v4177 = vld [vmem:[#allocation11 + $0x28] sm:$0xff]
    %v4178 = vld [vmem:[#allocation11 + $0x30] sm:$0xff]
    %v4179 = vld [vmem:[#allocation11 + $0x38] sm:$0xff]
    %v4180 = vld [vmem:[#allocation11 + $0x40] sm:$0xff]
    %v4181 = vld [vmem:[#allocation11 + $0x48] sm:$0xff]
    %v4182 = vld [vmem:[#allocation11 + $0x50] sm:$0xff]
    %v4183 = vld [vmem:[#allocation11 + $0x58] sm:$0xff]
    %v4184 = vld [vmem:[#allocation11 + $0x60] sm:$0xff]
    %v4185 = vld [vmem:[#allocation11 + $0x68] sm:$0xff]
    %v4186 = vld [vmem:[#allocation11 + $0x70] sm:$0xff]
    %v4187 = vld [vmem:[#allocation11 + $0x78] sm:$0xff]
    %v4188 = vld [vmem:[#allocation11 + $0x80] sm:$0xff]
    %v4189 = vld [vmem:[#allocation11 + $0x88] sm:$0xff]
    %v4190 = vld [vmem:[#allocation11 + $0x90] sm:$0xff]
    %v4191 = vld [vmem:[#allocation11 + $0x98] sm:$0xff]
    %v4192 = vld [vmem:[#allocation11 + $0xa0] sm:$0xff]
    %v4193 = vld [vmem:[#allocation11 + $0xa8] sm:$0xff]
    %v4194 = vld [vmem:[#allocation11 + $0xb0] sm:$0xff]
    %v4195 = vld [vmem:[#allocation11 + $0xb8] sm:$0xff]
    %v4196 = vld [vmem:[#allocation11 + $0xc0] sm:$0xff]
    %v4197 = vld [vmem:[#allocation11 + $0xc8] sm:$0xff]
    %v4198 = vld [vmem:[#allocation11 + $0xd0] sm:$0xff]
    %v4199 = vld [vmem:[#allocation11 + $0xd8] sm:$0xff]
    %v4200 = vld [vmem:[#allocation11 + $0xe0] sm:$0xff]
    %v4201 = vld [vmem:[#allocation11 + $0xe8] sm:$0xff]
    %v4202 = vld [vmem:[#allocation11 + $0xf0] sm:$0xff]
    %v4203 = vld [vmem:[#allocation11 + $0xf8] sm:$0xff]
    %v4204 = vld [vmem:[#allocation11 + $0x100] sm:$0xff]
    %v4205 = vld [vmem:[#allocation11 + $0x108] sm:$0xff]
    %v4206 = vld [vmem:[#allocation11 + $0x110] sm:$0xff]
    %v4207 = vld [vmem:[#allocation11 + $0x118] sm:$0xff]
    %v4208 = vld [vmem:[#allocation11 + $0x120] sm:$0xff]
    %v4209 = vld [vmem:[#allocation11 + $0x128] sm:$0xff]
    %v4210 = vld [vmem:[#allocation11 + $0x130] sm:$0xff]
    %v4211 = vld [vmem:[#allocation11 + $0x138] sm:$0xff]
    %v4212 = vld [vmem:[#allocation11 + $0x140] sm:$0xff]
    %v4213 = vld [vmem:[#allocation11 + $0x148] sm:$0xff]
    %v4214 = vld [vmem:[#allocation11 + $0x150] sm:$0xff]
    %v4215 = vld [vmem:[#allocation11 + $0x158] sm:$0xff]
    %v4216 = vld [vmem:[#allocation11 + $0x160] sm:$0xff]
    %v4217 = vld [vmem:[#allocation11 + $0x168] sm:$0xff]
    %v4218 = vld [vmem:[#allocation11 + $0x170] sm:$0xff]
    %v4219 = vld [vmem:[#allocation11 + $0x178] sm:$0xff]
    %v4220 = vld [vmem:[#allocation11 + $0x180] sm:$0xff]
    %v4221 = vld [vmem:[#allocation11 + $0x188] sm:$0xff]
    %v4222 = vld [vmem:[#allocation11 + $0x190] sm:$0xff]
    %v4223 = vld [vmem:[#allocation11 + $0x198] sm:$0xff]
    %v4224 = vld [vmem:[#allocation11 + $0x1a0] sm:$0xff]
    %v4225 = vld [vmem:[#allocation11 + $0x1a8] sm:$0xff]
    %v4226 = vld [vmem:[#allocation11 + $0x1b0] sm:$0xff]
    %v4227 = vld [vmem:[#allocation11 + $0x1b8] sm:$0xff]
    %v4228 = vld [vmem:[#allocation11 + $0x1c0] sm:$0xff]
    %v4229 = vld [vmem:[#allocation11 + $0x1c8] sm:$0xff]
    %v4230 = vld [vmem:[#allocation11 + $0x1d0] sm:$0xff]
    %v4231 = vld [vmem:[#allocation11 + $0x1d8] sm:$0xff]
    %v4232 = vld [vmem:[#allocation11 + $0x1e0] sm:$0xff]
    %v4233 = vld [vmem:[#allocation11 + $0x1e8] sm:$0xff]
    %v4234 = vld [vmem:[#allocation11 + $0x1f0] sm:$0xff]
    %v4235 = vld [vmem:[#allocation11 + $0x1f8] sm:$0xff]
    %v4236 = vld [vmem:[#allocation11 + $0x200] sm:$0xff]
    %v4237 = vld [vmem:[#allocation11 + $0x208] sm:$0xff]
    %v4238 = vld [vmem:[#allocation11 + $0x210] sm:$0xff]
    %v4239 = vld [vmem:[#allocation11 + $0x218] sm:$0xff]
    %v4240 = vld [vmem:[#allocation11 + $0x220] sm:$0xff]
    %v4241 = vld [vmem:[#allocation11 + $0x228] sm:$0xff]
    %v4242 = vld [vmem:[#allocation11 + $0x230] sm:$0xff]
    %v4243 = vld [vmem:[#allocation11 + $0x238] sm:$0xff]
    %v4244 = vld [vmem:[#allocation11 + $0x240] sm:$0xff]
    %v4245 = vld [vmem:[#allocation11 + $0x248] sm:$0xff]
    %v4246 = vld [vmem:[#allocation11 + $0x250] sm:$0xff]
    %v4247 = vld [vmem:[#allocation11 + $0x258] sm:$0xff]
    %v4248 = vld [vmem:[#allocation11 + $0x260] sm:$0xff]
    %v4249 = vld [vmem:[#allocation11 + $0x268] sm:$0xff]
    %v4250 = vld [vmem:[#allocation11 + $0x270] sm:$0xff]
    %v4251 = vld [vmem:[#allocation11 + $0x278] sm:$0xff]
    %v4252 = vld [vmem:[#allocation11 + $0x280] sm:$0xff]
    %v4253 = vld [vmem:[#allocation11 + $0x288] sm:$0xff]
    %v4254 = vld [vmem:[#allocation11 + $0x290] sm:$0xff]
    %v4255 = vld [vmem:[#allocation11 + $0x298] sm:$0xff]
    %v4256 = vld [vmem:[#allocation11 + $0x2a0] sm:$0xff]
    %v4257 = vld [vmem:[#allocation11 + $0x2a8] sm:$0xff]
    %v4258 = vld [vmem:[#allocation11 + $0x2b0] sm:$0xff]
    %v4259 = vld [vmem:[#allocation11 + $0x2b8] sm:$0xff]
    %v4260 = vld [vmem:[#allocation11 + $0x2c0] sm:$0xff]
    %v4261 = vld [vmem:[#allocation11 + $0x2c8] sm:$0xff]
    %v4262 = vld [vmem:[#allocation11 + $0x2d0] sm:$0xff]
    %v4263 = vld [vmem:[#allocation11 + $0x2d8] sm:$0xff]
    %v4264 = vld [vmem:[#allocation11 + $0x2e0] sm:$0xff]
    %v4265 = vld [vmem:[#allocation11 + $0x2e8] sm:$0xff]
    %v4266 = vld [vmem:[#allocation11 + $0x2f0] sm:$0xff]
    %v4267 = vld [vmem:[#allocation11 + $0x2f8] sm:$0xff]
    %v4268 = vld [vmem:[#allocation11 + $0x300] sm:$0xff]
    %v4269 = vld [vmem:[#allocation11 + $0x308] sm:$0xff]
    %v4270 = vld [vmem:[#allocation11 + $0x310] sm:$0xff]
    %v4271 = vld [vmem:[#allocation11 + $0x318] sm:$0xff]
    %v4272 = vld [vmem:[#allocation11 + $0x320] sm:$0xff]
    %v4273 = vld [vmem:[#allocation11 + $0x328] sm:$0xff]
    %v4274 = vld [vmem:[#allocation11 + $0x330] sm:$0xff]
    %v4275 = vld [vmem:[#allocation11 + $0x338] sm:$0xff]
    %v4276 = vld [vmem:[#allocation11 + $0x340] sm:$0xff]
    %v4277 = vld [vmem:[#allocation11 + $0x348] sm:$0xff]
    %v4278 = vld [vmem:[#allocation11 + $0x350] sm:$0xff]
    %v4279 = vld [vmem:[#allocation11 + $0x358] sm:$0xff]
    %v4280 = vld [vmem:[#allocation11 + $0x360] sm:$0xff]
    %v4281 = vld [vmem:[#allocation11 + $0x368] sm:$0xff]
    %v4282 = vld [vmem:[#allocation11 + $0x370] sm:$0xff]
    %v4283 = vld [vmem:[#allocation11 + $0x378] sm:$0xff]
    %v4284 = vld [vmem:[#allocation11 + $0x380] sm:$0xff]
    %v4285 = vld [vmem:[#allocation11 + $0x388] sm:$0xff]
    %v4286 = vld [vmem:[#allocation11 + $0x390] sm:$0xff]
    %v4287 = vld [vmem:[#allocation11 + $0x398] sm:$0xff]
    %v4288 = vld [vmem:[#allocation11 + $0x3a0] sm:$0xff]
    %v4289 = vld [vmem:[#allocation11 + $0x3a8] sm:$0xff]
    %v4290 = vld [vmem:[#allocation11 + $0x3b0] sm:$0xff]
    %v4291 = vld [vmem:[#allocation11 + $0x3b8] sm:$0xff]
    %v4292 = vld [vmem:[#allocation11 + $0x3c0] sm:$0xff]
    %v4293 = vld [vmem:[#allocation11 + $0x3c8] sm:$0xff]
    %v4294 = vld [vmem:[#allocation11 + $0x3d0] sm:$0xff]
    %v4295 = vld [vmem:[#allocation11 + $0x3d8] sm:$0xff]
    %v4296 = vld [vmem:[#allocation11 + $0x3e0] sm:$0xff]
    %v4297 = vld [vmem:[#allocation11 + $0x3e8] sm:$0xff]
    %v4298 = vld [vmem:[#allocation11 + $0x3f0] sm:$0xff]
    %v4299 = vld [vmem:[#allocation11 + $0x3f8] sm:$0xff]
    %v4301 = vrot.slane %v4167, 6
    %v4302 = vrot.slane %v4171, 6
    %4305 = vmatprep.subr.mxu0 %v4233
    %4306 = vmatpush1.msra.mxu0 %v4232
    %4307 = vmatprep.subr.mxu0 %v4229
    %4308 = vmatpush1.msra.mxu0 %v4228
    %4309 = vmatprep.subr.mxu0 %v4225
    %4310 = vmatpush1.msra.mxu0 %v4224
    %4311 = vmatprep.subr.mxu0 %v4221
    %4312 = vmatpush1.msra.mxu0 %v4220
    %4313 = vmatprep.subr.mxu0 %v4217
    %4314 = vmatpush1.msra.mxu0 %v4216
    %4315 = vmatprep.subr.mxu0 %v4213
    %4316 = vmatpush1.msra.mxu0 %v4212
    %4317 = vmatprep.subr.mxu0 %v4209
    %4318 = vmatpush1.msra.mxu0 %v4208
    %4319 = vmatprep.subr.mxu0 %v4205
    %4320 = vmatpush1.msra.mxu0 %v4204
    %4321 = vmatprep.subr.mxu0 %v4201
    %4322 = vmatpush1.msra.mxu0 %v4200
    %4323 = vmatprep.subr.mxu0 %v4197
    %4324 = vmatpush1.msra.mxu0 %v4196
    %4325 = vmatprep.subr.mxu0 %v4193
    %4326 = vmatpush1.msra.mxu0 %v4192
    %4327 = vmatprep.subr.mxu0 %v4189
    %4328 = vmatpush1.msra.mxu0 %v4188
    %4329 = vmatprep.subr.mxu0 %v4185
    %4330 = vmatpush1.msra.mxu0 %v4184
    %4331 = vmatprep.subr.mxu0 %v4181
    %4332 = vmatpush1.msra.mxu0 %v4180
    %4333 = vmatprep.subr.mxu0 %v4177
    %4334 = vmatpush1.msra.mxu0 %v4176
    %4335 = vmatprep.subr.mxu0 %v4173
    %4336 = vmatpush1.msra.mxu0 %v4172
    %4337 = vmatprep.subr.mxu0 %v4297
    %4338 = vmatpush2.msra.mxu0 %v4296
    %4339 = vmatprep.subr.mxu0 %v4293
    %4340 = vmatpush2.msra.mxu0 %v4292
    %4341 = vmatprep.subr.mxu0 %v4289
    %4342 = vmatpush2.msra.mxu0 %v4288
    %4343 = vmatprep.subr.mxu0 %v4285
    %4344 = vmatpush2.msra.mxu0 %v4284
    %4345 = vmatprep.subr.mxu0 %v4281
    %4346 = vmatpush2.msra.mxu0 %v4280
    %4347 = vmatprep.subr.mxu0 %v4277
    %4348 = vmatpush2.msra.mxu0 %v4276
    %4349 = vmatprep.subr.mxu0 %v4273
    %4350 = vmatpush2.msra.mxu0 %v4272
    %4351 = vmatprep.subr.mxu0 %v4269
    %4352 = vmatpush2.msra.mxu0 %v4268
    %4353 = vmatprep.subr.mxu0 %v4265
    %4354 = vmatpush2.msra.mxu0 %v4264
    %4355 = vmatprep.subr.mxu0 %v4261
    %4356 = vmatpush2.msra.mxu0 %v4260
    %4357 = vmatprep.subr.mxu0 %v4257
    %4358 = vmatpush2.msra.mxu0 %v4256
    %4359 = vmatprep.subr.mxu0 %v4253
    %4360 = vmatpush2.msra.mxu0 %v4252
    %4361 = vmatprep.subr.mxu0 %v4249
    %4362 = vmatpush2.msra.mxu0 %v4248
    %4363 = vmatprep.subr.mxu0 %v4245
    %4364 = vmatpush2.msra.mxu0 %v4244
    %4365 = vmatprep.subr.mxu0 %v4241
    %4366 = vmatpush2.msra.mxu0 %v4240
    %4367 = vmatprep.subr.mxu0 %v4237
    %4368 = vmatpush2.msra.mxu0 %v4236
    %4369 = vmatprep.mubr.f32.mxu0 %v4302
    %4370 = vmatmul.mubr.f32.gmra.mxu0 %v4301
    %v4371 = vpop.f32.mrf.mxu0
    %v4372 = vadd.f32 %v125, %v4371
    %v4373 = vpop.f32.mrf.mxu0
    %v4374 = vadd.f32 %v129, %v4373
    %4375 = vdwg.mxu0
    %4376 = vmatprep.subr.mxu0 %v4235
    %4377 = vmatpush1.msra.mxu0 %v4234
    %4378 = vmatprep.subr.mxu0 %v4231
    %4379 = vmatpush1.msra.mxu0 %v4230
    %4380 = vmatprep.subr.mxu0 %v4227
    %4381 = vmatpush1.msra.mxu0 %v4226
    %4382 = vmatprep.subr.mxu0 %v4223
    %4383 = vmatpush1.msra.mxu0 %v4222
    %4384 = vmatprep.subr.mxu0 %v4219
    %4385 = vmatpush1.msra.mxu0 %v4218
    %4386 = vmatprep.subr.mxu0 %v4215
    %4387 = vmatpush1.msra.mxu0 %v4214
    %4388 = vmatprep.subr.mxu0 %v4211
    %4389 = vmatpush1.msra.mxu0 %v4210
    %4390 = vmatprep.subr.mxu0 %v4207
    %4391 = vmatpush1.msra.mxu0 %v4206
    %4392 = vmatprep.subr.mxu0 %v4203
    %4393 = vmatpush1.msra.mxu0 %v4202
    %4394 = vmatprep.subr.mxu0 %v4199
    %4395 = vmatpush1.msra.mxu0 %v4198
    %4396 = vmatprep.subr.mxu0 %v4195
    %4397 = vmatpush1.msra.mxu0 %v4194
    %4398 = vmatprep.subr.mxu0 %v4191
    %4399 = vmatpush1.msra.mxu0 %v4190
    %4400 = vmatprep.subr.mxu0 %v4187
    %4401 = vmatpush1.msra.mxu0 %v4186
    %4402 = vmatprep.subr.mxu0 %v4183
    %4403 = vmatpush1.msra.mxu0 %v4182
    %4404 = vmatprep.subr.mxu0 %v4179
    %4405 = vmatpush1.msra.mxu0 %v4178
    %4406 = vmatprep.subr.mxu0 %v4175
    %4407 = vmatpush1.msra.mxu0 %v4174
    %4408 = vmatprep.subr.mxu0 %v4299
    %4409 = vmatpush2.msra.mxu0 %v4298
    %4410 = vmatprep.subr.mxu0 %v4295
    %4411 = vmatpush2.msra.mxu0 %v4294
    %4412 = vmatprep.subr.mxu0 %v4291
    %4413 = vmatpush2.msra.mxu0 %v4290
    %4414 = vmatprep.subr.mxu0 %v4287
    %4415 = vmatpush2.msra.mxu0 %v4286
    %4416 = vmatprep.subr.mxu0 %v4283
    %4417 = vmatpush2.msra.mxu0 %v4282
    %4418 = vmatprep.subr.mxu0 %v4279
    %4419 = vmatpush2.msra.mxu0 %v4278
    %4420 = vmatprep.subr.mxu0 %v4275
    %4421 = vmatpush2.msra.mxu0 %v4274
    %4422 = vmatprep.subr.mxu0 %v4271
    %4423 = vmatpush2.msra.mxu0 %v4270
    %4424 = vmatprep.subr.mxu0 %v4267
    %4425 = vmatpush2.msra.mxu0 %v4266
    %4426 = vmatprep.subr.mxu0 %v4263
    %4427 = vmatpush2.msra.mxu0 %v4262
    %4428 = vmatprep.subr.mxu0 %v4259
    %4429 = vmatpush2.msra.mxu0 %v4258
    %4430 = vmatprep.subr.mxu0 %v4255
    %4431 = vmatpush2.msra.mxu0 %v4254
    %4432 = vmatprep.subr.mxu0 %v4251
    %4433 = vmatpush2.msra.mxu0 %v4250
    %4434 = vmatprep.subr.mxu0 %v4247
    %4435 = vmatpush2.msra.mxu0 %v4246
    %4436 = vmatprep.subr.mxu0 %v4243
    %4437 = vmatpush2.msra.mxu0 %v4242
    %4438 = vmatprep.subr.mxu0 %v4239
    %4439 = vmatpush2.msra.mxu0 %v4238
    %4440 = vmatprep.mubr.f32.mxu0 %v4302
    %4441 = vmatmul.mubr.f32.gmra.mxu0 %v4301
    %v4442 = vpop.f32.mrf.mxu0
    %v4443 = vadd.f32 %v133, %v4442
    %v4444 = vpop.f32.mrf.mxu0
    %v4445 = vadd.f32 %v137, %v4444
    %4446 = vdwg.mxu0
    %v4447 = vxor.u32 %v4372, 2147483648
    %v4448 = vxor.u32 %v4374, 2147483648
    %v4449 = vmul.f32 %v4447, 1.442695
    %v4450 = vpow.pop %v4449
    %v4451 = vmul.f32 %v4448, 1.442695
    %v4452 = vpow.pop %v4451
    %v4453 = vadd.f32 %v4450, 1.0
    %v4454 = vadd.f32 %v4452, 1.0
    %v4455 = vrcp.pop %v4453
    %v4456 = vmul.f32 1.0, %v4455
    %v4457 = vrcp.pop %v4454
    %v4458 = vmul.f32 1.0, %v4457
    %v4459 = vmul.f32 %v4456, %v4445
    %v4460 = vadd.f32 %v4443, %v4459
    %v4461 = vtanh.pop %v4460
    %v4462 = vsub.f32 %v4169, %v4461
    %v4463 = vmul.f32 %v4458, %v4462
    %v4464 = vadd.f32 %v4461, %v4463
    %4465 = vst [vmem:[%s536] sm:$0x3] %v4464
    %v4467 = vrot.slane %v825, 1
    %v4470 = vrot.slane %v1871, 7
    %v4473 = vrot.slane %v2394, 6
    %v4476 = vrot.slane %v2895, 5
    %v4479 = vrot.slane %v3418, 4
    %v4482 = vrot.slane %v3941, 3
    %v4485 = vrot.slane %v4464, 2
    %vm4487 = vcmask 1040384
    %v4488 = vsel %vm4487, %v4467, %v1348
    %vm4489 = vcmask 1041408
    %v4490 = vsel %vm4489, %v4488, %v4470
    %vm4491 = vcmask 1042432
    %v4492 = vsel %vm4491, %v4490, %v4473
    %vm4493 = vcmask 1043456
    %v4494 = vsel %vm4493, %v4492, %v4476
    %vm4495 = vcmask 1044480
    %v4496 = vsel %vm4495, %v4494, %v4479
    %vm4497 = vcmask 1045504
    %v4498 = vsel %vm4497, %v4496, %v4482
    %vm4499 = vcmask 1046528
    %v4500 = vsel %vm4499, %v4498, %v4485
    %4501 = vst [vmem:[#allocation12] sm:$0xff] %v4500
    // Predicated region
    $region54: #{tpu_custom_call.1} parent=1 // pred_check
      %p4502 = pneg %p96
    $region55: #{tpu_custom_call.1} parent=1 // pred_check_branch
      %4504 = sbr.rel (%p4502) target = $region57
    $region56: #{tpu_custom_call.1} parent=1 // pred_region
      %v4505 = vld [vmem:[%s536] sm:$0x3]
      %4506 = vst [vmem:[#allocation13] sm:$0x3] %v4505
    $region57: #{tpu_custom_call.1} parent=1 // pred_fallthru
      _
    // Predicated region
    $region58: #{tpu_custom_call.1} parent=1 // pred_check
      _
    $region59: #{tpu_custom_call.1} parent=1 // pred_check_branch
      %4508 = sbr.rel (0) target = $region61
    $region60: #{tpu_custom_call.1} parent=1 // pred_region
      %s4510 = ssub.s32 128, 128
      %4511 = vsyncadd [#allocation5], %s4510
      %s4513 = sshll.u32 [#allocation12], 4
      %s4514 = int_to_ptr.vmem [resolvable:$true] %s4513
      %4516 = dma.vmem_to_hbm [thread:$0]  %s4514, 128, %s7, [#allocation5]
    $region61: #{tpu_custom_call.1} parent=1 // pred_fallthru
      _
    // Predicated region
    $region62: #{tpu_custom_call.1} parent=1 // pred_check
      _
    $region63: #{tpu_custom_call.1} parent=1 // pred_check_branch
      %4518 = sbr.rel (0) target = $region65
    $region64: #{tpu_custom_call.1} parent=1 // pred_region
      %s4520 = ssub.s32 32, 32
      %4521 = vsyncadd [#allocation14], %s4520
      %s4523 = sshll.u32 [#allocation13], 4
      %s4524 = int_to_ptr.vmem [resolvable:$true] %s4523
      %4526 = dma.vmem_to_hbm [thread:$0]  %s4524, 32, %s8, [#allocation14]
    $region65: #{tpu_custom_call.1} parent=1 // pred_fallthru
      _
    // Predicated region
    $region66: #{tpu_custom_call.1} parent=1 // pred_check
      _
    $region67: #{tpu_custom_call.1} parent=1 // pred_check_branch
      %4528 = sbr.rel (0) target = $region69
    $region68: #{tpu_custom_call.1} parent=1 // pred_region
      %4529 = dma.done [#allocation5], 128
    $region69: #{tpu_custom_call.1} parent=1 // pred_fallthru
      _
    // Predicated region
    $region70: #{tpu_custom_call.1} parent=1 // pred_check
      _
    $region71: #{tpu_custom_call.1} parent=1 // pred_check_branch
      %4531 = sbr.rel (0) target = $region73
    $region72: #{tpu_custom_call.1} parent=1 // pred_region
      %4532 = dma.done [#allocation14], 32
    $region73: #{tpu_custom_call.1} parent=1 // pred_fallthru
      _
    %4533 = vsyncpa [#allocation4], 1
    %4534 = vsyncpa [#allocation7], 1
    %4535 = vsyncpa [#allocation10], 1
    %4536 = vsyncpa [#allocation5], 1
    %4537 = vsyncpa [#allocation14], 1

</llo_original>
